<compile_context>
chip_gen: v5e
topology: v5e:2x2
jax: 0.10.0
libtpu: 0.0.40
codegen_flags: <defaults>
</compile_context>

<pallas_src>
import numpy as np
import jax
import jax.numpy as jnp
from jax.experimental import pallas as pl
from jax.experimental.pallas import tpu as pltpu


# ----------------------------- module configuration --------------------------
N_AGENTS = 4                   # args.n_agents
U_DIM = 8                      # agent_own_state_size
STATE_DIM = 32                 # prod(state_shape)  (>= N_AGENTS * U_DIM)
EMBED_DIM = 8                  # mixing_embed_dim
Q1 = 32                        # n_query_embedding_layer1
Q2 = 16                        # n_query_embedding_layer2
K1 = 16                        # n_key_embedding_layer1 (== Q2)
N_HEADS = 2                    # n_attention_head
HYPERNET_EMBED = 32            # args.hypernet_embed


def _round_up(x, m):
    return (x + m - 1) // m * m


# --------------------------- fused-layout constants ---------------------------
X_DIM = N_AGENTS + STATE_DIM                        # packed input: [aq | s]
H1_DIM = N_HEADS * Q1 + HYPERNET_EMBED + EMBED_DIM  # fused layer-1 width (104)
ZW_OFF = N_HEADS * Q2                               # hyper_w block offset in z
ZB_OFF = _round_up(ZW_OFF + N_AGENTS, 8)            # hyper_b offset (8-aligned)
Z_DIM = _round_up(ZB_OFF + 1, 8)                    # fused layer-2 width (48)
KEY_DIM = N_HEADS * N_AGENTS * K1                   # all (head, agent) keys (128)
HEAD_STRIDE = _round_up(N_AGENTS, 8)                # per-head row stride (8)
ATTN_DIM = N_HEADS * HEAD_STRIDE                    # logit rows (16)
TB_MAX = 512                                        # batch tile (lanes); sweepable


# ---------------------------------- kernel ------------------------------------
def hybrid_mixer_kernel(xt_ref, w1t_ref, b1c_ref, w2t_ref, b2c_ref,
                        wkt_ref, bkc_ref, rqt_ref, sselt_ref, out_ref):
    """Feature-major: xt is (X_DIM, TB); batch rows live on the lane axis."""
    xt = xt_ref[...]                                              # (X, TB)
    tb = xt.shape[1]

    # fused layer-1 of {query head 0, query head 1, hyper_w, hyper_b}
    h1 = jnp.maximum(
        jnp.dot(w1t_ref[...], xt, preferred_element_type=jnp.float32)
        + b1c_ref[...], 0.0)                                      # (H1, TB)

    # fused block-diagonal layer-2 -> z = [q_h0 | q_h1 | w | pad | b | pad]
    z = (jnp.dot(w2t_ref[...], h1, preferred_element_type=jnp.float32)
         + b2c_ref[...])                                          # (Z, TB)

    # every (head, agent) key embedding in one matmul ...
    keys = (jnp.dot(wkt_ref[...], xt, preferred_element_type=jnp.float32)
            + bkc_ref[...])                                       # (H*N*K1, TB)
    # ... tile each head's query across its agents with a constant 0/1 matmul
    qexp = jnp.dot(rqt_ref[...], z, preferred_element_type=jnp.float32)
    # per-(head, agent) scaled dot-product logits (1/sqrt(Q2) folded into sselt)
    logits = jnp.dot(sselt_ref[...], keys * qexp,
                     preferred_element_type=jnp.float32)          # (H*8, TB)

    # mean over heads of softmax over agents (reductions along sublanes)
    lam_sum = jnp.zeros((N_AGENTS, tb), jnp.float32)
    for h in range(N_HEADS):
        a = logits[h * HEAD_STRIDE:h * HEAD_STRIDE + N_AGENTS, :]
        a = a - jnp.max(a, axis=0, keepdims=True)
        e = jnp.exp(a)
        lam_sum = lam_sum + e * pl.reciprocal(
            jnp.sum(e, axis=0, keepdims=True), approx=True)

    # hyper_w branch: softmax(|w|) over agents
    wv = jnp.abs(z[ZW_OFF:ZW_OFF + N_AGENTS, :])
    wv = wv - jnp.max(wv, axis=0, keepdims=True)
    ew = jnp.exp(wv)
    w_sm = ew * pl.reciprocal(jnp.sum(ew, axis=0, keepdims=True), approx=True)

    aq = xt[0:N_AGENTS, :]                                        # agent q-values
    coef = lam_sum * (0.5 / N_HEADS) + 0.5 * w_sm
    final = (jnp.sum(aq * coef, axis=0, keepdims=True)
             + z[ZB_OFF:ZB_OFF + 1, :])                           # (1, TB)
    out_ref[...] = final[None].astype(out_ref.dtype)              # (1, 1, TB)


# --------------------------- trace-time weight fusion --------------------------
def build_fused_params(p):
    """Fuse the 14 nn.Linear weights/biases into 8 kernel-side arrays."""
    f32 = jnp.float32

    # layer 1: x (X_DIM) -> h1 (H1_DIM); the agent-q lanes multiply zero rows.
    w1 = jnp.concatenate([p["wq1"][h] for h in range(N_HEADS)]
                         + [p["ww1"], p["wb1"]], axis=1)               # (S, H1)
    w1x = jnp.concatenate([jnp.zeros((N_AGENTS, H1_DIM), f32), w1], axis=0)
    b1 = jnp.concatenate([p["bq1"][h] for h in range(N_HEADS)]
                         + [p["bw1"], p["bb1"]], axis=1)               # (1, H1)

    # layer 2 (block diagonal): h1 -> z = [q_h0 | q_h1 | w | pad | b | pad]
    w2 = jnp.zeros((H1_DIM, Z_DIM), f32)
    b2 = jnp.zeros((1, Z_DIM), f32)
    row = 0
    for h in range(N_HEADS):
        w2 = w2.at[row:row + Q1, h * Q2:(h + 1) * Q2].set(p["wq2"][h])
        b2 = b2.at[:, h * Q2:(h + 1) * Q2].set(p["bq2"][h])
        row += Q1
    w2 = w2.at[row:row + HYPERNET_EMBED, ZW_OFF:ZW_OFF + N_AGENTS].set(p["ww2"])
    b2 = b2.at[:, ZW_OFF:ZW_OFF + N_AGENTS].set(p["bw2"])
    row += HYPERNET_EMBED
    w2 = w2.at[row:row + EMBED_DIM, ZB_OFF:ZB_OFF + 1].set(p["wb2"])
    b2 = b2.at[:, ZB_OFF:ZB_OFF + 1].set(p["bb2"])

    # keys: block-diagonal over agents, both heads fused: x -> (H*N*K1)
    wk = jnp.zeros((X_DIM, KEY_DIM), f32)
    bk = jnp.zeros((1, KEY_DIM), f32)
    for h in range(N_HEADS):
        for a in range(N_AGENTS):
            c0 = h * N_AGENTS * K1 + a * K1
            r0 = N_AGENTS + a * U_DIM
            wk = wk.at[r0:r0 + U_DIM, c0:c0 + K1].set(p["wk"][h])
            bk = bk.at[:, c0:c0 + K1].set(p["bk"][h])

    # constant selection matrices: query tiling and logit reduction (scale
    # folded in).  These replace per-agent loops / lane concatenation.
    rq = np.zeros((Z_DIM, KEY_DIM), np.float32)
    ssel = np.zeros((KEY_DIM, ATTN_DIM), np.float32)
    scale = 1.0 / np.sqrt(float(Q2))
    for h in range(N_HEADS):
        for a in range(N_AGENTS):
            c0 = h * N_AGENTS * K1 + a * K1
            for k in range(K1):
                rq[h * Q2 + k, c0 + k] = 1.0
            ssel[c0:c0 + K1, h * HEAD_STRIDE + a] = scale

    return dict(w1t=w1x.T, b1c=b1.T, w2t=w2.T, b2c=b2.T,
                wkt=wk.T, bkc=bk.T,
                rqt=jnp.asarray(rq.T), sselt=jnp.asarray(ssel.T))


# ---------------------------------- wrapper ------------------------------------
def _choose_tile(B):
    tb = min(TB_MAX, _round_up(B, 128))
    bp = _round_up(B, tb)
    # keep >= 2 grid steps when possible so v7x can shard across its 2 TCs
    if bp // tb == 1 and tb > 128:
        tb = _round_up(tb // 2, 128)
        bp = _round_up(B, tb)
    return tb, bp


def hybrid_mixer(agent_qs, states, params):
    """agent_qs: (bs, seq, n_agents); states: (bs, seq, state_dim)."""
    bs, seq, n_agents = agent_qs.shape
    assert n_agents == N_AGENTS and states.shape[-1] == STATE_DIM
    B = bs * seq
    tb, bp = _choose_tile(B)
    num_tiles = bp // tb

    fused = build_fused_params(params)
    names = ("w1t", "b1c", "w2t", "b2c", "wkt", "bkc", "rqt", "sselt")
    pvals = [fused[k] for k in names]

    # pack [agent_qs | states] into one streaming input, pad the batch to a
    # multiple of the tile, and transpose to feature-major (batch -> lanes).
    x = jnp.concatenate(
        [agent_qs.reshape(B, n_agents).astype(jnp.float32),
         states.reshape(B, STATE_DIM).astype(jnp.float32)], axis=-1)
    x = jnp.pad(x, ((0, bp - B), (0, 0)))
    xt = x.T                                                       # (X_DIM, bp)

    def resident(a):
        return pl.BlockSpec(a.shape, lambda i: (0,) * a.ndim)

    flops = 2 * bp * (X_DIM * H1_DIM + H1_DIM * Z_DIM + X_DIM * KEY_DIM
                      + Z_DIM * KEY_DIM + KEY_DIM * ATTN_DIM)
    transcendentals = bp * (N_AGENTS * (N_HEADS + 1) + (N_HEADS + 1))
    bytes_accessed = (bp * (X_DIM + 1) * 4
                      + sum(int(np.prod(a.shape)) * 4 for a in pvals))

    out = pl.pallas_call(
        hybrid_mixer_kernel,
        out_shape=jax.ShapeDtypeStruct((num_tiles, 1, tb), jnp.float32),
        grid=(num_tiles,),
        in_specs=[pl.BlockSpec((X_DIM, tb), lambda i: (0, i))]
                 + [resident(a) for a in pvals],
        out_specs=pl.BlockSpec((1, 1, tb), lambda i: (i, 0, 0)),
        compiler_params=pltpu.CompilerParams(
            dimension_semantics=("parallel",)),
        cost_estimate=pl.CostEstimate(
            flops=flops, transcendentals=transcendentals,
            bytes_accessed=bytes_accessed),
    )(xt, *pvals)

    # lane-dense (num_tiles, 1, tb) -> drop batch padding -> (bs, seq, 1)
    return out.reshape(bp)[:B].reshape(bs, seq, 1)


# ----------------------------- pure-JAX reference ------------------------------
def hybrid_mixer_ref(agent_qs, states, p):
    bs, seq, n = agent_qs.shape
    B = bs * seq
    aq = agent_qs.reshape(B, n).astype(jnp.float32)
    s = states.reshape(B, STATE_DIM).astype(jnp.float32)
    us = s[:, :U_DIM * n].reshape(B, n, U_DIM)

    lam = []
    for h in range(N_HEADS):
        h1 = jax.nn.relu(s @ p["wq1"][h] + p["bq1"][h])
        q = h1 @ p["wq2"][h] + p["bq2"][h]
        key = jnp.einsum("bnu,uk->bnk", us, p["wk"][h]) + p["bk"][h]
        attn = jnp.einsum("bq,bnq->bn", q, key) / np.sqrt(Q2)
        lam.append(jax.nn.softmax(attn, axis=-1))
    lam_mean = jnp.mean(jnp.stack(lam, 1), axis=1)
    attn_q = jnp.sum(aq * lam_mean, -1, keepdims=True)

    wh = jax.nn.relu(s @ p["ww1"] + p["bw1"])
    w = jax.nn.softmax(jnp.abs(wh @ p["ww2"] + p["bw2"]), axis=-1)
    mix_q = jnp.sum(aq * w, -1, keepdims=True)

    bh = jax.nn.relu(s @ p["wb1"] + p["bb1"])
    b = bh @ p["wb2"] + p["bb2"]
    return (0.5 * (attn_q + mix_q) + b).reshape(bs, seq, 1)


# ------------------------------------ main --------------------------------------
if __name__ == "__main__":
    # Full-precision f32 matmuls on both the XLA reference and the Pallas kernel
    # so that the fused-weight kernel and the unfused reference agree tightly
    # (remaining tolerance absorbs pl.reciprocal(approx=True)).
    jax.config.update("jax_default_matmul_precision", "highest")

    key = jax.random.PRNGKey(0)
    ks = jax.random.split(key, 20)

    def init(k, shape, scale=0.1):
        return (scale * jax.random.normal(k, shape)).astype(jnp.float32)

    params = {
        "wq1": init(ks[0], (N_HEADS, STATE_DIM, Q1)),
        "bq1": init(ks[1], (N_HEADS, 1, Q1)),
        "wq2": init(ks[2], (N_HEADS, Q1, Q2)),
        "bq2": init(ks[3], (N_HEADS, 1, Q2)),
        "wk":  init(ks[4], (N_HEADS, U_DIM, K1)),
        "bk":  init(ks[5], (N_HEADS, 1, K1)),
        "ww1": init(ks[6], (STATE_DIM, HYPERNET_EMBED)),
        "bw1": init(ks[7], (1, HYPERNET_EMBED)),
        "ww2": init(ks[8], (HYPERNET_EMBED, N_AGENTS)),
        "bw2": init(ks[9], (1, N_AGENTS)),
        "wb1": init(ks[10], (STATE_DIM, EMBED_DIM)),
        "bb1": init(ks[11], (1, EMBED_DIM)),
        "wb2": init(ks[12], (EMBED_DIM, 1)),
        "bb2": init(ks[13], (1, 1)),
    }

    # small primary test (B = 8 rows -> single 128-lane tile)
    bs, seq = 2, 4
    agent_qs = jax.random.normal(ks[14], (bs, seq, N_AGENTS), jnp.float32)
    states = jax.random.normal(ks[15], (bs, seq, STATE_DIM), jnp.float32)
    out = jax.block_until_ready(hybrid_mixer(agent_qs, states, params))
    ref = hybrid_mixer_ref(agent_qs, states, params)
    assert out.shape == (bs, seq, 1), out.shape
    np.testing.assert_allclose(np.asarray(out), np.asarray(ref),
                               rtol=2e-3, atol=2e-3)

    # multi-tile test (exercises batch padding and >= 2 grid steps)
    bs2, seq2 = 2, 160
    aq2 = jax.random.normal(ks[16], (bs2, seq2, N_AGENTS), jnp.float32)
    st2 = jax.random.normal(ks[17], (bs2, seq2, STATE_DIM), jnp.float32)
    out2 = jax.block_until_ready(hybrid_mixer(aq2, st2, params))
    ref2 = hybrid_mixer_ref(aq2, st2, params)
    np.testing.assert_allclose(np.asarray(out2), np.asarray(ref2),
                               rtol=2e-3, atol=2e-3)

    print("KERNEL_OK")
</pallas_src>

<mosaic_0001>
module attributes {stable_mosaic.version = 11 : i64} {
  func.func @hybrid_mixer_kernel(%arg0: i32, %arg1: memref<36x128xf32, #tpu.memory_space<vmem>>, %arg2: memref<104x36xf32, #tpu.memory_space<vmem>>, %arg3: memref<104x1xf32, #tpu.memory_space<vmem>>, %arg4: memref<48x104xf32, #tpu.memory_space<vmem>>, %arg5: memref<48x1xf32, #tpu.memory_space<vmem>>, %arg6: memref<128x36xf32, #tpu.memory_space<vmem>>, %arg7: memref<128x1xf32, #tpu.memory_space<vmem>>, %arg8: memref<128x48xf32, #tpu.memory_space<vmem>>, %arg9: memref<16x128xf32, #tpu.memory_space<vmem>>, %arg10: memref<1x1x128xf32, #tpu.memory_space<vmem>>) attributes {dimension_semantics = [#tpu.dimension_semantics<parallel>], iteration_bounds = array<i64: 1>, scalar_prefetch = 0 : i64, scratch_operands = 0 : i64, tpu.core_type = #tpu.core_type<tc>, window_params = [{transform_indices = @transform_0, window_bounds = array<i64: 36, 128>}, {pipeline_mode = #tpu.pipeline_mode<synchronous>, transform_indices = @transform_1, window_bounds = array<i64: 104, 36>}, {pipeline_mode = #tpu.pipeline_mode<synchronous>, transform_indices = @transform_2, window_bounds = array<i64: 104, 1>}, {pipeline_mode = #tpu.pipeline_mode<synchronous>, transform_indices = @transform_3, window_bounds = array<i64: 48, 104>}, {pipeline_mode = #tpu.pipeline_mode<synchronous>, transform_indices = @transform_4, window_bounds = array<i64: 48, 1>}, {pipeline_mode = #tpu.pipeline_mode<synchronous>, transform_indices = @transform_5, window_bounds = array<i64: 128, 36>}, {pipeline_mode = #tpu.pipeline_mode<synchronous>, transform_indices = @transform_6, window_bounds = array<i64: 128, 1>}, {pipeline_mode = #tpu.pipeline_mode<synchronous>, transform_indices = @transform_7, window_bounds = array<i64: 128, 48>}, {pipeline_mode = #tpu.pipeline_mode<synchronous>, transform_indices = @transform_8, window_bounds = array<i64: 16, 128>}, {transform_indices = @transform_9, window_bounds = array<i64: 1, 1, 128>}]} {
    %c0 = arith.constant 0 : index
    %c0_0 = arith.constant 0 : index
    %0 = vector.load %arg1[%c0, %c0_0] : memref<36x128xf32, #tpu.memory_space<vmem>>, vector<36x128xf32>
    %c0_1 = arith.constant 0 : index
    %c0_2 = arith.constant 0 : index
    %1 = vector.load %arg2[%c0_1, %c0_2] : memref<104x36xf32, #tpu.memory_space<vmem>>, vector<104x36xf32>
    %cst = arith.constant dense<0.000000e+00> : vector<104x128xf32>
    %2 = tpu.matmul %1, %0, %cst {dimension_numbers = #tpu.dot_dimension_numbers<[1], [0], [0], [1], [0, 0, 1, 1], [], []>, precision = #tpu.contract_precision<fp32>} : vector<104x36xf32>, vector<36x128xf32>, vector<104x128xf32> -> vector<104x128xf32>
    %c0_3 = arith.constant 0 : index
    %c0_4 = arith.constant 0 : index
    %3 = vector.load %arg3[%c0_3, %c0_4] : memref<104x1xf32, #tpu.memory_space<vmem>>, vector<104x1xf32>
    %4 = vector.broadcast %3 : vector<104x1xf32> to vector<104x128xf32>
    %5 = arith.addf %2, %4 : vector<104x128xf32>
    %cst_5 = arith.constant 0.000000e+00 : f32
    %6 = vector.broadcast %cst_5 : f32 to vector<104x128xf32>
    %7 = arith.maximumf %5, %6 : vector<104x128xf32>
    %c0_6 = arith.constant 0 : index
    %c0_7 = arith.constant 0 : index
    %8 = vector.load %arg4[%c0_6, %c0_7] : memref<48x104xf32, #tpu.memory_space<vmem>>, vector<48x104xf32>
    %cst_8 = arith.constant dense<0.000000e+00> : vector<48x128xf32>
    %9 = tpu.matmul %8, %7, %cst_8 {dimension_numbers = #tpu.dot_dimension_numbers<[1], [0], [0], [1], [0, 0, 1, 1], [], []>, precision = #tpu.contract_precision<fp32>} : vector<48x104xf32>, vector<104x128xf32>, vector<48x128xf32> -> vector<48x128xf32>
    %c0_9 = arith.constant 0 : index
    %c0_10 = arith.constant 0 : index
    %10 = vector.load %arg5[%c0_9, %c0_10] : memref<48x1xf32, #tpu.memory_space<vmem>>, vector<48x1xf32>
    %11 = vector.broadcast %10 : vector<48x1xf32> to vector<48x128xf32>
    %12 = arith.addf %9, %11 : vector<48x128xf32>
    %c0_11 = arith.constant 0 : index
    %c0_12 = arith.constant 0 : index
    %13 = vector.load %arg6[%c0_11, %c0_12] : memref<128x36xf32, #tpu.memory_space<vmem>>, vector<128x36xf32>
    %cst_13 = arith.constant dense<0.000000e+00> : vector<128x128xf32>
    %14 = tpu.matmul %13, %0, %cst_13 {dimension_numbers = #tpu.dot_dimension_numbers<[1], [0], [0], [1], [0, 0, 1, 1], [], []>, precision = #tpu.contract_precision<fp32>} : vector<128x36xf32>, vector<36x128xf32>, vector<128x128xf32> -> vector<128x128xf32>
    %c0_14 = arith.constant 0 : index
    %c0_15 = arith.constant 0 : index
    %15 = vector.load %arg7[%c0_14, %c0_15] : memref<128x1xf32, #tpu.memory_space<vmem>>, vector<128x1xf32>
    %16 = vector.broadcast %15 : vector<128x1xf32> to vector<128x128xf32>
    %17 = arith.addf %14, %16 : vector<128x128xf32>
    %c0_16 = arith.constant 0 : index
    %c0_17 = arith.constant 0 : index
    %18 = vector.load %arg8[%c0_16, %c0_17] : memref<128x48xf32, #tpu.memory_space<vmem>>, vector<128x48xf32>
    %cst_18 = arith.constant dense<0.000000e+00> : vector<128x128xf32>
    %19 = tpu.matmul %18, %12, %cst_18 {dimension_numbers = #tpu.dot_dimension_numbers<[1], [0], [0], [1], [0, 0, 1, 1], [], []>, precision = #tpu.contract_precision<fp32>} : vector<128x48xf32>, vector<48x128xf32>, vector<128x128xf32> -> vector<128x128xf32>
    %c0_19 = arith.constant 0 : index
    %c0_20 = arith.constant 0 : index
    %20 = vector.load %arg9[%c0_19, %c0_20] : memref<16x128xf32, #tpu.memory_space<vmem>>, vector<16x128xf32>
    %21 = arith.mulf %17, %19 : vector<128x128xf32>
    %cst_21 = arith.constant dense<0.000000e+00> : vector<16x128xf32>
    %22 = tpu.matmul %20, %21, %cst_21 {dimension_numbers = #tpu.dot_dimension_numbers<[1], [0], [0], [1], [0, 0, 1, 1], [], []>, precision = #tpu.contract_precision<fp32>} : vector<16x128xf32>, vector<128x128xf32>, vector<16x128xf32> -> vector<16x128xf32>
    %cst_22 = arith.constant 0.000000e+00 : f32
    %23 = vector.broadcast %cst_22 : f32 to vector<4x128xf32>
    %24 = vector.extract_strided_slice %22 {offsets = [0, 0], sizes = [4, 128], strides = [1, 1]} : vector<16x128xf32> to vector<4x128xf32>
    %cst_23 = arith.constant dense<0xFF800000> : vector<128xf32>
    %25 = vector.multi_reduction <maximumf>, %24, %cst_23 [0] : vector<4x128xf32> to vector<128xf32>
    %26 = vector.shape_cast %25 : vector<128xf32> to vector<1x128xf32>
    %27 = vector.broadcast %26 : vector<1x128xf32> to vector<4x128xf32>
    %28 = arith.subf %24, %27 : vector<4x128xf32>
    %29 = math.exp %28 : vector<4x128xf32>
    %cst_24 = arith.constant dense<0.000000e+00> : vector<128xf32>
    %30 = vector.multi_reduction <add>, %29, %cst_24 [0] : vector<4x128xf32> to vector<128xf32>
    %31 = vector.shape_cast %30 : vector<128xf32> to vector<1x128xf32>
    %32 = tpu.reciprocal %31 {approx = true} : vector<1x128xf32> -> vector<1x128xf32>
    %33 = vector.broadcast %32 : vector<1x128xf32> to vector<4x128xf32>
    %34 = arith.mulf %29, %33 : vector<4x128xf32>
    %35 = arith.addf %23, %34 : vector<4x128xf32>
    %36 = vector.extract_strided_slice %22 {offsets = [8, 0], sizes = [4, 128], strides = [1, 1]} : vector<16x128xf32> to vector<4x128xf32>
    %cst_25 = arith.constant dense<0xFF800000> : vector<128xf32>
    %37 = vector.multi_reduction <maximumf>, %36, %cst_25 [0] : vector<4x128xf32> to vector<128xf32>
    %38 = vector.shape_cast %37 : vector<128xf32> to vector<1x128xf32>
    %39 = vector.broadcast %38 : vector<1x128xf32> to vector<4x128xf32>
    %40 = arith.subf %36, %39 : vector<4x128xf32>
    %41 = math.exp %40 : vector<4x128xf32>
    %cst_26 = arith.constant dense<0.000000e+00> : vector<128xf32>
    %42 = vector.multi_reduction <add>, %41, %cst_26 [0] : vector<4x128xf32> to vector<128xf32>
    %43 = vector.shape_cast %42 : vector<128xf32> to vector<1x128xf32>
    %44 = tpu.reciprocal %43 {approx = true} : vector<1x128xf32> -> vector<1x128xf32>
    %45 = vector.broadcast %44 : vector<1x128xf32> to vector<4x128xf32>
    %46 = arith.mulf %41, %45 : vector<4x128xf32>
    %47 = arith.addf %35, %46 : vector<4x128xf32>
    %48 = vector.extract_strided_slice %12 {offsets = [32, 0], sizes = [4, 128], strides = [1, 1]} : vector<48x128xf32> to vector<4x128xf32>
    %49 = math.absf %48 : vector<4x128xf32>
    %cst_27 = arith.constant dense<0xFF800000> : vector<128xf32>
    %50 = vector.multi_reduction <maximumf>, %49, %cst_27 [0] : vector<4x128xf32> to vector<128xf32>
    %51 = vector.shape_cast %50 : vector<128xf32> to vector<1x128xf32>
    %52 = vector.broadcast %51 : vector<1x128xf32> to vector<4x128xf32>
    %53 = arith.subf %49, %52 : vector<4x128xf32>
    %54 = math.exp %53 : vector<4x128xf32>
    %cst_28 = arith.constant dense<0.000000e+00> : vector<128xf32>
    %55 = vector.multi_reduction <add>, %54, %cst_28 [0] : vector<4x128xf32> to vector<128xf32>
    %56 = vector.shape_cast %55 : vector<128xf32> to vector<1x128xf32>
    %57 = tpu.reciprocal %56 {approx = true} : vector<1x128xf32> -> vector<1x128xf32>
    %58 = vector.broadcast %57 : vector<1x128xf32> to vector<4x128xf32>
    %59 = arith.mulf %54, %58 : vector<4x128xf32>
    %60 = vector.extract_strided_slice %0 {offsets = [0, 0], sizes = [4, 128], strides = [1, 1]} : vector<36x128xf32> to vector<4x128xf32>
    %cst_29 = arith.constant 2.500000e-01 : f32
    %61 = vector.broadcast %cst_29 : f32 to vector<4x128xf32>
    %62 = arith.mulf %47, %61 : vector<4x128xf32>
    %cst_30 = arith.constant 5.000000e-01 : f32
    %63 = vector.broadcast %cst_30 : f32 to vector<4x128xf32>
    %64 = arith.mulf %63, %59 : vector<4x128xf32>
    %65 = arith.addf %62, %64 : vector<4x128xf32>
    %66 = arith.mulf %60, %65 : vector<4x128xf32>
    %cst_31 = arith.constant dense<0.000000e+00> : vector<128xf32>
    %67 = vector.multi_reduction <add>, %66, %cst_31 [0] : vector<4x128xf32> to vector<128xf32>
    %68 = vector.shape_cast %67 : vector<128xf32> to vector<1x128xf32>
    %69 = vector.extract_strided_slice %12 {offsets = [40, 0], sizes = [1, 128], strides = [1, 1]} : vector<48x128xf32> to vector<1x128xf32>
    %70 = arith.addf %68, %69 : vector<1x128xf32>
    %71 = vector.shape_cast %70 : vector<1x128xf32> to vector<1x1x128xf32>
    %c0_32 = arith.constant 0 : index
    %c0_33 = arith.constant 0 : index
    %c0_34 = arith.constant 0 : index
    %72 = vector.load %arg10[%c0_32, %c0_33, %c0_34] : memref<1x1x128xf32, #tpu.memory_space<vmem>>, vector<1x1x128xf32>
    tpu.vector_store %arg10[%c0_32, %c0_33, %c0_34], %71 {strides = array<i32>} : memref<1x1x128xf32, #tpu.memory_space<vmem>>, vector<1x1x128xf32>,
    return
  }
  func.func @transform_0(%arg0: i32) -> (i32, i32) {
    %c0_i32 = arith.constant 0 : i32
    %c0_i32_0 = arith.constant 0 : i32
    return %c0_i32, %arg0 : i32, i32
  }
  func.func @transform_1(%arg0: i32) -> (i32, i32) {
    %c0_i32 = arith.constant 0 : i32
    %c0_i32_0 = arith.constant 0 : i32
    %c0_i32_1 = arith.constant 0 : i32
    return %c0_i32, %c0_i32_0 : i32, i32
  }
  func.func @transform_2(%arg0: i32) -> (i32, i32) {
    %c0_i32 = arith.constant 0 : i32
    %c0_i32_0 = arith.constant 0 : i32
    %c0_i32_1 = arith.constant 0 : i32
    return %c0_i32, %c0_i32_0 : i32, i32
  }
  func.func @transform_3(%arg0: i32) -> (i32, i32) {
    %c0_i32 = arith.constant 0 : i32
    %c0_i32_0 = arith.constant 0 : i32
    %c0_i32_1 = arith.constant 0 : i32
    return %c0_i32, %c0_i32_0 : i32, i32
  }
  func.func @transform_4(%arg0: i32) -> (i32, i32) {
    %c0_i32 = arith.constant 0 : i32
    %c0_i32_0 = arith.constant 0 : i32
    %c0_i32_1 = arith.constant 0 : i32
    return %c0_i32, %c0_i32_0 : i32, i32
  }
  func.func @transform_5(%arg0: i32) -> (i32, i32) {
    %c0_i32 = arith.constant 0 : i32
    %c0_i32_0 = arith.constant 0 : i32
    %c0_i32_1 = arith.constant 0 : i32
    return %c0_i32, %c0_i32_0 : i32, i32
  }
  func.func @transform_6(%arg0: i32) -> (i32, i32) {
    %c0_i32 = arith.constant 0 : i32
    %c0_i32_0 = arith.constant 0 : i32
    %c0_i32_1 = arith.constant 0 : i32
    return %c0_i32, %c0_i32_0 : i32, i32
  }
  func.func @transform_7(%arg0: i32) -> (i32, i32) {
    %c0_i32 = arith.constant 0 : i32
    %c0_i32_0 = arith.constant 0 : i32
    %c0_i32_1 = arith.constant 0 : i32
    return %c0_i32, %c0_i32_0 : i32, i32
  }
  func.func @transform_8(%arg0: i32) -> (i32, i32) {
    %c0_i32 = arith.constant 0 : i32
    %c0_i32_0 = arith.constant 0 : i32
    %c0_i32_1 = arith.constant 0 : i32
    return %c0_i32, %c0_i32_0 : i32, i32
  }
  func.func @transform_9(%arg0: i32) -> (i32, i32, i32) {
    %c0_i32 = arith.constant 0 : i32
    %c0_i32_0 = arith.constant 0 : i32
    %c0_i32_1 = arith.constant 0 : i32
    return %arg0, %c0_i32, %c0_i32_0 : i32, i32, i32
  }
}

</mosaic_0001>

<llo_original>
// kernel: tpu_custom_call.1
$region0: #{tpu_custom_call.1}
  #allocation0 [shape = 'u32[]', space=smem, size = 0x4, offset = 0x4, fixed_abs, tag = 'smem constant byte address 0x4 - core index']
  #allocation1 [shape = 'u32[72,128]{1,0:T(1,128)}', space=vmem, size = 0x9000, scoped, tag = 'internal scratch']
  %s0 = inlined_call_operand.vmem [shape: f32[36,128], index: 0, kind: input, shape index: {}]
  %s1 = inlined_call_operand.vmem [shape: f32[104,36], index: 1, kind: input, shape index: {}]
  %s2 = inlined_call_operand.vmem [shape: f32[104,1], index: 2, kind: input, shape index: {}]
  %s3 = inlined_call_operand.vmem [shape: f32[48,104], index: 3, kind: input, shape index: {}]
  %s4 = inlined_call_operand.vmem [shape: f32[48,1], index: 4, kind: input, shape index: {}]
  %s5 = inlined_call_operand.vmem [shape: f32[128,36], index: 5, kind: input, shape index: {}]
  %s6 = inlined_call_operand.vmem [shape: f32[128,1], index: 6, kind: input, shape index: {}]
  %s7 = inlined_call_operand.vmem [shape: f32[128,48], index: 7, kind: input, shape index: {}]
  %s8 = inlined_call_operand.vmem [shape: f32[16,128], index: 8, kind: input, shape index: {}]
  %s9 = inlined_call_operand.hbm [shape: f32[1,1,128], index: 9, kind: output, shape index: {}]
  %s10 = sld [smem:[#allocation0]]
  $region46: #{tpu_custom_call.1} parent=0
    _
  %s12 = ssub.s32 1, %s10
  %s13 = scalar_select 0, %s12, %s10
  $region1: #{tpu_custom_call.1} parent=0
    #allocation2 [shape = 'u8[512]{0}', space=vmem, size = 0x400, scoped, tag = 'output window, operand 0, single buffered']
    #allocation3 [shape = 's32[1]{0}', space=sflag, size = 0x4, scoped, tag = 'scoped memory for tpu_custom_call.1']
    %14 = vsyncpa [#allocation3], 0
    // Predicated region
    $region2: #{tpu_custom_call.1} parent=1 // pred_check
      _
    $region3: #{tpu_custom_call.1} parent=1 // pred_check_branch
      %16 = sbr.rel (0) target = $region5
    $region4: #{tpu_custom_call.1} parent=1 // pred_region
      _
    $region5: #{tpu_custom_call.1} parent=1 // pred_fallthru
      _
    // Predicated region
    $region6: #{tpu_custom_call.1} parent=1 // pred_check
      _
    $region7: #{tpu_custom_call.1} parent=1 // pred_check_branch
      %18 = sbr.rel (0) target = $region9
    $region8: #{tpu_custom_call.1} parent=1 // pred_region
      _
    $region9: #{tpu_custom_call.1} parent=1 // pred_fallthru
      _
    // Predicated region
    $region10: #{tpu_custom_call.1} parent=1 // pred_check
      _
    $region11: #{tpu_custom_call.1} parent=1 // pred_check_branch
      %20 = sbr.rel (0) target = $region13
    $region12: #{tpu_custom_call.1} parent=1 // pred_region
      _
    $region13: #{tpu_custom_call.1} parent=1 // pred_fallthru
      _
    // Predicated region
    $region14: #{tpu_custom_call.1} parent=1 // pred_check
      _
    $region15: #{tpu_custom_call.1} parent=1 // pred_check_branch
      %22 = sbr.rel (0) target = $region17
    $region16: #{tpu_custom_call.1} parent=1 // pred_region
      _
    $region17: #{tpu_custom_call.1} parent=1 // pred_fallthru
      _
    // Predicated region
    $region18: #{tpu_custom_call.1} parent=1 // pred_check
      _
    $region19: #{tpu_custom_call.1} parent=1 // pred_check_branch
      %24 = sbr.rel (0) target = $region21
    $region20: #{tpu_custom_call.1} parent=1 // pred_region
      _
    $region21: #{tpu_custom_call.1} parent=1 // pred_fallthru
      _
    // Predicated region
    $region22: #{tpu_custom_call.1} parent=1 // pred_check
      _
    $region23: #{tpu_custom_call.1} parent=1 // pred_check_branch
      %26 = sbr.rel (0) target = $region25
    $region24: #{tpu_custom_call.1} parent=1 // pred_region
      _
    $region25: #{tpu_custom_call.1} parent=1 // pred_fallthru
      _
    // Predicated region
    $region26: #{tpu_custom_call.1} parent=1 // pred_check
      _
    $region27: #{tpu_custom_call.1} parent=1 // pred_check_branch
      %28 = sbr.rel (0) target = $region29
    $region28: #{tpu_custom_call.1} parent=1 // pred_region
      _
    $region29: #{tpu_custom_call.1} parent=1 // pred_fallthru
      _
    // Predicated region
    $region30: #{tpu_custom_call.1} parent=1 // pred_check
      _
    $region31: #{tpu_custom_call.1} parent=1 // pred_check_branch
      %30 = sbr.rel (0) target = $region33
    $region32: #{tpu_custom_call.1} parent=1 // pred_region
      _
    $region33: #{tpu_custom_call.1} parent=1 // pred_fallthru
      _
    // Predicated region
    $region34: #{tpu_custom_call.1} parent=1 // pred_check
      _
    $region35: #{tpu_custom_call.1} parent=1 // pred_check_branch
      %32 = sbr.rel (0) target = $region37
    $region36: #{tpu_custom_call.1} parent=1 // pred_region
      _
    $region37: #{tpu_custom_call.1} parent=1 // pred_fallthru
      _
    %v33 = vld [vmem:[%s0] sm:$0xff]
    %v34 = vld [vmem:[%s0 + $0x8] sm:$0xff]
    %v35 = vld [vmem:[%s0 + $0x10] sm:$0xff]
    %v36 = vld [vmem:[%s0 + $0x18] sm:$0xff]
    %v37 = vld [vmem:[%s0 + $0x20] sm:$0xf]
    %v38 = vld [vmem:[%s1] sm:$0xff]
    %v39 = vld [vmem:[%s1 + $0x8] sm:$0xff]
    %v40 = vld [vmem:[%s1 + $0x10] sm:$0xff]
    %v41 = vld [vmem:[%s1 + $0x18] sm:$0xff]
    %v42 = vld [vmem:[%s1 + $0x20] sm:$0xff]
    %v43 = vld [vmem:[%s1 + $0x28] sm:$0xff]
    %v44 = vld [vmem:[%s1 + $0x30] sm:$0xff]
    %v45 = vld [vmem:[%s1 + $0x38] sm:$0xff]
    %v46 = vld [vmem:[%s1 + $0x40] sm:$0xff]
    %v47 = vld [vmem:[%s1 + $0x48] sm:$0xff]
    %v48 = vld [vmem:[%s1 + $0x50] sm:$0xff]
    %v49 = vld [vmem:[%s1 + $0x58] sm:$0xff]
    %v50 = vld [vmem:[%s1 + $0x60] sm:$0xff]
    %v51 = vld [vmem:[%s2] sm:$0xff]
    %v52 = vld [vmem:[%s2 + $0x8] sm:$0xff]
    %v53 = vld [vmem:[%s2 + $0x10] sm:$0xff]
    %v54 = vld [vmem:[%s2 + $0x18] sm:$0xff]
    %v55 = vld [vmem:[%s2 + $0x20] sm:$0xff]
    %v56 = vld [vmem:[%s2 + $0x28] sm:$0xff]
    %v57 = vld [vmem:[%s2 + $0x30] sm:$0xff]
    %v58 = vld [vmem:[%s2 + $0x38] sm:$0xff]
    %v59 = vld [vmem:[%s2 + $0x40] sm:$0xff]
    %v60 = vld [vmem:[%s2 + $0x48] sm:$0xff]
    %v61 = vld [vmem:[%s2 + $0x50] sm:$0xff]
    %v62 = vld [vmem:[%s2 + $0x58] sm:$0xff]
    %v63 = vld [vmem:[%s2 + $0x60] sm:$0xff]
    %65 = vset.pattern.permute.xlu0 0
    %66 = vperm.xlu0 %65, %v51
    %v67 = vpop.permute.xlu0 %66
    %70 = vset.pattern.permute.xlu0 0
    %71 = vperm.xlu0 %70, %v52
    %v72 = vpop.permute.xlu0 %71
    %75 = vset.pattern.permute.xlu0 0
    %76 = vperm.xlu0 %75, %v53
    %v77 = vpop.permute.xlu0 %76
    %80 = vset.pattern.permute.xlu0 0
    %81 = vperm.xlu0 %80, %v54
    %v82 = vpop.permute.xlu0 %81
    %85 = vset.pattern.permute.xlu0 0
    %86 = vperm.xlu0 %85, %v55
    %v87 = vpop.permute.xlu0 %86
    %90 = vset.pattern.permute.xlu0 0
    %91 = vperm.xlu0 %90, %v56
    %v92 = vpop.permute.xlu0 %91
    %95 = vset.pattern.permute.xlu0 0
    %96 = vperm.xlu0 %95, %v57
    %v97 = vpop.permute.xlu0 %96
    %100 = vset.pattern.permute.xlu0 0
    %101 = vperm.xlu0 %100, %v58
    %v102 = vpop.permute.xlu0 %101
    %105 = vset.pattern.permute.xlu0 0
    %106 = vperm.xlu0 %105, %v59
    %v107 = vpop.permute.xlu0 %106
    %110 = vset.pattern.permute.xlu0 0
    %111 = vperm.xlu0 %110, %v60
    %v112 = vpop.permute.xlu0 %111
    %115 = vset.pattern.permute.xlu0 0
    %116 = vperm.xlu0 %115, %v61
    %v117 = vpop.permute.xlu0 %116
    %120 = vset.pattern.permute.xlu0 0
    %121 = vperm.xlu0 %120, %v62
    %v122 = vpop.permute.xlu0 %121
    %125 = vset.pattern.permute.xlu0 0
    %126 = vperm.xlu0 %125, %v63
    %v127 = vpop.permute.xlu0 %126
    %vm129 = vcmask 293888
    %v131 = vsel %vm129, %v38, 0
    %v134 = vsel %vm129, %v39, 0
    %v137 = vsel %vm129, %v40, 0
    %v140 = vsel %vm129, %v41, 0
    %v143 = vsel %vm129, %v42, 0
    %v146 = vsel %vm129, %v43, 0
    %v149 = vsel %vm129, %v44, 0
    %v152 = vsel %vm129, %v45, 0
    %v155 = vsel %vm129, %v46, 0
    %v158 = vsel %vm129, %v47, 0
    %v161 = vsel %vm129, %v48, 0
    %v164 = vsel %vm129, %v49, 0
    %v167 = vsel %vm129, %v50, 0
    %vm169 = vcmask 1043456
    %v171 = vsel %vm169, %v37, 0
    %173 = vmatpush.msra.mxu0 0.0
    %174 = vmatpush.msra.mxu0 0.0
    %175 = vmatpush.msra.mxu0 0.0
    %176 = vmatpush.msra.mxu0 0.0
    %177 = vmatpush.msra.mxu0 0.0
    %178 = vmatpush.msra.mxu0 0.0
    %179 = vmatpush.msra.mxu0 0.0
    %180 = vmatpush.msra.mxu0 0.0
    %181 = vmatpush.msra.mxu0 0.0
    %182 = vmatpush.msra.mxu0 0.0
    %183 = vmatpush.msra.mxu0 0.0
    %v184 = vand.u32 %v171, 4294901760
    %185 = vmatpush.msra.mxu0 %v184
    %v186 = vand.u32 %v36, 4294901760
    %187 = vmatpush.msra.mxu0 %v186
    %v188 = vand.u32 %v35, 4294901760
    %189 = vmatpush.msra.mxu0 %v188
    %v190 = vand.u32 %v34, 4294901760
    %191 = vmatpush.msra.mxu0 %v190
    %v192 = vand.u32 %v33, 4294901760
    %193 = vmatpush.msra.mxu0 %v192
    %v194 = vand.u32 %v131, 4294901760
    %v195 = vsub.f32 %v131, %v194
    %v196 = vand.u32 %v195, 4294901760
    %v197 = vsub.f32 %v195, %v196
    %v198 = vand.u32 %v197, 4294901760
    %199 = vmatmul.f32.gmra.mxu0 %v198
    %v200 = vpop.f32.mrf.mxu0
    %v201 = vadd.f32 %v67, %v200
    %v202 = vand.u32 %v134, 4294901760
    %v203 = vsub.f32 %v134, %v202
    %v204 = vand.u32 %v203, 4294901760
    %v205 = vsub.f32 %v203, %v204
    %v206 = vand.u32 %v205, 4294901760
    %207 = vmatmul.f32.gmra.mxu0 %v206
    %v208 = vpop.f32.mrf.mxu0
    %v209 = vadd.f32 %v72, %v208
    %v210 = vand.u32 %v137, 4294901760
    %v211 = vsub.f32 %v137, %v210
    %v212 = vand.u32 %v211, 4294901760
    %v213 = vsub.f32 %v211, %v212
    %v214 = vand.u32 %v213, 4294901760
    %215 = vmatmul.f32.gmra.mxu0 %v214
    %v216 = vpop.f32.mrf.mxu0
    %v217 = vadd.f32 %v77, %v216
    %v218 = vand.u32 %v140, 4294901760
    %v219 = vsub.f32 %v140, %v218
    %v220 = vand.u32 %v219, 4294901760
    %v221 = vsub.f32 %v219, %v220
    %v222 = vand.u32 %v221, 4294901760
    %223 = vmatmul.f32.gmra.mxu0 %v222
    %v224 = vpop.f32.mrf.mxu0
    %v225 = vadd.f32 %v82, %v224
    %v226 = vand.u32 %v143, 4294901760
    %v227 = vsub.f32 %v143, %v226
    %v228 = vand.u32 %v227, 4294901760
    %v229 = vsub.f32 %v227, %v228
    %v230 = vand.u32 %v229, 4294901760
    %231 = vmatmul.f32.gmra.mxu0 %v230
    %v232 = vpop.f32.mrf.mxu0
    %v233 = vadd.f32 %v87, %v232
    %v234 = vand.u32 %v146, 4294901760
    %v235 = vsub.f32 %v146, %v234
    %v236 = vand.u32 %v235, 4294901760
    %v237 = vsub.f32 %v235, %v236
    %v238 = vand.u32 %v237, 4294901760
    %239 = vmatmul.f32.gmra.mxu0 %v238
    %v240 = vpop.f32.mrf.mxu0
    %v241 = vadd.f32 %v92, %v240
    %v242 = vand.u32 %v149, 4294901760
    %v243 = vsub.f32 %v149, %v242
    %v244 = vand.u32 %v243, 4294901760
    %v245 = vsub.f32 %v243, %v244
    %v246 = vand.u32 %v245, 4294901760
    %247 = vmatmul.f32.gmra.mxu0 %v246
    %v248 = vpop.f32.mrf.mxu0
    %v249 = vadd.f32 %v97, %v248
    %v250 = vand.u32 %v152, 4294901760
    %v251 = vsub.f32 %v152, %v250
    %v252 = vand.u32 %v251, 4294901760
    %v253 = vsub.f32 %v251, %v252
    %v254 = vand.u32 %v253, 4294901760
    %255 = vmatmul.f32.gmra.mxu0 %v254
    %v256 = vpop.f32.mrf.mxu0
    %v257 = vadd.f32 %v102, %v256
    %v258 = vand.u32 %v155, 4294901760
    %v259 = vsub.f32 %v155, %v258
    %v260 = vand.u32 %v259, 4294901760
    %v261 = vsub.f32 %v259, %v260
    %v262 = vand.u32 %v261, 4294901760
    %263 = vmatmul.f32.gmra.mxu0 %v262
    %v264 = vpop.f32.mrf.mxu0
    %v265 = vadd.f32 %v107, %v264
    %v266 = vand.u32 %v158, 4294901760
    %v267 = vsub.f32 %v158, %v266
    %v268 = vand.u32 %v267, 4294901760
    %v269 = vsub.f32 %v267, %v268
    %v270 = vand.u32 %v269, 4294901760
    %271 = vmatmul.f32.gmra.mxu0 %v270
    %v272 = vpop.f32.mrf.mxu0
    %v273 = vadd.f32 %v112, %v272
    %v274 = vand.u32 %v161, 4294901760
    %v275 = vsub.f32 %v161, %v274
    %v276 = vand.u32 %v275, 4294901760
    %v277 = vsub.f32 %v275, %v276
    %v278 = vand.u32 %v277, 4294901760
    %279 = vmatmul.f32.gmra.mxu0 %v278
    %v280 = vpop.f32.mrf.mxu0
    %v281 = vadd.f32 %v117, %v280
    %v282 = vand.u32 %v164, 4294901760
    %v283 = vsub.f32 %v164, %v282
    %v284 = vand.u32 %v283, 4294901760
    %v285 = vsub.f32 %v283, %v284
    %v286 = vand.u32 %v285, 4294901760
    %287 = vmatmul.f32.gmra.mxu0 %v286
    %v288 = vpop.f32.mrf.mxu0
    %v289 = vadd.f32 %v122, %v288
    %v290 = vand.u32 %v167, 4294901760
    %v291 = vsub.f32 %v167, %v290
    %v292 = vand.u32 %v291, 4294901760
    %v293 = vsub.f32 %v291, %v292
    %v294 = vand.u32 %v293, 4294901760
    %295 = vmatmul.f32.gmra.mxu0 %v294
    %v296 = vpop.f32.mrf.mxu0
    %v297 = vadd.f32 %v127, %v296
    %298 = vdwg.mxu0
    %299 = vmatpush.msra.mxu0 0.0
    %300 = vmatpush.msra.mxu0 0.0
    %301 = vmatpush.msra.mxu0 0.0
    %302 = vmatpush.msra.mxu0 0.0
    %303 = vmatpush.msra.mxu0 0.0
    %304 = vmatpush.msra.mxu0 0.0
    %305 = vmatpush.msra.mxu0 0.0
    %306 = vmatpush.msra.mxu0 0.0
    %307 = vmatpush.msra.mxu0 0.0
    %308 = vmatpush.msra.mxu0 0.0
    %309 = vmatpush.msra.mxu0 0.0
    %v310 = vand.u32 %v171, 4294901760
    %v311 = vsub.f32 %v171, %v310
    %v312 = vand.u32 %v311, 4294901760
    %v313 = vsub.f32 %v311, %v312
    %v314 = vand.u32 %v313, 4294901760
    %315 = vmatpush.msra.mxu0 %v314
    %v316 = vand.u32 %v36, 4294901760
    %v317 = vsub.f32 %v36, %v316
    %v318 = vand.u32 %v317, 4294901760
    %v319 = vsub.f32 %v317, %v318
    %v320 = vand.u32 %v319, 4294901760
    %321 = vmatpush.msra.mxu0 %v320
    %v322 = vand.u32 %v35, 4294901760
    %v323 = vsub.f32 %v35, %v322
    %v324 = vand.u32 %v323, 4294901760
    %v325 = vsub.f32 %v323, %v324
    %v326 = vand.u32 %v325, 4294901760
    %327 = vmatpush.msra.mxu0 %v326
    %v328 = vand.u32 %v34, 4294901760
    %v329 = vsub.f32 %v34, %v328
    %v330 = vand.u32 %v329, 4294901760
    %v331 = vsub.f32 %v329, %v330
    %v332 = vand.u32 %v331, 4294901760
    %333 = vmatpush.msra.mxu0 %v332
    %v334 = vand.u32 %v33, 4294901760
    %v335 = vsub.f32 %v33, %v334
    %v336 = vand.u32 %v335, 4294901760
    %v337 = vsub.f32 %v335, %v336
    %v338 = vand.u32 %v337, 4294901760
    %339 = vmatpush.msra.mxu0 %v338
    %v340 = vand.u32 %v131, 4294901760
    %341 = vmatmul.f32.gmra.mxu0 %v340
    %v342 = vpop.f32.mrf.mxu0
    %v343 = vadd.f32 %v201, %v342
    %v344 = vand.u32 %v134, 4294901760
    %345 = vmatmul.f32.gmra.mxu0 %v344
    %v346 = vpop.f32.mrf.mxu0
    %v347 = vadd.f32 %v209, %v346
    %v348 = vand.u32 %v137, 4294901760
    %349 = vmatmul.f32.gmra.mxu0 %v348
    %v350 = vpop.f32.mrf.mxu0
    %v351 = vadd.f32 %v217, %v350
    %v352 = vand.u32 %v140, 4294901760
    %353 = vmatmul.f32.gmra.mxu0 %v352
    %v354 = vpop.f32.mrf.mxu0
    %v355 = vadd.f32 %v225, %v354
    %v356 = vand.u32 %v143, 4294901760
    %357 = vmatmul.f32.gmra.mxu0 %v356
    %v358 = vpop.f32.mrf.mxu0
    %v359 = vadd.f32 %v233, %v358
    %v360 = vand.u32 %v146, 4294901760
    %361 = vmatmul.f32.gmra.mxu0 %v360
    %v362 = vpop.f32.mrf.mxu0
    %v363 = vadd.f32 %v241, %v362
    %v364 = vand.u32 %v149, 4294901760
    %365 = vmatmul.f32.gmra.mxu0 %v364
    %v366 = vpop.f32.mrf.mxu0
    %v367 = vadd.f32 %v249, %v366
    %v368 = vand.u32 %v152, 4294901760
    %369 = vmatmul.f32.gmra.mxu0 %v368
    %v370 = vpop.f32.mrf.mxu0
    %v371 = vadd.f32 %v257, %v370
    %v372 = vand.u32 %v155, 4294901760
    %373 = vmatmul.f32.gmra.mxu0 %v372
    %v374 = vpop.f32.mrf.mxu0
    %v375 = vadd.f32 %v265, %v374
    %v376 = vand.u32 %v158, 4294901760
    %377 = vmatmul.f32.gmra.mxu0 %v376
    %v378 = vpop.f32.mrf.mxu0
    %v379 = vadd.f32 %v273, %v378
    %v380 = vand.u32 %v161, 4294901760
    %381 = vmatmul.f32.gmra.mxu0 %v380
    %v382 = vpop.f32.mrf.mxu0
    %v383 = vadd.f32 %v281, %v382
    %v384 = vand.u32 %v164, 4294901760
    %385 = vmatmul.f32.gmra.mxu0 %v384
    %v386 = vpop.f32.mrf.mxu0
    %v387 = vadd.f32 %v289, %v386
    %v388 = vand.u32 %v167, 4294901760
    %389 = vmatmul.f32.gmra.mxu0 %v388
    %v390 = vpop.f32.mrf.mxu0
    %v391 = vadd.f32 %v297, %v390
    %392 = vdwg.mxu0
    %393 = vmatpush.msra.mxu0 0.0
    %394 = vmatpush.msra.mxu0 0.0
    %395 = vmatpush.msra.mxu0 0.0
    %396 = vmatpush.msra.mxu0 0.0
    %397 = vmatpush.msra.mxu0 0.0
    %398 = vmatpush.msra.mxu0 0.0
    %399 = vmatpush.msra.mxu0 0.0
    %400 = vmatpush.msra.mxu0 0.0
    %401 = vmatpush.msra.mxu0 0.0
    %402 = vmatpush.msra.mxu0 0.0
    %403 = vmatpush.msra.mxu0 0.0
    %v404 = vand.u32 %v171, 4294901760
    %v405 = vsub.f32 %v171, %v404
    %406 = vmatpush.msra.mxu0 %v405
    %v407 = vand.u32 %v36, 4294901760
    %v408 = vsub.f32 %v36, %v407
    %409 = vmatpush.msra.mxu0 %v408
    %v410 = vand.u32 %v35, 4294901760
    %v411 = vsub.f32 %v35, %v410
    %412 = vmatpush.msra.mxu0 %v411
    %v413 = vand.u32 %v34, 4294901760
    %v414 = vsub.f32 %v34, %v413
    %415 = vmatpush.msra.mxu0 %v414
    %v416 = vand.u32 %v33, 4294901760
    %v417 = vsub.f32 %v33, %v416
    %418 = vmatpush.msra.mxu0 %v417
    %v419 = vand.u32 %v131, 4294901760
    %v420 = vsub.f32 %v131, %v419
    %421 = vmatmul.f32.gmra.mxu0 %v420
    %v422 = vpop.f32.mrf.mxu0
    %v423 = vadd.f32 %v343, %v422
    %v424 = vand.u32 %v134, 4294901760
    %v425 = vsub.f32 %v134, %v424
    %426 = vmatmul.f32.gmra.mxu0 %v425
    %v427 = vpop.f32.mrf.mxu0
    %v428 = vadd.f32 %v347, %v427
    %v429 = vand.u32 %v137, 4294901760
    %v430 = vsub.f32 %v137, %v429
    %431 = vmatmul.f32.gmra.mxu0 %v430
    %v432 = vpop.f32.mrf.mxu0
    %v433 = vadd.f32 %v351, %v432
    %v434 = vand.u32 %v140, 4294901760
    %v435 = vsub.f32 %v140, %v434
    %436 = vmatmul.f32.gmra.mxu0 %v435
    %v437 = vpop.f32.mrf.mxu0
    %v438 = vadd.f32 %v355, %v437
    %v439 = vand.u32 %v143, 4294901760
    %v440 = vsub.f32 %v143, %v439
    %441 = vmatmul.f32.gmra.mxu0 %v440
    %v442 = vpop.f32.mrf.mxu0
    %v443 = vadd.f32 %v359, %v442
    %v444 = vand.u32 %v146, 4294901760
    %v445 = vsub.f32 %v146, %v444
    %446 = vmatmul.f32.gmra.mxu0 %v445
    %v447 = vpop.f32.mrf.mxu0
    %v448 = vadd.f32 %v363, %v447
    %v449 = vand.u32 %v149, 4294901760
    %v450 = vsub.f32 %v149, %v449
    %451 = vmatmul.f32.gmra.mxu0 %v450
    %v452 = vpop.f32.mrf.mxu0
    %v453 = vadd.f32 %v367, %v452
    %v454 = vand.u32 %v152, 4294901760
    %v455 = vsub.f32 %v152, %v454
    %456 = vmatmul.f32.gmra.mxu0 %v455
    %v457 = vpop.f32.mrf.mxu0
    %v458 = vadd.f32 %v371, %v457
    %v459 = vand.u32 %v155, 4294901760
    %v460 = vsub.f32 %v155, %v459
    %461 = vmatmul.f32.gmra.mxu0 %v460
    %v462 = vpop.f32.mrf.mxu0
    %v463 = vadd.f32 %v375, %v462
    %v464 = vand.u32 %v158, 4294901760
    %v465 = vsub.f32 %v158, %v464
    %466 = vmatmul.f32.gmra.mxu0 %v465
    %v467 = vpop.f32.mrf.mxu0
    %v468 = vadd.f32 %v379, %v467
    %v469 = vand.u32 %v161, 4294901760
    %v470 = vsub.f32 %v161, %v469
    %471 = vmatmul.f32.gmra.mxu0 %v470
    %v472 = vpop.f32.mrf.mxu0
    %v473 = vadd.f32 %v383, %v472
    %v474 = vand.u32 %v164, 4294901760
    %v475 = vsub.f32 %v164, %v474
    %476 = vmatmul.f32.gmra.mxu0 %v475
    %v477 = vpop.f32.mrf.mxu0
    %v478 = vadd.f32 %v387, %v477
    %v479 = vand.u32 %v167, 4294901760
    %v480 = vsub.f32 %v167, %v479
    %481 = vmatmul.f32.gmra.mxu0 %v480
    %v482 = vpop.f32.mrf.mxu0
    %v483 = vadd.f32 %v391, %v482
    %484 = vdwg.mxu0
    %485 = vmatpush.msra.mxu0 0.0
    %486 = vmatpush.msra.mxu0 0.0
    %487 = vmatpush.msra.mxu0 0.0
    %488 = vmatpush.msra.mxu0 0.0
    %489 = vmatpush.msra.mxu0 0.0
    %490 = vmatpush.msra.mxu0 0.0
    %491 = vmatpush.msra.mxu0 0.0
    %492 = vmatpush.msra.mxu0 0.0
    %493 = vmatpush.msra.mxu0 0.0
    %494 = vmatpush.msra.mxu0 0.0
    %495 = vmatpush.msra.mxu0 0.0
    %v496 = vand.u32 %v171, 4294901760
    %497 = vmatpush.msra.mxu0 %v496
    %v498 = vand.u32 %v36, 4294901760
    %499 = vmatpush.msra.mxu0 %v498
    %v500 = vand.u32 %v35, 4294901760
    %501 = vmatpush.msra.mxu0 %v500
    %v502 = vand.u32 %v34, 4294901760
    %503 = vmatpush.msra.mxu0 %v502
    %v504 = vand.u32 %v33, 4294901760
    %505 = vmatpush.msra.mxu0 %v504
    %v506 = vand.u32 %v131, 4294901760
    %v507 = vsub.f32 %v131, %v506
    %v508 = vand.u32 %v507, 4294901760
    %509 = vmatmul.f32.gmra.mxu0 %v508
    %v510 = vpop.f32.mrf.mxu0
    %v511 = vadd.f32 %v423, %v510
    %v512 = vand.u32 %v134, 4294901760
    %v513 = vsub.f32 %v134, %v512
    %v514 = vand.u32 %v513, 4294901760
    %515 = vmatmul.f32.gmra.mxu0 %v514
    %v516 = vpop.f32.mrf.mxu0
    %v517 = vadd.f32 %v428, %v516
    %v518 = vand.u32 %v137, 4294901760
    %v519 = vsub.f32 %v137, %v518
    %v520 = vand.u32 %v519, 4294901760
    %521 = vmatmul.f32.gmra.mxu0 %v520
    %v522 = vpop.f32.mrf.mxu0
    %v523 = vadd.f32 %v433, %v522
    %v524 = vand.u32 %v140, 4294901760
    %v525 = vsub.f32 %v140, %v524
    %v526 = vand.u32 %v525, 4294901760
    %527 = vmatmul.f32.gmra.mxu0 %v526
    %v528 = vpop.f32.mrf.mxu0
    %v529 = vadd.f32 %v438, %v528
    %v530 = vand.u32 %v143, 4294901760
    %v531 = vsub.f32 %v143, %v530
    %v532 = vand.u32 %v531, 4294901760
    %533 = vmatmul.f32.gmra.mxu0 %v532
    %v534 = vpop.f32.mrf.mxu0
    %v535 = vadd.f32 %v443, %v534
    %v536 = vand.u32 %v146, 4294901760
    %v537 = vsub.f32 %v146, %v536
    %v538 = vand.u32 %v537, 4294901760
    %539 = vmatmul.f32.gmra.mxu0 %v538
    %v540 = vpop.f32.mrf.mxu0
    %v541 = vadd.f32 %v448, %v540
    %v542 = vand.u32 %v149, 4294901760
    %v543 = vsub.f32 %v149, %v542
    %v544 = vand.u32 %v543, 4294901760
    %545 = vmatmul.f32.gmra.mxu0 %v544
    %v546 = vpop.f32.mrf.mxu0
    %v547 = vadd.f32 %v453, %v546
    %v548 = vand.u32 %v152, 4294901760
    %v549 = vsub.f32 %v152, %v548
    %v550 = vand.u32 %v549, 4294901760
    %551 = vmatmul.f32.gmra.mxu0 %v550
    %v552 = vpop.f32.mrf.mxu0
    %v553 = vadd.f32 %v458, %v552
    %v554 = vand.u32 %v155, 4294901760
    %v555 = vsub.f32 %v155, %v554
    %v556 = vand.u32 %v555, 4294901760
    %557 = vmatmul.f32.gmra.mxu0 %v556
    %v558 = vpop.f32.mrf.mxu0
    %v559 = vadd.f32 %v463, %v558
    %v560 = vand.u32 %v158, 4294901760
    %v561 = vsub.f32 %v158, %v560
    %v562 = vand.u32 %v561, 4294901760
    %563 = vmatmul.f32.gmra.mxu0 %v562
    %v564 = vpop.f32.mrf.mxu0
    %v565 = vadd.f32 %v468, %v564
    %v566 = vand.u32 %v161, 4294901760
    %v567 = vsub.f32 %v161, %v566
    %v568 = vand.u32 %v567, 4294901760
    %569 = vmatmul.f32.gmra.mxu0 %v568
    %v570 = vpop.f32.mrf.mxu0
    %v571 = vadd.f32 %v473, %v570
    %v572 = vand.u32 %v164, 4294901760
    %v573 = vsub.f32 %v164, %v572
    %v574 = vand.u32 %v573, 4294901760
    %575 = vmatmul.f32.gmra.mxu0 %v574
    %v576 = vpop.f32.mrf.mxu0
    %v577 = vadd.f32 %v478, %v576
    %v578 = vand.u32 %v167, 4294901760
    %v579 = vsub.f32 %v167, %v578
    %v580 = vand.u32 %v579, 4294901760
    %581 = vmatmul.f32.gmra.mxu0 %v580
    %v582 = vpop.f32.mrf.mxu0
    %v583 = vadd.f32 %v483, %v582
    %584 = vdwg.mxu0
    %585 = vmatpush.msra.mxu0 0.0
    %586 = vmatpush.msra.mxu0 0.0
    %587 = vmatpush.msra.mxu0 0.0
    %588 = vmatpush.msra.mxu0 0.0
    %589 = vmatpush.msra.mxu0 0.0
    %590 = vmatpush.msra.mxu0 0.0
    %591 = vmatpush.msra.mxu0 0.0
    %592 = vmatpush.msra.mxu0 0.0
    %593 = vmatpush.msra.mxu0 0.0
    %594 = vmatpush.msra.mxu0 0.0
    %595 = vmatpush.msra.mxu0 0.0
    %v596 = vand.u32 %v171, 4294901760
    %v597 = vsub.f32 %v171, %v596
    %v598 = vand.u32 %v597, 4294901760
    %599 = vmatpush.msra.mxu0 %v598
    %v600 = vand.u32 %v36, 4294901760
    %v601 = vsub.f32 %v36, %v600
    %v602 = vand.u32 %v601, 4294901760
    %603 = vmatpush.msra.mxu0 %v602
    %v604 = vand.u32 %v35, 4294901760
    %v605 = vsub.f32 %v35, %v604
    %v606 = vand.u32 %v605, 4294901760
    %607 = vmatpush.msra.mxu0 %v606
    %v608 = vand.u32 %v34, 4294901760
    %v609 = vsub.f32 %v34, %v608
    %v610 = vand.u32 %v609, 4294901760
    %611 = vmatpush.msra.mxu0 %v610
    %v612 = vand.u32 %v33, 4294901760
    %v613 = vsub.f32 %v33, %v612
    %v614 = vand.u32 %v613, 4294901760
    %615 = vmatpush.msra.mxu0 %v614
    %v616 = vand.u32 %v131, 4294901760
    %617 = vmatmul.f32.gmra.mxu0 %v616
    %v618 = vpop.f32.mrf.mxu0
    %v619 = vadd.f32 %v511, %v618
    %v620 = vand.u32 %v134, 4294901760
    %621 = vmatmul.f32.gmra.mxu0 %v620
    %v622 = vpop.f32.mrf.mxu0
    %v623 = vadd.f32 %v517, %v622
    %v624 = vand.u32 %v137, 4294901760
    %625 = vmatmul.f32.gmra.mxu0 %v624
    %v626 = vpop.f32.mrf.mxu0
    %v627 = vadd.f32 %v523, %v626
    %v628 = vand.u32 %v140, 4294901760
    %629 = vmatmul.f32.gmra.mxu0 %v628
    %v630 = vpop.f32.mrf.mxu0
    %v631 = vadd.f32 %v529, %v630
    %v632 = vand.u32 %v143, 4294901760
    %633 = vmatmul.f32.gmra.mxu0 %v632
    %v634 = vpop.f32.mrf.mxu0
    %v635 = vadd.f32 %v535, %v634
    %v636 = vand.u32 %v146, 4294901760
    %637 = vmatmul.f32.gmra.mxu0 %v636
    %v638 = vpop.f32.mrf.mxu0
    %v639 = vadd.f32 %v541, %v638
    %v640 = vand.u32 %v149, 4294901760
    %641 = vmatmul.f32.gmra.mxu0 %v640
    %v642 = vpop.f32.mrf.mxu0
    %v643 = vadd.f32 %v547, %v642
    %v644 = vand.u32 %v152, 4294901760
    %645 = vmatmul.f32.gmra.mxu0 %v644
    %v646 = vpop.f32.mrf.mxu0
    %v647 = vadd.f32 %v553, %v646
    %v648 = vand.u32 %v155, 4294901760
    %649 = vmatmul.f32.gmra.mxu0 %v648
    %v650 = vpop.f32.mrf.mxu0
    %v651 = vadd.f32 %v559, %v650
    %v652 = vand.u32 %v158, 4294901760
    %653 = vmatmul.f32.gmra.mxu0 %v652
    %v654 = vpop.f32.mrf.mxu0
    %v655 = vadd.f32 %v565, %v654
    %v656 = vand.u32 %v161, 4294901760
    %657 = vmatmul.f32.gmra.mxu0 %v656
    %v658 = vpop.f32.mrf.mxu0
    %v659 = vadd.f32 %v571, %v658
    %v660 = vand.u32 %v164, 4294901760
    %661 = vmatmul.f32.gmra.mxu0 %v660
    %v662 = vpop.f32.mrf.mxu0
    %v663 = vadd.f32 %v577, %v662
    %v664 = vand.u32 %v167, 4294901760
    %665 = vmatmul.f32.gmra.mxu0 %v664
    %v666 = vpop.f32.mrf.mxu0
    %v667 = vadd.f32 %v583, %v666
    %668 = vdwg.mxu0
    %669 = vmatpush.msra.mxu0 0.0
    %670 = vmatpush.msra.mxu0 0.0
    %671 = vmatpush.msra.mxu0 0.0
    %672 = vmatpush.msra.mxu0 0.0
    %673 = vmatpush.msra.mxu0 0.0
    %674 = vmatpush.msra.mxu0 0.0
    %675 = vmatpush.msra.mxu0 0.0
    %676 = vmatpush.msra.mxu0 0.0
    %677 = vmatpush.msra.mxu0 0.0
    %678 = vmatpush.msra.mxu0 0.0
    %679 = vmatpush.msra.mxu0 0.0
    %v680 = vand.u32 %v171, 4294901760
    %681 = vmatpush.msra.mxu0 %v680
    %v682 = vand.u32 %v36, 4294901760
    %683 = vmatpush.msra.mxu0 %v682
    %v684 = vand.u32 %v35, 4294901760
    %685 = vmatpush.msra.mxu0 %v684
    %v686 = vand.u32 %v34, 4294901760
    %687 = vmatpush.msra.mxu0 %v686
    %v688 = vand.u32 %v33, 4294901760
    %689 = vmatpush.msra.mxu0 %v688
    %v690 = vand.u32 %v131, 4294901760
    %691 = vmatmul.f32.gmra.mxu0 %v690
    %v692 = vpop.f32.mrf.mxu0
    %v693 = vadd.f32 %v619, %v692
    %v694 = vand.u32 %v134, 4294901760
    %695 = vmatmul.f32.gmra.mxu0 %v694
    %v696 = vpop.f32.mrf.mxu0
    %v697 = vadd.f32 %v623, %v696
    %v698 = vand.u32 %v137, 4294901760
    %699 = vmatmul.f32.gmra.mxu0 %v698
    %v700 = vpop.f32.mrf.mxu0
    %v701 = vadd.f32 %v627, %v700
    %v702 = vand.u32 %v140, 4294901760
    %703 = vmatmul.f32.gmra.mxu0 %v702
    %v704 = vpop.f32.mrf.mxu0
    %v705 = vadd.f32 %v631, %v704
    %v706 = vand.u32 %v143, 4294901760
    %707 = vmatmul.f32.gmra.mxu0 %v706
    %v708 = vpop.f32.mrf.mxu0
    %v709 = vadd.f32 %v635, %v708
    %v710 = vand.u32 %v146, 4294901760
    %711 = vmatmul.f32.gmra.mxu0 %v710
    %v712 = vpop.f32.mrf.mxu0
    %v713 = vadd.f32 %v639, %v712
    %v714 = vand.u32 %v149, 4294901760
    %715 = vmatmul.f32.gmra.mxu0 %v714
    %v716 = vpop.f32.mrf.mxu0
    %v717 = vadd.f32 %v643, %v716
    %v718 = vand.u32 %v152, 4294901760
    %719 = vmatmul.f32.gmra.mxu0 %v718
    %v720 = vpop.f32.mrf.mxu0
    %v721 = vadd.f32 %v647, %v720
    %v722 = vand.u32 %v155, 4294901760
    %723 = vmatmul.f32.gmra.mxu0 %v722
    %v724 = vpop.f32.mrf.mxu0
    %v725 = vadd.f32 %v651, %v724
    %v726 = vand.u32 %v158, 4294901760
    %727 = vmatmul.f32.gmra.mxu0 %v726
    %v728 = vpop.f32.mrf.mxu0
    %v729 = vadd.f32 %v655, %v728
    %v730 = vand.u32 %v161, 4294901760
    %731 = vmatmul.f32.gmra.mxu0 %v730
    %v732 = vpop.f32.mrf.mxu0
    %v733 = vadd.f32 %v659, %v732
    %v734 = vand.u32 %v164, 4294901760
    %735 = vmatmul.f32.gmra.mxu0 %v734
    %v736 = vpop.f32.mrf.mxu0
    %v737 = vadd.f32 %v663, %v736
    %v738 = vand.u32 %v167, 4294901760
    %739 = vmatmul.f32.gmra.mxu0 %v738
    %v740 = vpop.f32.mrf.mxu0
    %v741 = vadd.f32 %v667, %v740
    %742 = vdwg.mxu0
    %v743 = vmax.f32 %v693, 0.0
    %v744 = vmax.f32 %v697, 0.0
    %v745 = vmax.f32 %v701, 0.0
    %v746 = vmax.f32 %v705, 0.0
    %v747 = vmax.f32 %v709, 0.0
    %v748 = vmax.f32 %v713, 0.0
    %v749 = vmax.f32 %v717, 0.0
    %v750 = vmax.f32 %v721, 0.0
    %v751 = vmax.f32 %v725, 0.0
    %v752 = vmax.f32 %v729, 0.0
    %v753 = vmax.f32 %v733, 0.0
    %v754 = vmax.f32 %v737, 0.0
    %v755 = vmax.f32 %v741, 0.0
    %v756 = vld [vmem:[%s3] sm:$0xff]
    %v757 = vld [vmem:[%s3 + $0x8] sm:$0xff]
    %v758 = vld [vmem:[%s3 + $0x10] sm:$0xff]
    %v759 = vld [vmem:[%s3 + $0x18] sm:$0xff]
    %v760 = vld [vmem:[%s3 + $0x20] sm:$0xff]
    %v761 = vld [vmem:[%s3 + $0x28] sm:$0xff]
    %v762 = vld [vmem:[%s4] sm:$0xff]
    %v763 = vld [vmem:[%s4 + $0x8] sm:$0xff]
    %v764 = vld [vmem:[%s4 + $0x10] sm:$0xff]
    %v765 = vld [vmem:[%s4 + $0x18] sm:$0xff]
    %v766 = vld [vmem:[%s4 + $0x20] sm:$0xff]
    %v767 = vld [vmem:[%s4 + $0x28] sm:$0xff]
    %769 = vset.pattern.permute.xlu0 0
    %770 = vperm.xlu0 %769, %v762
    %v771 = vpop.permute.xlu0 %770
    %774 = vset.pattern.permute.xlu0 0
    %775 = vperm.xlu0 %774, %v763
    %v776 = vpop.permute.xlu0 %775
    %779 = vset.pattern.permute.xlu0 0
    %780 = vperm.xlu0 %779, %v764
    %v781 = vpop.permute.xlu0 %780
    %784 = vset.pattern.permute.xlu0 0
    %785 = vperm.xlu0 %784, %v765
    %v786 = vpop.permute.xlu0 %785
    %789 = vset.pattern.permute.xlu0 0
    %790 = vperm.xlu0 %789, %v766
    %v791 = vpop.permute.xlu0 %790
    %794 = vset.pattern.permute.xlu0 0
    %795 = vperm.xlu0 %794, %v767
    %v796 = vpop.permute.xlu0 %795
    %vm798 = vcmask 850944
    %v800 = vsel %vm798, %v756, 0
    %v803 = vsel %vm798, %v757, 0
    %v806 = vsel %vm798, %v758, 0
    %v809 = vsel %vm798, %v759, 0
    %v812 = vsel %vm798, %v760, 0
    %v815 = vsel %vm798, %v761, 0
    %817 = vmatpush.msra.mxu0 0.0
    %818 = vmatpush.msra.mxu0 0.0
    %819 = vmatpush.msra.mxu0 0.0
    %v820 = vand.u32 %v755, 4294901760
    %821 = vmatpush.msra.mxu0 %v820
    %v822 = vand.u32 %v754, 4294901760
    %823 = vmatpush.msra.mxu0 %v822
    %v824 = vand.u32 %v753, 4294901760
    %825 = vmatpush.msra.mxu0 %v824
    %v826 = vand.u32 %v752, 4294901760
    %827 = vmatpush.msra.mxu0 %v826
    %v828 = vand.u32 %v751, 4294901760
    %829 = vmatpush.msra.mxu0 %v828
    %v830 = vand.u32 %v750, 4294901760
    %831 = vmatpush.msra.mxu0 %v830
    %v832 = vand.u32 %v749, 4294901760
    %833 = vmatpush.msra.mxu0 %v832
    %v834 = vand.u32 %v748, 4294901760
    %835 = vmatpush.msra.mxu0 %v834
    %v836 = vand.u32 %v747, 4294901760
    %837 = vmatpush.msra.mxu0 %v836
    %v838 = vand.u32 %v746, 4294901760
    %839 = vmatpush.msra.mxu0 %v838
    %v840 = vand.u32 %v745, 4294901760
    %841 = vmatpush.msra.mxu0 %v840
    %v842 = vand.u32 %v744, 4294901760
    %843 = vmatpush.msra.mxu0 %v842
    %v844 = vand.u32 %v743, 4294901760
    %845 = vmatpush.msra.mxu0 %v844
    %v846 = vand.u32 %v800, 4294901760
    %v847 = vsub.f32 %v800, %v846
    %v848 = vand.u32 %v847, 4294901760
    %v849 = vsub.f32 %v847, %v848
    %v850 = vand.u32 %v849, 4294901760
    %851 = vmatmul.f32.gmra.mxu0 %v850
    %v852 = vpop.f32.mrf.mxu0
    %v853 = vadd.f32 %v771, %v852
    %v854 = vand.u32 %v803, 4294901760
    %v855 = vsub.f32 %v803, %v854
    %v856 = vand.u32 %v855, 4294901760
    %v857 = vsub.f32 %v855, %v856
    %v858 = vand.u32 %v857, 4294901760
    %859 = vmatmul.f32.gmra.mxu0 %v858
    %v860 = vpop.f32.mrf.mxu0
    %v861 = vadd.f32 %v776, %v860
    %v862 = vand.u32 %v806, 4294901760
    %v863 = vsub.f32 %v806, %v862
    %v864 = vand.u32 %v863, 4294901760
    %v865 = vsub.f32 %v863, %v864
    %v866 = vand.u32 %v865, 4294901760
    %867 = vmatmul.f32.gmra.mxu0 %v866
    %v868 = vpop.f32.mrf.mxu0
    %v869 = vadd.f32 %v781, %v868
    %v870 = vand.u32 %v809, 4294901760
    %v871 = vsub.f32 %v809, %v870
    %v872 = vand.u32 %v871, 4294901760
    %v873 = vsub.f32 %v871, %v872
    %v874 = vand.u32 %v873, 4294901760
    %875 = vmatmul.f32.gmra.mxu0 %v874
    %v876 = vpop.f32.mrf.mxu0
    %v877 = vadd.f32 %v786, %v876
    %v878 = vand.u32 %v812, 4294901760
    %v879 = vsub.f32 %v812, %v878
    %v880 = vand.u32 %v879, 4294901760
    %v881 = vsub.f32 %v879, %v880
    %v882 = vand.u32 %v881, 4294901760
    %883 = vmatmul.f32.gmra.mxu0 %v882
    %v884 = vpop.f32.mrf.mxu0
    %v885 = vadd.f32 %v791, %v884
    %v886 = vand.u32 %v815, 4294901760
    %v887 = vsub.f32 %v815, %v886
    %v888 = vand.u32 %v887, 4294901760
    %v889 = vsub.f32 %v887, %v888
    %v890 = vand.u32 %v889, 4294901760
    %891 = vmatmul.f32.gmra.mxu0 %v890
    %v892 = vpop.f32.mrf.mxu0
    %v893 = vadd.f32 %v796, %v892
    %894 = vdwg.mxu0
    %895 = vmatpush.msra.mxu0 0.0
    %896 = vmatpush.msra.mxu0 0.0
    %897 = vmatpush.msra.mxu0 0.0
    %v898 = vand.u32 %v755, 4294901760
    %v899 = vsub.f32 %v755, %v898
    %v900 = vand.u32 %v899, 4294901760
    %v901 = vsub.f32 %v899, %v900
    %v902 = vand.u32 %v901, 4294901760
    %903 = vmatpush.msra.mxu0 %v902
    %v904 = vand.u32 %v754, 4294901760
    %v905 = vsub.f32 %v754, %v904
    %v906 = vand.u32 %v905, 4294901760
    %v907 = vsub.f32 %v905, %v906
    %v908 = vand.u32 %v907, 4294901760
    %909 = vmatpush.msra.mxu0 %v908
    %v910 = vand.u32 %v753, 4294901760
    %v911 = vsub.f32 %v753, %v910
    %v912 = vand.u32 %v911, 4294901760
    %v913 = vsub.f32 %v911, %v912
    %v914 = vand.u32 %v913, 4294901760
    %915 = vmatpush.msra.mxu0 %v914
    %v916 = vand.u32 %v752, 4294901760
    %v917 = vsub.f32 %v752, %v916
    %v918 = vand.u32 %v917, 4294901760
    %v919 = vsub.f32 %v917, %v918
    %v920 = vand.u32 %v919, 4294901760
    %921 = vmatpush.msra.mxu0 %v920
    %v922 = vand.u32 %v751, 4294901760
    %v923 = vsub.f32 %v751, %v922
    %v924 = vand.u32 %v923, 4294901760
    %v925 = vsub.f32 %v923, %v924
    %v926 = vand.u32 %v925, 4294901760
    %927 = vmatpush.msra.mxu0 %v926
    %v928 = vand.u32 %v750, 4294901760
    %v929 = vsub.f32 %v750, %v928
    %v930 = vand.u32 %v929, 4294901760
    %v931 = vsub.f32 %v929, %v930
    %v932 = vand.u32 %v931, 4294901760
    %933 = vmatpush.msra.mxu0 %v932
    %v934 = vand.u32 %v749, 4294901760
    %v935 = vsub.f32 %v749, %v934
    %v936 = vand.u32 %v935, 4294901760
    %v937 = vsub.f32 %v935, %v936
    %v938 = vand.u32 %v937, 4294901760
    %939 = vmatpush.msra.mxu0 %v938
    %v940 = vand.u32 %v748, 4294901760
    %v941 = vsub.f32 %v748, %v940
    %v942 = vand.u32 %v941, 4294901760
    %v943 = vsub.f32 %v941, %v942
    %v944 = vand.u32 %v943, 4294901760
    %945 = vmatpush.msra.mxu0 %v944
    %v946 = vand.u32 %v747, 4294901760
    %v947 = vsub.f32 %v747, %v946
    %v948 = vand.u32 %v947, 4294901760
    %v949 = vsub.f32 %v947, %v948
    %v950 = vand.u32 %v949, 4294901760
    %951 = vmatpush.msra.mxu0 %v950
    %v952 = vand.u32 %v746, 4294901760
    %v953 = vsub.f32 %v746, %v952
    %v954 = vand.u32 %v953, 4294901760
    %v955 = vsub.f32 %v953, %v954
    %v956 = vand.u32 %v955, 4294901760
    %957 = vmatpush.msra.mxu0 %v956
    %v958 = vand.u32 %v745, 4294901760
    %v959 = vsub.f32 %v745, %v958
    %v960 = vand.u32 %v959, 4294901760
    %v961 = vsub.f32 %v959, %v960
    %v962 = vand.u32 %v961, 4294901760
    %963 = vmatpush.msra.mxu0 %v962
    %v964 = vand.u32 %v744, 4294901760
    %v965 = vsub.f32 %v744, %v964
    %v966 = vand.u32 %v965, 4294901760
    %v967 = vsub.f32 %v965, %v966
    %v968 = vand.u32 %v967, 4294901760
    %969 = vmatpush.msra.mxu0 %v968
    %v970 = vand.u32 %v743, 4294901760
    %v971 = vsub.f32 %v743, %v970
    %v972 = vand.u32 %v971, 4294901760
    %v973 = vsub.f32 %v971, %v972
    %v974 = vand.u32 %v973, 4294901760
    %975 = vmatpush.msra.mxu0 %v974
    %v976 = vand.u32 %v800, 4294901760
    %977 = vmatmul.f32.gmra.mxu0 %v976
    %v978 = vpop.f32.mrf.mxu0
    %v979 = vadd.f32 %v853, %v978
    %v980 = vand.u32 %v803, 4294901760
    %981 = vmatmul.f32.gmra.mxu0 %v980
    %v982 = vpop.f32.mrf.mxu0
    %v983 = vadd.f32 %v861, %v982
    %v984 = vand.u32 %v806, 4294901760
    %985 = vmatmul.f32.gmra.mxu0 %v984
    %v986 = vpop.f32.mrf.mxu0
    %v987 = vadd.f32 %v869, %v986
    %v988 = vand.u32 %v809, 4294901760
    %989 = vmatmul.f32.gmra.mxu0 %v988
    %v990 = vpop.f32.mrf.mxu0
    %v991 = vadd.f32 %v877, %v990
    %v992 = vand.u32 %v812, 4294901760
    %993 = vmatmul.f32.gmra.mxu0 %v992
    %v994 = vpop.f32.mrf.mxu0
    %v995 = vadd.f32 %v885, %v994
    %v996 = vand.u32 %v815, 4294901760
    %997 = vmatmul.f32.gmra.mxu0 %v996
    %v998 = vpop.f32.mrf.mxu0
    %v999 = vadd.f32 %v893, %v998
    %1000 = vdwg.mxu0
    %1001 = vmatpush.msra.mxu0 0.0
    %1002 = vmatpush.msra.mxu0 0.0
    %1003 = vmatpush.msra.mxu0 0.0
    %v1004 = vand.u32 %v755, 4294901760
    %v1005 = vsub.f32 %v755, %v1004
    %1006 = vmatpush.msra.mxu0 %v1005
    %v1007 = vand.u32 %v754, 4294901760
    %v1008 = vsub.f32 %v754, %v1007
    %1009 = vmatpush.msra.mxu0 %v1008
    %v1010 = vand.u32 %v753, 4294901760
    %v1011 = vsub.f32 %v753, %v1010
    %1012 = vmatpush.msra.mxu0 %v1011
    %v1013 = vand.u32 %v752, 4294901760
    %v1014 = vsub.f32 %v752, %v1013
    %1015 = vmatpush.msra.mxu0 %v1014
    %v1016 = vand.u32 %v751, 4294901760
    %v1017 = vsub.f32 %v751, %v1016
    %1018 = vmatpush.msra.mxu0 %v1017
    %v1019 = vand.u32 %v750, 4294901760
    %v1020 = vsub.f32 %v750, %v1019
    %1021 = vmatpush.msra.mxu0 %v1020
    %v1022 = vand.u32 %v749, 4294901760
    %v1023 = vsub.f32 %v749, %v1022
    %1024 = vmatpush.msra.mxu0 %v1023
    %v1025 = vand.u32 %v748, 4294901760
    %v1026 = vsub.f32 %v748, %v1025
    %1027 = vmatpush.msra.mxu0 %v1026
    %v1028 = vand.u32 %v747, 4294901760
    %v1029 = vsub.f32 %v747, %v1028
    %1030 = vmatpush.msra.mxu0 %v1029
    %v1031 = vand.u32 %v746, 4294901760
    %v1032 = vsub.f32 %v746, %v1031
    %1033 = vmatpush.msra.mxu0 %v1032
    %v1034 = vand.u32 %v745, 4294901760
    %v1035 = vsub.f32 %v745, %v1034
    %1036 = vmatpush.msra.mxu0 %v1035
    %v1037 = vand.u32 %v744, 4294901760
    %v1038 = vsub.f32 %v744, %v1037
    %1039 = vmatpush.msra.mxu0 %v1038
    %v1040 = vand.u32 %v743, 4294901760
    %v1041 = vsub.f32 %v743, %v1040
    %1042 = vmatpush.msra.mxu0 %v1041
    %v1043 = vand.u32 %v800, 4294901760
    %v1044 = vsub.f32 %v800, %v1043
    %1045 = vmatmul.f32.gmra.mxu0 %v1044
    %v1046 = vpop.f32.mrf.mxu0
    %v1047 = vadd.f32 %v979, %v1046
    %v1048 = vand.u32 %v803, 4294901760
    %v1049 = vsub.f32 %v803, %v1048
    %1050 = vmatmul.f32.gmra.mxu0 %v1049
    %v1051 = vpop.f32.mrf.mxu0
    %v1052 = vadd.f32 %v983, %v1051
    %v1053 = vand.u32 %v806, 4294901760
    %v1054 = vsub.f32 %v806, %v1053
    %1055 = vmatmul.f32.gmra.mxu0 %v1054
    %v1056 = vpop.f32.mrf.mxu0
    %v1057 = vadd.f32 %v987, %v1056
    %v1058 = vand.u32 %v809, 4294901760
    %v1059 = vsub.f32 %v809, %v1058
    %1060 = vmatmul.f32.gmra.mxu0 %v1059
    %v1061 = vpop.f32.mrf.mxu0
    %v1062 = vadd.f32 %v991, %v1061
    %v1063 = vand.u32 %v812, 4294901760
    %v1064 = vsub.f32 %v812, %v1063
    %1065 = vmatmul.f32.gmra.mxu0 %v1064
    %v1066 = vpop.f32.mrf.mxu0
    %v1067 = vadd.f32 %v995, %v1066
    %v1068 = vand.u32 %v815, 4294901760
    %v1069 = vsub.f32 %v815, %v1068
    %1070 = vmatmul.f32.gmra.mxu0 %v1069
    %v1071 = vpop.f32.mrf.mxu0
    %v1072 = vadd.f32 %v999, %v1071
    %1073 = vdwg.mxu0
    %1074 = vmatpush.msra.mxu0 0.0
    %1075 = vmatpush.msra.mxu0 0.0
    %1076 = vmatpush.msra.mxu0 0.0
    %v1077 = vand.u32 %v755, 4294901760
    %1078 = vmatpush.msra.mxu0 %v1077
    %v1079 = vand.u32 %v754, 4294901760
    %1080 = vmatpush.msra.mxu0 %v1079
    %v1081 = vand.u32 %v753, 4294901760
    %1082 = vmatpush.msra.mxu0 %v1081
    %v1083 = vand.u32 %v752, 4294901760
    %1084 = vmatpush.msra.mxu0 %v1083
    %v1085 = vand.u32 %v751, 4294901760
    %1086 = vmatpush.msra.mxu0 %v1085
    %v1087 = vand.u32 %v750, 4294901760
    %1088 = vmatpush.msra.mxu0 %v1087
    %v1089 = vand.u32 %v749, 4294901760
    %1090 = vmatpush.msra.mxu0 %v1089
    %v1091 = vand.u32 %v748, 4294901760
    %1092 = vmatpush.msra.mxu0 %v1091
    %v1093 = vand.u32 %v747, 4294901760
    %1094 = vmatpush.msra.mxu0 %v1093
    %v1095 = vand.u32 %v746, 4294901760
    %1096 = vmatpush.msra.mxu0 %v1095
    %v1097 = vand.u32 %v745, 4294901760
    %1098 = vmatpush.msra.mxu0 %v1097
    %v1099 = vand.u32 %v744, 4294901760
    %1100 = vmatpush.msra.mxu0 %v1099
    %v1101 = vand.u32 %v743, 4294901760
    %1102 = vmatpush.msra.mxu0 %v1101
    %v1103 = vand.u32 %v800, 4294901760
    %v1104 = vsub.f32 %v800, %v1103
    %v1105 = vand.u32 %v1104, 4294901760
    %1106 = vmatmul.f32.gmra.mxu0 %v1105
    %v1107 = vpop.f32.mrf.mxu0
    %v1108 = vadd.f32 %v1047, %v1107
    %v1109 = vand.u32 %v803, 4294901760
    %v1110 = vsub.f32 %v803, %v1109
    %v1111 = vand.u32 %v1110, 4294901760
    %1112 = vmatmul.f32.gmra.mxu0 %v1111
    %v1113 = vpop.f32.mrf.mxu0
    %v1114 = vadd.f32 %v1052, %v1113
    %v1115 = vand.u32 %v806, 4294901760
    %v1116 = vsub.f32 %v806, %v1115
    %v1117 = vand.u32 %v1116, 4294901760
    %1118 = vmatmul.f32.gmra.mxu0 %v1117
    %v1119 = vpop.f32.mrf.mxu0
    %v1120 = vadd.f32 %v1057, %v1119
    %v1121 = vand.u32 %v809, 4294901760
    %v1122 = vsub.f32 %v809, %v1121
    %v1123 = vand.u32 %v1122, 4294901760
    %1124 = vmatmul.f32.gmra.mxu0 %v1123
    %v1125 = vpop.f32.mrf.mxu0
    %v1126 = vadd.f32 %v1062, %v1125
    %v1127 = vand.u32 %v812, 4294901760
    %v1128 = vsub.f32 %v812, %v1127
    %v1129 = vand.u32 %v1128, 4294901760
    %1130 = vmatmul.f32.gmra.mxu0 %v1129
    %v1131 = vpop.f32.mrf.mxu0
    %v1132 = vadd.f32 %v1067, %v1131
    %v1133 = vand.u32 %v815, 4294901760
    %v1134 = vsub.f32 %v815, %v1133
    %v1135 = vand.u32 %v1134, 4294901760
    %1136 = vmatmul.f32.gmra.mxu0 %v1135
    %v1137 = vpop.f32.mrf.mxu0
    %v1138 = vadd.f32 %v1072, %v1137
    %1139 = vdwg.mxu0
    %1140 = vmatpush.msra.mxu0 0.0
    %1141 = vmatpush.msra.mxu0 0.0
    %1142 = vmatpush.msra.mxu0 0.0
    %v1143 = vand.u32 %v755, 4294901760
    %v1144 = vsub.f32 %v755, %v1143
    %v1145 = vand.u32 %v1144, 4294901760
    %1146 = vmatpush.msra.mxu0 %v1145
    %v1147 = vand.u32 %v754, 4294901760
    %v1148 = vsub.f32 %v754, %v1147
    %v1149 = vand.u32 %v1148, 4294901760
    %1150 = vmatpush.msra.mxu0 %v1149
    %v1151 = vand.u32 %v753, 4294901760
    %v1152 = vsub.f32 %v753, %v1151
    %v1153 = vand.u32 %v1152, 4294901760
    %1154 = vmatpush.msra.mxu0 %v1153
    %v1155 = vand.u32 %v752, 4294901760
    %v1156 = vsub.f32 %v752, %v1155
    %v1157 = vand.u32 %v1156, 4294901760
    %1158 = vmatpush.msra.mxu0 %v1157
    %v1159 = vand.u32 %v751, 4294901760
    %v1160 = vsub.f32 %v751, %v1159
    %v1161 = vand.u32 %v1160, 4294901760
    %1162 = vmatpush.msra.mxu0 %v1161
    %v1163 = vand.u32 %v750, 4294901760
    %v1164 = vsub.f32 %v750, %v1163
    %v1165 = vand.u32 %v1164, 4294901760
    %1166 = vmatpush.msra.mxu0 %v1165
    %v1167 = vand.u32 %v749, 4294901760
    %v1168 = vsub.f32 %v749, %v1167
    %v1169 = vand.u32 %v1168, 4294901760
    %1170 = vmatpush.msra.mxu0 %v1169
    %v1171 = vand.u32 %v748, 4294901760
    %v1172 = vsub.f32 %v748, %v1171
    %v1173 = vand.u32 %v1172, 4294901760
    %1174 = vmatpush.msra.mxu0 %v1173
    %v1175 = vand.u32 %v747, 4294901760
    %v1176 = vsub.f32 %v747, %v1175
    %v1177 = vand.u32 %v1176, 4294901760
    %1178 = vmatpush.msra.mxu0 %v1177
    %v1179 = vand.u32 %v746, 4294901760
    %v1180 = vsub.f32 %v746, %v1179
    %v1181 = vand.u32 %v1180, 4294901760
    %1182 = vmatpush.msra.mxu0 %v1181
    %v1183 = vand.u32 %v745, 4294901760
    %v1184 = vsub.f32 %v745, %v1183
    %v1185 = vand.u32 %v1184, 4294901760
    %1186 = vmatpush.msra.mxu0 %v1185
    %v1187 = vand.u32 %v744, 4294901760
    %v1188 = vsub.f32 %v744, %v1187
    %v1189 = vand.u32 %v1188, 4294901760
    %1190 = vmatpush.msra.mxu0 %v1189
    %v1191 = vand.u32 %v743, 4294901760
    %v1192 = vsub.f32 %v743, %v1191
    %v1193 = vand.u32 %v1192, 4294901760
    %1194 = vmatpush.msra.mxu0 %v1193
    %v1195 = vand.u32 %v800, 4294901760
    %1196 = vmatmul.f32.gmra.mxu0 %v1195
    %v1197 = vpop.f32.mrf.mxu0
    %v1198 = vadd.f32 %v1108, %v1197
    %v1199 = vand.u32 %v803, 4294901760
    %1200 = vmatmul.f32.gmra.mxu0 %v1199
    %v1201 = vpop.f32.mrf.mxu0
    %v1202 = vadd.f32 %v1114, %v1201
    %v1203 = vand.u32 %v806, 4294901760
    %1204 = vmatmul.f32.gmra.mxu0 %v1203
    %v1205 = vpop.f32.mrf.mxu0
    %v1206 = vadd.f32 %v1120, %v1205
    %v1207 = vand.u32 %v809, 4294901760
    %1208 = vmatmul.f32.gmra.mxu0 %v1207
    %v1209 = vpop.f32.mrf.mxu0
    %v1210 = vadd.f32 %v1126, %v1209
    %v1211 = vand.u32 %v812, 4294901760
    %1212 = vmatmul.f32.gmra.mxu0 %v1211
    %v1213 = vpop.f32.mrf.mxu0
    %v1214 = vadd.f32 %v1132, %v1213
    %v1215 = vand.u32 %v815, 4294901760
    %1216 = vmatmul.f32.gmra.mxu0 %v1215
    %v1217 = vpop.f32.mrf.mxu0
    %v1218 = vadd.f32 %v1138, %v1217
    %1219 = vdwg.mxu0
    %1220 = vmatpush.msra.mxu0 0.0
    %1221 = vmatpush.msra.mxu0 0.0
    %1222 = vmatpush.msra.mxu0 0.0
    %v1223 = vand.u32 %v755, 4294901760
    %1224 = vmatpush.msra.mxu0 %v1223
    %v1225 = vand.u32 %v754, 4294901760
    %1226 = vmatpush.msra.mxu0 %v1225
    %v1227 = vand.u32 %v753, 4294901760
    %1228 = vmatpush.msra.mxu0 %v1227
    %v1229 = vand.u32 %v752, 4294901760
    %1230 = vmatpush.msra.mxu0 %v1229
    %v1231 = vand.u32 %v751, 4294901760
    %1232 = vmatpush.msra.mxu0 %v1231
    %v1233 = vand.u32 %v750, 4294901760
    %1234 = vmatpush.msra.mxu0 %v1233
    %v1235 = vand.u32 %v749, 4294901760
    %1236 = vmatpush.msra.mxu0 %v1235
    %v1237 = vand.u32 %v748, 4294901760
    %1238 = vmatpush.msra.mxu0 %v1237
    %v1239 = vand.u32 %v747, 4294901760
    %1240 = vmatpush.msra.mxu0 %v1239
    %v1241 = vand.u32 %v746, 4294901760
    %1242 = vmatpush.msra.mxu0 %v1241
    %v1243 = vand.u32 %v745, 4294901760
    %1244 = vmatpush.msra.mxu0 %v1243
    %v1245 = vand.u32 %v744, 4294901760
    %1246 = vmatpush.msra.mxu0 %v1245
    %v1247 = vand.u32 %v743, 4294901760
    %1248 = vmatpush.msra.mxu0 %v1247
    %v1249 = vand.u32 %v800, 4294901760
    %1250 = vmatmul.f32.gmra.mxu0 %v1249
    %v1251 = vpop.f32.mrf.mxu0
    %v1252 = vadd.f32 %v1198, %v1251
    %v1253 = vand.u32 %v803, 4294901760
    %1254 = vmatmul.f32.gmra.mxu0 %v1253
    %v1255 = vpop.f32.mrf.mxu0
    %v1256 = vadd.f32 %v1202, %v1255
    %v1257 = vand.u32 %v806, 4294901760
    %1258 = vmatmul.f32.gmra.mxu0 %v1257
    %v1259 = vpop.f32.mrf.mxu0
    %v1260 = vadd.f32 %v1206, %v1259
    %v1261 = vand.u32 %v809, 4294901760
    %1262 = vmatmul.f32.gmra.mxu0 %v1261
    %v1263 = vpop.f32.mrf.mxu0
    %v1264 = vadd.f32 %v1210, %v1263
    %v1265 = vand.u32 %v812, 4294901760
    %1266 = vmatmul.f32.gmra.mxu0 %v1265
    %v1267 = vpop.f32.mrf.mxu0
    %v1268 = vadd.f32 %v1214, %v1267
    %v1269 = vand.u32 %v815, 4294901760
    %1270 = vmatmul.f32.gmra.mxu0 %v1269
    %v1271 = vpop.f32.mrf.mxu0
    %v1272 = vadd.f32 %v1218, %v1271
    %1273 = vdwg.mxu0
    %v1274 = vld [vmem:[%s5] sm:$0xff]
    %v1275 = vld [vmem:[%s5 + $0x8] sm:$0xff]
    %v1276 = vld [vmem:[%s5 + $0x10] sm:$0xff]
    %v1277 = vld [vmem:[%s5 + $0x18] sm:$0xff]
    %v1278 = vld [vmem:[%s5 + $0x20] sm:$0xff]
    %v1279 = vld [vmem:[%s5 + $0x28] sm:$0xff]
    %v1280 = vld [vmem:[%s5 + $0x30] sm:$0xff]
    %v1281 = vld [vmem:[%s5 + $0x38] sm:$0xff]
    %v1282 = vld [vmem:[%s5 + $0x40] sm:$0xff]
    %v1283 = vld [vmem:[%s5 + $0x48] sm:$0xff]
    %v1284 = vld [vmem:[%s5 + $0x50] sm:$0xff]
    %v1285 = vld [vmem:[%s5 + $0x58] sm:$0xff]
    %v1286 = vld [vmem:[%s5 + $0x60] sm:$0xff]
    %v1287 = vld [vmem:[%s5 + $0x68] sm:$0xff]
    %v1288 = vld [vmem:[%s5 + $0x70] sm:$0xff]
    %v1289 = vld [vmem:[%s5 + $0x78] sm:$0xff]
    %v1290 = vld [vmem:[%s6] sm:$0xff]
    %v1291 = vld [vmem:[%s6 + $0x8] sm:$0xff]
    %v1292 = vld [vmem:[%s6 + $0x10] sm:$0xff]
    %v1293 = vld [vmem:[%s6 + $0x18] sm:$0xff]
    %v1294 = vld [vmem:[%s6 + $0x20] sm:$0xff]
    %v1295 = vld [vmem:[%s6 + $0x28] sm:$0xff]
    %v1296 = vld [vmem:[%s6 + $0x30] sm:$0xff]
    %v1297 = vld [vmem:[%s6 + $0x38] sm:$0xff]
    %v1298 = vld [vmem:[%s6 + $0x40] sm:$0xff]
    %v1299 = vld [vmem:[%s6 + $0x48] sm:$0xff]
    %v1300 = vld [vmem:[%s6 + $0x50] sm:$0xff]
    %v1301 = vld [vmem:[%s6 + $0x58] sm:$0xff]
    %v1302 = vld [vmem:[%s6 + $0x60] sm:$0xff]
    %v1303 = vld [vmem:[%s6 + $0x68] sm:$0xff]
    %v1304 = vld [vmem:[%s6 + $0x70] sm:$0xff]
    %v1305 = vld [vmem:[%s6 + $0x78] sm:$0xff]
    %1307 = vset.pattern.permute.xlu0 0
    %1308 = vperm.xlu0 %1307, %v1290
    %v1309 = vpop.permute.xlu0 %1308
    %1312 = vset.pattern.permute.xlu0 0
    %1313 = vperm.xlu0 %1312, %v1291
    %v1314 = vpop.permute.xlu0 %1313
    %1317 = vset.pattern.permute.xlu0 0
    %1318 = vperm.xlu0 %1317, %v1292
    %v1319 = vpop.permute.xlu0 %1318
    %1322 = vset.pattern.permute.xlu0 0
    %1323 = vperm.xlu0 %1322, %v1293
    %v1324 = vpop.permute.xlu0 %1323
    %1327 = vset.pattern.permute.xlu0 0
    %1328 = vperm.xlu0 %1327, %v1294
    %v1329 = vpop.permute.xlu0 %1328
    %1332 = vset.pattern.permute.xlu0 0
    %1333 = vperm.xlu0 %1332, %v1295
    %v1334 = vpop.permute.xlu0 %1333
    %1337 = vset.pattern.permute.xlu0 0
    %1338 = vperm.xlu0 %1337, %v1296
    %v1339 = vpop.permute.xlu0 %1338
    %1342 = vset.pattern.permute.xlu0 0
    %1343 = vperm.xlu0 %1342, %v1297
    %v1344 = vpop.permute.xlu0 %1343
    %1347 = vset.pattern.permute.xlu0 0
    %1348 = vperm.xlu0 %1347, %v1298
    %v1349 = vpop.permute.xlu0 %1348
    %1352 = vset.pattern.permute.xlu0 0
    %1353 = vperm.xlu0 %1352, %v1299
    %v1354 = vpop.permute.xlu0 %1353
    %1357 = vset.pattern.permute.xlu0 0
    %1358 = vperm.xlu0 %1357, %v1300
    %v1359 = vpop.permute.xlu0 %1358
    %1362 = vset.pattern.permute.xlu0 0
    %1363 = vperm.xlu0 %1362, %v1301
    %v1364 = vpop.permute.xlu0 %1363
    %1367 = vset.pattern.permute.xlu0 0
    %1368 = vperm.xlu0 %1367, %v1302
    %v1369 = vpop.permute.xlu0 %1368
    %1372 = vset.pattern.permute.xlu0 0
    %1373 = vperm.xlu0 %1372, %v1303
    %v1374 = vpop.permute.xlu0 %1373
    %1377 = vset.pattern.permute.xlu0 0
    %1378 = vperm.xlu0 %1377, %v1304
    %v1379 = vpop.permute.xlu0 %1378
    %1382 = vset.pattern.permute.xlu0 0
    %1383 = vperm.xlu0 %1382, %v1305
    %v1384 = vpop.permute.xlu0 %1383
    %v1387 = vsel %vm129, %v1274, 0
    %v1390 = vsel %vm129, %v1275, 0
    %v1393 = vsel %vm129, %v1276, 0
    %v1396 = vsel %vm129, %v1277, 0
    %v1399 = vsel %vm129, %v1278, 0
    %v1402 = vsel %vm129, %v1279, 0
    %v1405 = vsel %vm129, %v1280, 0
    %v1408 = vsel %vm129, %v1281, 0
    %v1411 = vsel %vm129, %v1282, 0
    %v1414 = vsel %vm129, %v1283, 0
    %v1417 = vsel %vm129, %v1284, 0
    %v1420 = vsel %vm129, %v1285, 0
    %v1423 = vsel %vm129, %v1286, 0
    %v1426 = vsel %vm129, %v1287, 0
    %v1429 = vsel %vm129, %v1288, 0
    %v1432 = vsel %vm129, %v1289, 0
    %1434 = vmatpush.msra.mxu0 0.0
    %1435 = vmatpush.msra.mxu0 0.0
    %1436 = vmatpush.msra.mxu0 0.0
    %1437 = vmatpush.msra.mxu0 0.0
    %1438 = vmatpush.msra.mxu0 0.0
    %1439 = vmatpush.msra.mxu0 0.0
    %1440 = vmatpush.msra.mxu0 0.0
    %1441 = vmatpush.msra.mxu0 0.0
    %1442 = vmatpush.msra.mxu0 0.0
    %1443 = vmatpush.msra.mxu0 0.0
    %1444 = vmatpush.msra.mxu0 0.0
    %v1445 = vand.u32 %v171, 4294901760
    %1446 = vmatpush.msra.mxu0 %v1445
    %v1447 = vand.u32 %v36, 4294901760
    %1448 = vmatpush.msra.mxu0 %v1447
    %v1449 = vand.u32 %v35, 4294901760
    %1450 = vmatpush.msra.mxu0 %v1449
    %v1451 = vand.u32 %v34, 4294901760
    %1452 = vmatpush.msra.mxu0 %v1451
    %v1453 = vand.u32 %v33, 4294901760
    %1454 = vmatpush.msra.mxu0 %v1453
    %v1455 = vand.u32 %v1387, 4294901760
    %v1456 = vsub.f32 %v1387, %v1455
    %v1457 = vand.u32 %v1456, 4294901760
    %v1458 = vsub.f32 %v1456, %v1457
    %v1459 = vand.u32 %v1458, 4294901760
    %1460 = vmatmul.f32.gmra.mxu0 %v1459
    %v1461 = vpop.f32.mrf.mxu0
    %v1462 = vadd.f32 %v1309, %v1461
    %v1463 = vand.u32 %v1390, 4294901760
    %v1464 = vsub.f32 %v1390, %v1463
    %v1465 = vand.u32 %v1464, 4294901760
    %v1466 = vsub.f32 %v1464, %v1465
    %v1467 = vand.u32 %v1466, 4294901760
    %1468 = vmatmul.f32.gmra.mxu0 %v1467
    %v1469 = vpop.f32.mrf.mxu0
    %v1470 = vadd.f32 %v1314, %v1469
    %v1471 = vand.u32 %v1393, 4294901760
    %v1472 = vsub.f32 %v1393, %v1471
    %v1473 = vand.u32 %v1472, 4294901760
    %v1474 = vsub.f32 %v1472, %v1473
    %v1475 = vand.u32 %v1474, 4294901760
    %1476 = vmatmul.f32.gmra.mxu0 %v1475
    %v1477 = vpop.f32.mrf.mxu0
    %v1478 = vadd.f32 %v1319, %v1477
    %v1479 = vand.u32 %v1396, 4294901760
    %v1480 = vsub.f32 %v1396, %v1479
    %v1481 = vand.u32 %v1480, 4294901760
    %v1482 = vsub.f32 %v1480, %v1481
    %v1483 = vand.u32 %v1482, 4294901760
    %1484 = vmatmul.f32.gmra.mxu0 %v1483
    %v1485 = vpop.f32.mrf.mxu0
    %v1486 = vadd.f32 %v1324, %v1485
    %v1487 = vand.u32 %v1399, 4294901760
    %v1488 = vsub.f32 %v1399, %v1487
    %v1489 = vand.u32 %v1488, 4294901760
    %v1490 = vsub.f32 %v1488, %v1489
    %v1491 = vand.u32 %v1490, 4294901760
    %1492 = vmatmul.f32.gmra.mxu0 %v1491
    %v1493 = vpop.f32.mrf.mxu0
    %v1494 = vadd.f32 %v1329, %v1493
    %v1495 = vand.u32 %v1402, 4294901760
    %v1496 = vsub.f32 %v1402, %v1495
    %v1497 = vand.u32 %v1496, 4294901760
    %v1498 = vsub.f32 %v1496, %v1497
    %v1499 = vand.u32 %v1498, 4294901760
    %1500 = vmatmul.f32.gmra.mxu0 %v1499
    %v1501 = vpop.f32.mrf.mxu0
    %v1502 = vadd.f32 %v1334, %v1501
    %v1503 = vand.u32 %v1405, 4294901760
    %v1504 = vsub.f32 %v1405, %v1503
    %v1505 = vand.u32 %v1504, 4294901760
    %v1506 = vsub.f32 %v1504, %v1505
    %v1507 = vand.u32 %v1506, 4294901760
    %1508 = vmatmul.f32.gmra.mxu0 %v1507
    %v1509 = vpop.f32.mrf.mxu0
    %v1510 = vadd.f32 %v1339, %v1509
    %v1511 = vand.u32 %v1408, 4294901760
    %v1512 = vsub.f32 %v1408, %v1511
    %v1513 = vand.u32 %v1512, 4294901760
    %v1514 = vsub.f32 %v1512, %v1513
    %v1515 = vand.u32 %v1514, 4294901760
    %1516 = vmatmul.f32.gmra.mxu0 %v1515
    %v1517 = vpop.f32.mrf.mxu0
    %v1518 = vadd.f32 %v1344, %v1517
    %v1519 = vand.u32 %v1411, 4294901760
    %v1520 = vsub.f32 %v1411, %v1519
    %v1521 = vand.u32 %v1520, 4294901760
    %v1522 = vsub.f32 %v1520, %v1521
    %v1523 = vand.u32 %v1522, 4294901760
    %1524 = vmatmul.f32.gmra.mxu0 %v1523
    %v1525 = vpop.f32.mrf.mxu0
    %v1526 = vadd.f32 %v1349, %v1525
    %v1527 = vand.u32 %v1414, 4294901760
    %v1528 = vsub.f32 %v1414, %v1527
    %v1529 = vand.u32 %v1528, 4294901760
    %v1530 = vsub.f32 %v1528, %v1529
    %v1531 = vand.u32 %v1530, 4294901760
    %1532 = vmatmul.f32.gmra.mxu0 %v1531
    %v1533 = vpop.f32.mrf.mxu0
    %v1534 = vadd.f32 %v1354, %v1533
    %v1535 = vand.u32 %v1417, 4294901760
    %v1536 = vsub.f32 %v1417, %v1535
    %v1537 = vand.u32 %v1536, 4294901760
    %v1538 = vsub.f32 %v1536, %v1537
    %v1539 = vand.u32 %v1538, 4294901760
    %1540 = vmatmul.f32.gmra.mxu0 %v1539
    %v1541 = vpop.f32.mrf.mxu0
    %v1542 = vadd.f32 %v1359, %v1541
    %v1543 = vand.u32 %v1420, 4294901760
    %v1544 = vsub.f32 %v1420, %v1543
    %v1545 = vand.u32 %v1544, 4294901760
    %v1546 = vsub.f32 %v1544, %v1545
    %v1547 = vand.u32 %v1546, 4294901760
    %1548 = vmatmul.f32.gmra.mxu0 %v1547
    %v1549 = vpop.f32.mrf.mxu0
    %v1550 = vadd.f32 %v1364, %v1549
    %v1551 = vand.u32 %v1423, 4294901760
    %v1552 = vsub.f32 %v1423, %v1551
    %v1553 = vand.u32 %v1552, 4294901760
    %v1554 = vsub.f32 %v1552, %v1553
    %v1555 = vand.u32 %v1554, 4294901760
    %1556 = vmatmul.f32.gmra.mxu0 %v1555
    %v1557 = vpop.f32.mrf.mxu0
    %v1558 = vadd.f32 %v1369, %v1557
    %v1559 = vand.u32 %v1426, 4294901760
    %v1560 = vsub.f32 %v1426, %v1559
    %v1561 = vand.u32 %v1560, 4294901760
    %v1562 = vsub.f32 %v1560, %v1561
    %v1563 = vand.u32 %v1562, 4294901760
    %1564 = vmatmul.f32.gmra.mxu0 %v1563
    %v1565 = vpop.f32.mrf.mxu0
    %v1566 = vadd.f32 %v1374, %v1565
    %v1567 = vand.u32 %v1429, 4294901760
    %v1568 = vsub.f32 %v1429, %v1567
    %v1569 = vand.u32 %v1568, 4294901760
    %v1570 = vsub.f32 %v1568, %v1569
    %v1571 = vand.u32 %v1570, 4294901760
    %1572 = vmatmul.f32.gmra.mxu0 %v1571
    %v1573 = vpop.f32.mrf.mxu0
    %v1574 = vadd.f32 %v1379, %v1573
    %v1575 = vand.u32 %v1432, 4294901760
    %v1576 = vsub.f32 %v1432, %v1575
    %v1577 = vand.u32 %v1576, 4294901760
    %v1578 = vsub.f32 %v1576, %v1577
    %v1579 = vand.u32 %v1578, 4294901760
    %1580 = vmatmul.f32.gmra.mxu0 %v1579
    %v1581 = vpop.f32.mrf.mxu0
    %v1582 = vadd.f32 %v1384, %v1581
    %1583 = vdwg.mxu0
    %1584 = vmatpush.msra.mxu0 0.0
    %1585 = vmatpush.msra.mxu0 0.0
    %1586 = vmatpush.msra.mxu0 0.0
    %1587 = vmatpush.msra.mxu0 0.0
    %1588 = vmatpush.msra.mxu0 0.0
    %1589 = vmatpush.msra.mxu0 0.0
    %1590 = vmatpush.msra.mxu0 0.0
    %1591 = vmatpush.msra.mxu0 0.0
    %1592 = vmatpush.msra.mxu0 0.0
    %1593 = vmatpush.msra.mxu0 0.0
    %1594 = vmatpush.msra.mxu0 0.0
    %v1595 = vand.u32 %v171, 4294901760
    %v1596 = vsub.f32 %v171, %v1595
    %v1597 = vand.u32 %v1596, 4294901760
    %v1598 = vsub.f32 %v1596, %v1597
    %v1599 = vand.u32 %v1598, 4294901760
    %1600 = vmatpush.msra.mxu0 %v1599
    %v1601 = vand.u32 %v36, 4294901760
    %v1602 = vsub.f32 %v36, %v1601
    %v1603 = vand.u32 %v1602, 4294901760
    %v1604 = vsub.f32 %v1602, %v1603
    %v1605 = vand.u32 %v1604, 4294901760
    %1606 = vmatpush.msra.mxu0 %v1605
    %v1607 = vand.u32 %v35, 4294901760
    %v1608 = vsub.f32 %v35, %v1607
    %v1609 = vand.u32 %v1608, 4294901760
    %v1610 = vsub.f32 %v1608, %v1609
    %v1611 = vand.u32 %v1610, 4294901760
    %1612 = vmatpush.msra.mxu0 %v1611
    %v1613 = vand.u32 %v34, 4294901760
    %v1614 = vsub.f32 %v34, %v1613
    %v1615 = vand.u32 %v1614, 4294901760
    %v1616 = vsub.f32 %v1614, %v1615
    %v1617 = vand.u32 %v1616, 4294901760
    %1618 = vmatpush.msra.mxu0 %v1617
    %v1619 = vand.u32 %v33, 4294901760
    %v1620 = vsub.f32 %v33, %v1619
    %v1621 = vand.u32 %v1620, 4294901760
    %v1622 = vsub.f32 %v1620, %v1621
    %v1623 = vand.u32 %v1622, 4294901760
    %1624 = vmatpush.msra.mxu0 %v1623
    %v1625 = vand.u32 %v1387, 4294901760
    %1626 = vmatmul.f32.gmra.mxu0 %v1625
    %v1627 = vpop.f32.mrf.mxu0
    %v1628 = vadd.f32 %v1462, %v1627
    %v1629 = vand.u32 %v1390, 4294901760
    %1630 = vmatmul.f32.gmra.mxu0 %v1629
    %v1631 = vpop.f32.mrf.mxu0
    %v1632 = vadd.f32 %v1470, %v1631
    %v1633 = vand.u32 %v1393, 4294901760
    %1634 = vmatmul.f32.gmra.mxu0 %v1633
    %v1635 = vpop.f32.mrf.mxu0
    %v1636 = vadd.f32 %v1478, %v1635
    %v1637 = vand.u32 %v1396, 4294901760
    %1638 = vmatmul.f32.gmra.mxu0 %v1637
    %v1639 = vpop.f32.mrf.mxu0
    %v1640 = vadd.f32 %v1486, %v1639
    %v1641 = vand.u32 %v1399, 4294901760
    %1642 = vmatmul.f32.gmra.mxu0 %v1641
    %v1643 = vpop.f32.mrf.mxu0
    %v1644 = vadd.f32 %v1494, %v1643
    %v1645 = vand.u32 %v1402, 4294901760
    %1646 = vmatmul.f32.gmra.mxu0 %v1645
    %v1647 = vpop.f32.mrf.mxu0
    %v1648 = vadd.f32 %v1502, %v1647
    %v1649 = vand.u32 %v1405, 4294901760
    %1650 = vmatmul.f32.gmra.mxu0 %v1649
    %v1651 = vpop.f32.mrf.mxu0
    %v1652 = vadd.f32 %v1510, %v1651
    %v1653 = vand.u32 %v1408, 4294901760
    %1654 = vmatmul.f32.gmra.mxu0 %v1653
    %v1655 = vpop.f32.mrf.mxu0
    %v1656 = vadd.f32 %v1518, %v1655
    %v1657 = vand.u32 %v1411, 4294901760
    %1658 = vmatmul.f32.gmra.mxu0 %v1657
    %v1659 = vpop.f32.mrf.mxu0
    %v1660 = vadd.f32 %v1526, %v1659
    %v1661 = vand.u32 %v1414, 4294901760
    %1662 = vmatmul.f32.gmra.mxu0 %v1661
    %v1663 = vpop.f32.mrf.mxu0
    %v1664 = vadd.f32 %v1534, %v1663
    %v1665 = vand.u32 %v1417, 4294901760
    %1666 = vmatmul.f32.gmra.mxu0 %v1665
    %v1667 = vpop.f32.mrf.mxu0
    %v1668 = vadd.f32 %v1542, %v1667
    %v1669 = vand.u32 %v1420, 4294901760
    %1670 = vmatmul.f32.gmra.mxu0 %v1669
    %v1671 = vpop.f32.mrf.mxu0
    %v1672 = vadd.f32 %v1550, %v1671
    %v1673 = vand.u32 %v1423, 4294901760
    %1674 = vmatmul.f32.gmra.mxu0 %v1673
    %v1675 = vpop.f32.mrf.mxu0
    %v1676 = vadd.f32 %v1558, %v1675
    %v1677 = vand.u32 %v1426, 4294901760
    %1678 = vmatmul.f32.gmra.mxu0 %v1677
    %v1679 = vpop.f32.mrf.mxu0
    %v1680 = vadd.f32 %v1566, %v1679
    %v1681 = vand.u32 %v1429, 4294901760
    %1682 = vmatmul.f32.gmra.mxu0 %v1681
    %v1683 = vpop.f32.mrf.mxu0
    %v1684 = vadd.f32 %v1574, %v1683
    %v1685 = vand.u32 %v1432, 4294901760
    %1686 = vmatmul.f32.gmra.mxu0 %v1685
    %v1687 = vpop.f32.mrf.mxu0
    %v1688 = vadd.f32 %v1582, %v1687
    %1689 = vdwg.mxu0
    %1690 = vmatpush.msra.mxu0 0.0
    %1691 = vmatpush.msra.mxu0 0.0
    %1692 = vmatpush.msra.mxu0 0.0
    %1693 = vmatpush.msra.mxu0 0.0
    %1694 = vmatpush.msra.mxu0 0.0
    %1695 = vmatpush.msra.mxu0 0.0
    %1696 = vmatpush.msra.mxu0 0.0
    %1697 = vmatpush.msra.mxu0 0.0
    %1698 = vmatpush.msra.mxu0 0.0
    %1699 = vmatpush.msra.mxu0 0.0
    %1700 = vmatpush.msra.mxu0 0.0
    %v1701 = vand.u32 %v171, 4294901760
    %v1702 = vsub.f32 %v171, %v1701
    %1703 = vmatpush.msra.mxu0 %v1702
    %v1704 = vand.u32 %v36, 4294901760
    %v1705 = vsub.f32 %v36, %v1704
    %1706 = vmatpush.msra.mxu0 %v1705
    %v1707 = vand.u32 %v35, 4294901760
    %v1708 = vsub.f32 %v35, %v1707
    %1709 = vmatpush.msra.mxu0 %v1708
    %v1710 = vand.u32 %v34, 4294901760
    %v1711 = vsub.f32 %v34, %v1710
    %1712 = vmatpush.msra.mxu0 %v1711
    %v1713 = vand.u32 %v33, 4294901760
    %v1714 = vsub.f32 %v33, %v1713
    %1715 = vmatpush.msra.mxu0 %v1714
    %v1716 = vand.u32 %v1387, 4294901760
    %v1717 = vsub.f32 %v1387, %v1716
    %1718 = vmatmul.f32.gmra.mxu0 %v1717
    %v1719 = vpop.f32.mrf.mxu0
    %v1720 = vadd.f32 %v1628, %v1719
    %v1721 = vand.u32 %v1390, 4294901760
    %v1722 = vsub.f32 %v1390, %v1721
    %1723 = vmatmul.f32.gmra.mxu0 %v1722
    %v1724 = vpop.f32.mrf.mxu0
    %v1725 = vadd.f32 %v1632, %v1724
    %v1726 = vand.u32 %v1393, 4294901760
    %v1727 = vsub.f32 %v1393, %v1726
    %1728 = vmatmul.f32.gmra.mxu0 %v1727
    %v1729 = vpop.f32.mrf.mxu0
    %v1730 = vadd.f32 %v1636, %v1729
    %v1731 = vand.u32 %v1396, 4294901760
    %v1732 = vsub.f32 %v1396, %v1731
    %1733 = vmatmul.f32.gmra.mxu0 %v1732
    %v1734 = vpop.f32.mrf.mxu0
    %v1735 = vadd.f32 %v1640, %v1734
    %v1736 = vand.u32 %v1399, 4294901760
    %v1737 = vsub.f32 %v1399, %v1736
    %1738 = vmatmul.f32.gmra.mxu0 %v1737
    %v1739 = vpop.f32.mrf.mxu0
    %v1740 = vadd.f32 %v1644, %v1739
    %v1741 = vand.u32 %v1402, 4294901760
    %v1742 = vsub.f32 %v1402, %v1741
    %1743 = vmatmul.f32.gmra.mxu0 %v1742
    %v1744 = vpop.f32.mrf.mxu0
    %v1745 = vadd.f32 %v1648, %v1744
    %v1746 = vand.u32 %v1405, 4294901760
    %v1747 = vsub.f32 %v1405, %v1746
    %1748 = vmatmul.f32.gmra.mxu0 %v1747
    %v1749 = vpop.f32.mrf.mxu0
    %v1750 = vadd.f32 %v1652, %v1749
    %v1751 = vand.u32 %v1408, 4294901760
    %v1752 = vsub.f32 %v1408, %v1751
    %1753 = vmatmul.f32.gmra.mxu0 %v1752
    %v1754 = vpop.f32.mrf.mxu0
    %v1755 = vadd.f32 %v1656, %v1754
    %v1756 = vand.u32 %v1411, 4294901760
    %v1757 = vsub.f32 %v1411, %v1756
    %1758 = vmatmul.f32.gmra.mxu0 %v1757
    %v1759 = vpop.f32.mrf.mxu0
    %v1760 = vadd.f32 %v1660, %v1759
    %v1761 = vand.u32 %v1414, 4294901760
    %v1762 = vsub.f32 %v1414, %v1761
    %1763 = vmatmul.f32.gmra.mxu0 %v1762
    %v1764 = vpop.f32.mrf.mxu0
    %v1765 = vadd.f32 %v1664, %v1764
    %v1766 = vand.u32 %v1417, 4294901760
    %v1767 = vsub.f32 %v1417, %v1766
    %1768 = vmatmul.f32.gmra.mxu0 %v1767
    %v1769 = vpop.f32.mrf.mxu0
    %v1770 = vadd.f32 %v1668, %v1769
    %v1771 = vand.u32 %v1420, 4294901760
    %v1772 = vsub.f32 %v1420, %v1771
    %1773 = vmatmul.f32.gmra.mxu0 %v1772
    %v1774 = vpop.f32.mrf.mxu0
    %v1775 = vadd.f32 %v1672, %v1774
    %v1776 = vand.u32 %v1423, 4294901760
    %v1777 = vsub.f32 %v1423, %v1776
    %1778 = vmatmul.f32.gmra.mxu0 %v1777
    %v1779 = vpop.f32.mrf.mxu0
    %v1780 = vadd.f32 %v1676, %v1779
    %v1781 = vand.u32 %v1426, 4294901760
    %v1782 = vsub.f32 %v1426, %v1781
    %1783 = vmatmul.f32.gmra.mxu0 %v1782
    %v1784 = vpop.f32.mrf.mxu0
    %v1785 = vadd.f32 %v1680, %v1784
    %v1786 = vand.u32 %v1429, 4294901760
    %v1787 = vsub.f32 %v1429, %v1786
    %1788 = vmatmul.f32.gmra.mxu0 %v1787
    %v1789 = vpop.f32.mrf.mxu0
    %v1790 = vadd.f32 %v1684, %v1789
    %v1791 = vand.u32 %v1432, 4294901760
    %v1792 = vsub.f32 %v1432, %v1791
    %1793 = vmatmul.f32.gmra.mxu0 %v1792
    %v1794 = vpop.f32.mrf.mxu0
    %v1795 = vadd.f32 %v1688, %v1794
    %1796 = vdwg.mxu0
    %1797 = vmatpush.msra.mxu0 0.0
    %1798 = vmatpush.msra.mxu0 0.0
    %1799 = vmatpush.msra.mxu0 0.0
    %1800 = vmatpush.msra.mxu0 0.0
    %1801 = vmatpush.msra.mxu0 0.0
    %1802 = vmatpush.msra.mxu0 0.0
    %1803 = vmatpush.msra.mxu0 0.0
    %1804 = vmatpush.msra.mxu0 0.0
    %1805 = vmatpush.msra.mxu0 0.0
    %1806 = vmatpush.msra.mxu0 0.0
    %1807 = vmatpush.msra.mxu0 0.0
    %v1808 = vand.u32 %v171, 4294901760
    %1809 = vmatpush.msra.mxu0 %v1808
    %v1810 = vand.u32 %v36, 4294901760
    %1811 = vmatpush.msra.mxu0 %v1810
    %v1812 = vand.u32 %v35, 4294901760
    %1813 = vmatpush.msra.mxu0 %v1812
    %v1814 = vand.u32 %v34, 4294901760
    %1815 = vmatpush.msra.mxu0 %v1814
    %v1816 = vand.u32 %v33, 4294901760
    %1817 = vmatpush.msra.mxu0 %v1816
    %v1818 = vand.u32 %v1387, 4294901760
    %v1819 = vsub.f32 %v1387, %v1818
    %v1820 = vand.u32 %v1819, 4294901760
    %1821 = vmatmul.f32.gmra.mxu0 %v1820
    %v1822 = vpop.f32.mrf.mxu0
    %v1823 = vadd.f32 %v1720, %v1822
    %v1824 = vand.u32 %v1390, 4294901760
    %v1825 = vsub.f32 %v1390, %v1824
    %v1826 = vand.u32 %v1825, 4294901760
    %1827 = vmatmul.f32.gmra.mxu0 %v1826
    %v1828 = vpop.f32.mrf.mxu0
    %v1829 = vadd.f32 %v1725, %v1828
    %v1830 = vand.u32 %v1393, 4294901760
    %v1831 = vsub.f32 %v1393, %v1830
    %v1832 = vand.u32 %v1831, 4294901760
    %1833 = vmatmul.f32.gmra.mxu0 %v1832
    %v1834 = vpop.f32.mrf.mxu0
    %v1835 = vadd.f32 %v1730, %v1834
    %v1836 = vand.u32 %v1396, 4294901760
    %v1837 = vsub.f32 %v1396, %v1836
    %v1838 = vand.u32 %v1837, 4294901760
    %1839 = vmatmul.f32.gmra.mxu0 %v1838
    %v1840 = vpop.f32.mrf.mxu0
    %v1841 = vadd.f32 %v1735, %v1840
    %v1842 = vand.u32 %v1399, 4294901760
    %v1843 = vsub.f32 %v1399, %v1842
    %v1844 = vand.u32 %v1843, 4294901760
    %1845 = vmatmul.f32.gmra.mxu0 %v1844
    %v1846 = vpop.f32.mrf.mxu0
    %v1847 = vadd.f32 %v1740, %v1846
    %v1848 = vand.u32 %v1402, 4294901760
    %v1849 = vsub.f32 %v1402, %v1848
    %v1850 = vand.u32 %v1849, 4294901760
    %1851 = vmatmul.f32.gmra.mxu0 %v1850
    %v1852 = vpop.f32.mrf.mxu0
    %v1853 = vadd.f32 %v1745, %v1852
    %v1854 = vand.u32 %v1405, 4294901760
    %v1855 = vsub.f32 %v1405, %v1854
    %v1856 = vand.u32 %v1855, 4294901760
    %1857 = vmatmul.f32.gmra.mxu0 %v1856
    %v1858 = vpop.f32.mrf.mxu0
    %v1859 = vadd.f32 %v1750, %v1858
    %v1860 = vand.u32 %v1408, 4294901760
    %v1861 = vsub.f32 %v1408, %v1860
    %v1862 = vand.u32 %v1861, 4294901760
    %1863 = vmatmul.f32.gmra.mxu0 %v1862
    %v1864 = vpop.f32.mrf.mxu0
    %v1865 = vadd.f32 %v1755, %v1864
    %v1866 = vand.u32 %v1411, 4294901760
    %v1867 = vsub.f32 %v1411, %v1866
    %v1868 = vand.u32 %v1867, 4294901760
    %1869 = vmatmul.f32.gmra.mxu0 %v1868
    %v1870 = vpop.f32.mrf.mxu0
    %v1871 = vadd.f32 %v1760, %v1870
    %v1872 = vand.u32 %v1414, 4294901760
    %v1873 = vsub.f32 %v1414, %v1872
    %v1874 = vand.u32 %v1873, 4294901760
    %1875 = vmatmul.f32.gmra.mxu0 %v1874
    %v1876 = vpop.f32.mrf.mxu0
    %v1877 = vadd.f32 %v1765, %v1876
    %v1878 = vand.u32 %v1417, 4294901760
    %v1879 = vsub.f32 %v1417, %v1878
    %v1880 = vand.u32 %v1879, 4294901760
    %1881 = vmatmul.f32.gmra.mxu0 %v1880
    %v1882 = vpop.f32.mrf.mxu0
    %v1883 = vadd.f32 %v1770, %v1882
    %v1884 = vand.u32 %v1420, 4294901760
    %v1885 = vsub.f32 %v1420, %v1884
    %v1886 = vand.u32 %v1885, 4294901760
    %1887 = vmatmul.f32.gmra.mxu0 %v1886
    %v1888 = vpop.f32.mrf.mxu0
    %v1889 = vadd.f32 %v1775, %v1888
    %v1890 = vand.u32 %v1423, 4294901760
    %v1891 = vsub.f32 %v1423, %v1890
    %v1892 = vand.u32 %v1891, 4294901760
    %1893 = vmatmul.f32.gmra.mxu0 %v1892
    %v1894 = vpop.f32.mrf.mxu0
    %v1895 = vadd.f32 %v1780, %v1894
    %v1896 = vand.u32 %v1426, 4294901760
    %v1897 = vsub.f32 %v1426, %v1896
    %v1898 = vand.u32 %v1897, 4294901760
    %1899 = vmatmul.f32.gmra.mxu0 %v1898
    %v1900 = vpop.f32.mrf.mxu0
    %v1901 = vadd.f32 %v1785, %v1900
    %v1902 = vand.u32 %v1429, 4294901760
    %v1903 = vsub.f32 %v1429, %v1902
    %v1904 = vand.u32 %v1903, 4294901760
    %1905 = vmatmul.f32.gmra.mxu0 %v1904
    %v1906 = vpop.f32.mrf.mxu0
    %v1907 = vadd.f32 %v1790, %v1906
    %v1908 = vand.u32 %v1432, 4294901760
    %v1909 = vsub.f32 %v1432, %v1908
    %v1910 = vand.u32 %v1909, 4294901760
    %1911 = vmatmul.f32.gmra.mxu0 %v1910
    %v1912 = vpop.f32.mrf.mxu0
    %v1913 = vadd.f32 %v1795, %v1912
    %1914 = vdwg.mxu0
    %1915 = vmatpush.msra.mxu0 0.0
    %1916 = vmatpush.msra.mxu0 0.0
    %1917 = vmatpush.msra.mxu0 0.0
    %1918 = vmatpush.msra.mxu0 0.0
    %1919 = vmatpush.msra.mxu0 0.0
    %1920 = vmatpush.msra.mxu0 0.0
    %1921 = vmatpush.msra.mxu0 0.0
    %1922 = vmatpush.msra.mxu0 0.0
    %1923 = vmatpush.msra.mxu0 0.0
    %1924 = vmatpush.msra.mxu0 0.0
    %1925 = vmatpush.msra.mxu0 0.0
    %v1926 = vand.u32 %v171, 4294901760
    %v1927 = vsub.f32 %v171, %v1926
    %v1928 = vand.u32 %v1927, 4294901760
    %1929 = vmatpush.msra.mxu0 %v1928
    %v1930 = vand.u32 %v36, 4294901760
    %v1931 = vsub.f32 %v36, %v1930
    %v1932 = vand.u32 %v1931, 4294901760
    %1933 = vmatpush.msra.mxu0 %v1932
    %v1934 = vand.u32 %v35, 4294901760
    %v1935 = vsub.f32 %v35, %v1934
    %v1936 = vand.u32 %v1935, 4294901760
    %1937 = vmatpush.msra.mxu0 %v1936
    %v1938 = vand.u32 %v34, 4294901760
    %v1939 = vsub.f32 %v34, %v1938
    %v1940 = vand.u32 %v1939, 4294901760
    %1941 = vmatpush.msra.mxu0 %v1940
    %v1942 = vand.u32 %v33, 4294901760
    %v1943 = vsub.f32 %v33, %v1942
    %v1944 = vand.u32 %v1943, 4294901760
    %1945 = vmatpush.msra.mxu0 %v1944
    %v1946 = vand.u32 %v1387, 4294901760
    %1947 = vmatmul.f32.gmra.mxu0 %v1946
    %v1948 = vpop.f32.mrf.mxu0
    %v1949 = vadd.f32 %v1823, %v1948
    %v1950 = vand.u32 %v1390, 4294901760
    %1951 = vmatmul.f32.gmra.mxu0 %v1950
    %v1952 = vpop.f32.mrf.mxu0
    %v1953 = vadd.f32 %v1829, %v1952
    %v1954 = vand.u32 %v1393, 4294901760
    %1955 = vmatmul.f32.gmra.mxu0 %v1954
    %v1956 = vpop.f32.mrf.mxu0
    %v1957 = vadd.f32 %v1835, %v1956
    %v1958 = vand.u32 %v1396, 4294901760
    %1959 = vmatmul.f32.gmra.mxu0 %v1958
    %v1960 = vpop.f32.mrf.mxu0
    %v1961 = vadd.f32 %v1841, %v1960
    %v1962 = vand.u32 %v1399, 4294901760
    %1963 = vmatmul.f32.gmra.mxu0 %v1962
    %v1964 = vpop.f32.mrf.mxu0
    %v1965 = vadd.f32 %v1847, %v1964
    %v1966 = vand.u32 %v1402, 4294901760
    %1967 = vmatmul.f32.gmra.mxu0 %v1966
    %v1968 = vpop.f32.mrf.mxu0
    %v1969 = vadd.f32 %v1853, %v1968
    %v1970 = vand.u32 %v1405, 4294901760
    %1971 = vmatmul.f32.gmra.mxu0 %v1970
    %v1972 = vpop.f32.mrf.mxu0
    %v1973 = vadd.f32 %v1859, %v1972
    %v1974 = vand.u32 %v1408, 4294901760
    %1975 = vmatmul.f32.gmra.mxu0 %v1974
    %v1976 = vpop.f32.mrf.mxu0
    %v1977 = vadd.f32 %v1865, %v1976
    %v1978 = vand.u32 %v1411, 4294901760
    %1979 = vmatmul.f32.gmra.mxu0 %v1978
    %v1980 = vpop.f32.mrf.mxu0
    %v1981 = vadd.f32 %v1871, %v1980
    %v1982 = vand.u32 %v1414, 4294901760
    %1983 = vmatmul.f32.gmra.mxu0 %v1982
    %v1984 = vpop.f32.mrf.mxu0
    %v1985 = vadd.f32 %v1877, %v1984
    %v1986 = vand.u32 %v1417, 4294901760
    %1987 = vmatmul.f32.gmra.mxu0 %v1986
    %v1988 = vpop.f32.mrf.mxu0
    %v1989 = vadd.f32 %v1883, %v1988
    %v1990 = vand.u32 %v1420, 4294901760
    %1991 = vmatmul.f32.gmra.mxu0 %v1990
    %v1992 = vpop.f32.mrf.mxu0
    %v1993 = vadd.f32 %v1889, %v1992
    %v1994 = vand.u32 %v1423, 4294901760
    %1995 = vmatmul.f32.gmra.mxu0 %v1994
    %v1996 = vpop.f32.mrf.mxu0
    %v1997 = vadd.f32 %v1895, %v1996
    %v1998 = vand.u32 %v1426, 4294901760
    %1999 = vmatmul.f32.gmra.mxu0 %v1998
    %v2000 = vpop.f32.mrf.mxu0
    %v2001 = vadd.f32 %v1901, %v2000
    %v2002 = vand.u32 %v1429, 4294901760
    %2003 = vmatmul.f32.gmra.mxu0 %v2002
    %v2004 = vpop.f32.mrf.mxu0
    %v2005 = vadd.f32 %v1907, %v2004
    %v2006 = vand.u32 %v1432, 4294901760
    %2007 = vmatmul.f32.gmra.mxu0 %v2006
    %v2008 = vpop.f32.mrf.mxu0
    %v2009 = vadd.f32 %v1913, %v2008
    %2010 = vdwg.mxu0
    %2011 = vmatpush.msra.mxu0 0.0
    %2012 = vmatpush.msra.mxu0 0.0
    %2013 = vmatpush.msra.mxu0 0.0
    %2014 = vmatpush.msra.mxu0 0.0
    %2015 = vmatpush.msra.mxu0 0.0
    %2016 = vmatpush.msra.mxu0 0.0
    %2017 = vmatpush.msra.mxu0 0.0
    %2018 = vmatpush.msra.mxu0 0.0
    %2019 = vmatpush.msra.mxu0 0.0
    %2020 = vmatpush.msra.mxu0 0.0
    %2021 = vmatpush.msra.mxu0 0.0
    %v2022 = vand.u32 %v171, 4294901760
    %2023 = vmatpush.msra.mxu0 %v2022
    %v2024 = vand.u32 %v36, 4294901760
    %2025 = vmatpush.msra.mxu0 %v2024
    %v2026 = vand.u32 %v35, 4294901760
    %2027 = vmatpush.msra.mxu0 %v2026
    %v2028 = vand.u32 %v34, 4294901760
    %2029 = vmatpush.msra.mxu0 %v2028
    %v2030 = vand.u32 %v33, 4294901760
    %2031 = vmatpush.msra.mxu0 %v2030
    %v2032 = vand.u32 %v1387, 4294901760
    %2033 = vmatmul.f32.gmra.mxu0 %v2032
    %v2034 = vpop.f32.mrf.mxu0
    %v2035 = vadd.f32 %v1949, %v2034
    %v2036 = vand.u32 %v1390, 4294901760
    %2037 = vmatmul.f32.gmra.mxu0 %v2036
    %v2038 = vpop.f32.mrf.mxu0
    %v2039 = vadd.f32 %v1953, %v2038
    %v2040 = vand.u32 %v1393, 4294901760
    %2041 = vmatmul.f32.gmra.mxu0 %v2040
    %v2042 = vpop.f32.mrf.mxu0
    %v2043 = vadd.f32 %v1957, %v2042
    %v2044 = vand.u32 %v1396, 4294901760
    %2045 = vmatmul.f32.gmra.mxu0 %v2044
    %v2046 = vpop.f32.mrf.mxu0
    %v2047 = vadd.f32 %v1961, %v2046
    %v2048 = vand.u32 %v1399, 4294901760
    %2049 = vmatmul.f32.gmra.mxu0 %v2048
    %v2050 = vpop.f32.mrf.mxu0
    %v2051 = vadd.f32 %v1965, %v2050
    %v2052 = vand.u32 %v1402, 4294901760
    %2053 = vmatmul.f32.gmra.mxu0 %v2052
    %v2054 = vpop.f32.mrf.mxu0
    %v2055 = vadd.f32 %v1969, %v2054
    %v2056 = vand.u32 %v1405, 4294901760
    %2057 = vmatmul.f32.gmra.mxu0 %v2056
    %v2058 = vpop.f32.mrf.mxu0
    %v2059 = vadd.f32 %v1973, %v2058
    %v2060 = vand.u32 %v1408, 4294901760
    %2061 = vmatmul.f32.gmra.mxu0 %v2060
    %v2062 = vpop.f32.mrf.mxu0
    %v2063 = vadd.f32 %v1977, %v2062
    %v2064 = vand.u32 %v1411, 4294901760
    %2065 = vmatmul.f32.gmra.mxu0 %v2064
    %v2066 = vpop.f32.mrf.mxu0
    %v2067 = vadd.f32 %v1981, %v2066
    %v2068 = vand.u32 %v1414, 4294901760
    %2069 = vmatmul.f32.gmra.mxu0 %v2068
    %v2070 = vpop.f32.mrf.mxu0
    %v2071 = vadd.f32 %v1985, %v2070
    %v2072 = vand.u32 %v1417, 4294901760
    %2073 = vmatmul.f32.gmra.mxu0 %v2072
    %v2074 = vpop.f32.mrf.mxu0
    %v2075 = vadd.f32 %v1989, %v2074
    %v2076 = vand.u32 %v1420, 4294901760
    %2077 = vmatmul.f32.gmra.mxu0 %v2076
    %v2078 = vpop.f32.mrf.mxu0
    %v2079 = vadd.f32 %v1993, %v2078
    %v2080 = vand.u32 %v1423, 4294901760
    %2081 = vmatmul.f32.gmra.mxu0 %v2080
    %v2082 = vpop.f32.mrf.mxu0
    %v2083 = vadd.f32 %v1997, %v2082
    %v2084 = vand.u32 %v1426, 4294901760
    %2085 = vmatmul.f32.gmra.mxu0 %v2084
    %v2086 = vpop.f32.mrf.mxu0
    %v2087 = vadd.f32 %v2001, %v2086
    %v2088 = vand.u32 %v1429, 4294901760
    %2089 = vmatmul.f32.gmra.mxu0 %v2088
    %v2090 = vpop.f32.mrf.mxu0
    %v2091 = vadd.f32 %v2005, %v2090
    %v2092 = vand.u32 %v1432, 4294901760
    %2093 = vmatmul.f32.gmra.mxu0 %v2092
    %v2094 = vpop.f32.mrf.mxu0
    %v2095 = vadd.f32 %v2009, %v2094
    %2096 = vdwg.mxu0
    %v2097 = vld [vmem:[%s7] sm:$0xff]
    %v2098 = vld [vmem:[%s7 + $0x8] sm:$0xff]
    %v2099 = vld [vmem:[%s7 + $0x10] sm:$0xff]
    %v2100 = vld [vmem:[%s7 + $0x18] sm:$0xff]
    %v2101 = vld [vmem:[%s7 + $0x20] sm:$0xff]
    %v2102 = vld [vmem:[%s7 + $0x28] sm:$0xff]
    %v2103 = vld [vmem:[%s7 + $0x30] sm:$0xff]
    %v2104 = vld [vmem:[%s7 + $0x38] sm:$0xff]
    %v2105 = vld [vmem:[%s7 + $0x40] sm:$0xff]
    %v2106 = vld [vmem:[%s7 + $0x48] sm:$0xff]
    %v2107 = vld [vmem:[%s7 + $0x50] sm:$0xff]
    %v2108 = vld [vmem:[%s7 + $0x58] sm:$0xff]
    %v2109 = vld [vmem:[%s7 + $0x60] sm:$0xff]
    %v2110 = vld [vmem:[%s7 + $0x68] sm:$0xff]
    %v2111 = vld [vmem:[%s7 + $0x70] sm:$0xff]
    %v2112 = vld [vmem:[%s7 + $0x78] sm:$0xff]
    %vm2113 = vcmask 392192
    %v2115 = vsel %vm2113, %v2097, 0
    %v2118 = vsel %vm2113, %v2098, 0
    %v2121 = vsel %vm2113, %v2099, 0
    %v2124 = vsel %vm2113, %v2100, 0
    %v2127 = vsel %vm2113, %v2101, 0
    %v2130 = vsel %vm2113, %v2102, 0
    %v2133 = vsel %vm2113, %v2103, 0
    %v2136 = vsel %vm2113, %v2104, 0
    %v2139 = vsel %vm2113, %v2105, 0
    %v2142 = vsel %vm2113, %v2106, 0
    %v2145 = vsel %vm2113, %v2107, 0
    %v2148 = vsel %vm2113, %v2108, 0
    %v2151 = vsel %vm2113, %v2109, 0
    %v2154 = vsel %vm2113, %v2110, 0
    %v2157 = vsel %vm2113, %v2111, 0
    %v2160 = vsel %vm2113, %v2112, 0
    %2162 = vmatpush.msra.mxu0 0.0
    %2163 = vmatpush.msra.mxu0 0.0
    %2164 = vmatpush.msra.mxu0 0.0
    %2165 = vmatpush.msra.mxu0 0.0
    %2166 = vmatpush.msra.mxu0 0.0
    %2167 = vmatpush.msra.mxu0 0.0
    %2168 = vmatpush.msra.mxu0 0.0
    %2169 = vmatpush.msra.mxu0 0.0
    %2170 = vmatpush.msra.mxu0 0.0
    %2171 = vmatpush.msra.mxu0 0.0
    %v2172 = vand.u32 %v1272, 4294901760
    %2173 = vmatpush.msra.mxu0 %v2172
    %v2174 = vand.u32 %v1268, 4294901760
    %2175 = vmatpush.msra.mxu0 %v2174
    %v2176 = vand.u32 %v1264, 4294901760
    %2177 = vmatpush.msra.mxu0 %v2176
    %v2178 = vand.u32 %v1260, 4294901760
    %2179 = vmatpush.msra.mxu0 %v2178
    %v2180 = vand.u32 %v1256, 4294901760
    %2181 = vmatpush.msra.mxu0 %v2180
    %v2182 = vand.u32 %v1252, 4294901760
    %2183 = vmatpush.msra.mxu0 %v2182
    %v2184 = vand.u32 %v2115, 4294901760
    %v2185 = vsub.f32 %v2115, %v2184
    %v2186 = vand.u32 %v2185, 4294901760
    %v2187 = vsub.f32 %v2185, %v2186
    %v2188 = vand.u32 %v2187, 4294901760
    %2189 = vmatmul.f32.gmra.mxu0 %v2188
    %v2190 = vpop.f32.mrf.mxu0
    %v2191 = vadd.f32 0.0, %v2190
    %v2192 = vand.u32 %v2118, 4294901760
    %v2193 = vsub.f32 %v2118, %v2192
    %v2194 = vand.u32 %v2193, 4294901760
    %v2195 = vsub.f32 %v2193, %v2194
    %v2196 = vand.u32 %v2195, 4294901760
    %2197 = vmatmul.f32.gmra.mxu0 %v2196
    %v2198 = vpop.f32.mrf.mxu0
    %v2199 = vadd.f32 0.0, %v2198
    %v2200 = vand.u32 %v2121, 4294901760
    %v2201 = vsub.f32 %v2121, %v2200
    %v2202 = vand.u32 %v2201, 4294901760
    %v2203 = vsub.f32 %v2201, %v2202
    %v2204 = vand.u32 %v2203, 4294901760
    %2205 = vmatmul.f32.gmra.mxu0 %v2204
    %v2206 = vpop.f32.mrf.mxu0
    %v2207 = vadd.f32 0.0, %v2206
    %v2208 = vand.u32 %v2124, 4294901760
    %v2209 = vsub.f32 %v2124, %v2208
    %v2210 = vand.u32 %v2209, 4294901760
    %v2211 = vsub.f32 %v2209, %v2210
    %v2212 = vand.u32 %v2211, 4294901760
    %2213 = vmatmul.f32.gmra.mxu0 %v2212
    %v2214 = vpop.f32.mrf.mxu0
    %v2215 = vadd.f32 0.0, %v2214
    %v2216 = vand.u32 %v2127, 4294901760
    %v2217 = vsub.f32 %v2127, %v2216
    %v2218 = vand.u32 %v2217, 4294901760
    %v2219 = vsub.f32 %v2217, %v2218
    %v2220 = vand.u32 %v2219, 4294901760
    %2221 = vmatmul.f32.gmra.mxu0 %v2220
    %v2222 = vpop.f32.mrf.mxu0
    %v2223 = vadd.f32 0.0, %v2222
    %v2224 = vand.u32 %v2130, 4294901760
    %v2225 = vsub.f32 %v2130, %v2224
    %v2226 = vand.u32 %v2225, 4294901760
    %v2227 = vsub.f32 %v2225, %v2226
    %v2228 = vand.u32 %v2227, 4294901760
    %2229 = vmatmul.f32.gmra.mxu0 %v2228
    %v2230 = vpop.f32.mrf.mxu0
    %v2231 = vadd.f32 0.0, %v2230
    %v2232 = vand.u32 %v2133, 4294901760
    %v2233 = vsub.f32 %v2133, %v2232
    %v2234 = vand.u32 %v2233, 4294901760
    %v2235 = vsub.f32 %v2233, %v2234
    %v2236 = vand.u32 %v2235, 4294901760
    %2237 = vmatmul.f32.gmra.mxu0 %v2236
    %v2238 = vpop.f32.mrf.mxu0
    %v2239 = vadd.f32 0.0, %v2238
    %v2240 = vand.u32 %v2136, 4294901760
    %v2241 = vsub.f32 %v2136, %v2240
    %v2242 = vand.u32 %v2241, 4294901760
    %v2243 = vsub.f32 %v2241, %v2242
    %v2244 = vand.u32 %v2243, 4294901760
    %2245 = vmatmul.f32.gmra.mxu0 %v2244
    %v2246 = vpop.f32.mrf.mxu0
    %v2247 = vadd.f32 0.0, %v2246
    %v2248 = vand.u32 %v2139, 4294901760
    %v2249 = vsub.f32 %v2139, %v2248
    %v2250 = vand.u32 %v2249, 4294901760
    %v2251 = vsub.f32 %v2249, %v2250
    %v2252 = vand.u32 %v2251, 4294901760
    %2253 = vmatmul.f32.gmra.mxu0 %v2252
    %v2254 = vpop.f32.mrf.mxu0
    %v2255 = vadd.f32 0.0, %v2254
    %v2256 = vand.u32 %v2142, 4294901760
    %v2257 = vsub.f32 %v2142, %v2256
    %v2258 = vand.u32 %v2257, 4294901760
    %v2259 = vsub.f32 %v2257, %v2258
    %v2260 = vand.u32 %v2259, 4294901760
    %2261 = vmatmul.f32.gmra.mxu0 %v2260
    %v2262 = vpop.f32.mrf.mxu0
    %v2263 = vadd.f32 0.0, %v2262
    %v2264 = vand.u32 %v2145, 4294901760
    %v2265 = vsub.f32 %v2145, %v2264
    %v2266 = vand.u32 %v2265, 4294901760
    %v2267 = vsub.f32 %v2265, %v2266
    %v2268 = vand.u32 %v2267, 4294901760
    %2269 = vmatmul.f32.gmra.mxu0 %v2268
    %v2270 = vpop.f32.mrf.mxu0
    %v2271 = vadd.f32 0.0, %v2270
    %v2272 = vand.u32 %v2148, 4294901760
    %v2273 = vsub.f32 %v2148, %v2272
    %v2274 = vand.u32 %v2273, 4294901760
    %v2275 = vsub.f32 %v2273, %v2274
    %v2276 = vand.u32 %v2275, 4294901760
    %2277 = vmatmul.f32.gmra.mxu0 %v2276
    %v2278 = vpop.f32.mrf.mxu0
    %v2279 = vadd.f32 0.0, %v2278
    %v2280 = vand.u32 %v2151, 4294901760
    %v2281 = vsub.f32 %v2151, %v2280
    %v2282 = vand.u32 %v2281, 4294901760
    %v2283 = vsub.f32 %v2281, %v2282
    %v2284 = vand.u32 %v2283, 4294901760
    %2285 = vmatmul.f32.gmra.mxu0 %v2284
    %v2286 = vpop.f32.mrf.mxu0
    %v2287 = vadd.f32 0.0, %v2286
    %v2288 = vand.u32 %v2154, 4294901760
    %v2289 = vsub.f32 %v2154, %v2288
    %v2290 = vand.u32 %v2289, 4294901760
    %v2291 = vsub.f32 %v2289, %v2290
    %v2292 = vand.u32 %v2291, 4294901760
    %2293 = vmatmul.f32.gmra.mxu0 %v2292
    %v2294 = vpop.f32.mrf.mxu0
    %v2295 = vadd.f32 0.0, %v2294
    %v2296 = vand.u32 %v2157, 4294901760
    %v2297 = vsub.f32 %v2157, %v2296
    %v2298 = vand.u32 %v2297, 4294901760
    %v2299 = vsub.f32 %v2297, %v2298
    %v2300 = vand.u32 %v2299, 4294901760
    %2301 = vmatmul.f32.gmra.mxu0 %v2300
    %v2302 = vpop.f32.mrf.mxu0
    %v2303 = vadd.f32 0.0, %v2302
    %v2304 = vand.u32 %v2160, 4294901760
    %v2305 = vsub.f32 %v2160, %v2304
    %v2306 = vand.u32 %v2305, 4294901760
    %v2307 = vsub.f32 %v2305, %v2306
    %v2308 = vand.u32 %v2307, 4294901760
    %2309 = vmatmul.f32.gmra.mxu0 %v2308
    %v2310 = vpop.f32.mrf.mxu0
    %v2311 = vadd.f32 0.0, %v2310
    %2312 = vdwg.mxu0
    %2313 = vmatpush.msra.mxu0 0.0
    %2314 = vmatpush.msra.mxu0 0.0
    %2315 = vmatpush.msra.mxu0 0.0
    %2316 = vmatpush.msra.mxu0 0.0
    %2317 = vmatpush.msra.mxu0 0.0
    %2318 = vmatpush.msra.mxu0 0.0
    %2319 = vmatpush.msra.mxu0 0.0
    %2320 = vmatpush.msra.mxu0 0.0
    %2321 = vmatpush.msra.mxu0 0.0
    %2322 = vmatpush.msra.mxu0 0.0
    %v2323 = vand.u32 %v1272, 4294901760
    %v2324 = vsub.f32 %v1272, %v2323
    %v2325 = vand.u32 %v2324, 4294901760
    %v2326 = vsub.f32 %v2324, %v2325
    %v2327 = vand.u32 %v2326, 4294901760
    %2328 = vmatpush.msra.mxu0 %v2327
    %v2329 = vand.u32 %v1268, 4294901760
    %v2330 = vsub.f32 %v1268, %v2329
    %v2331 = vand.u32 %v2330, 4294901760
    %v2332 = vsub.f32 %v2330, %v2331
    %v2333 = vand.u32 %v2332, 4294901760
    %2334 = vmatpush.msra.mxu0 %v2333
    %v2335 = vand.u32 %v1264, 4294901760
    %v2336 = vsub.f32 %v1264, %v2335
    %v2337 = vand.u32 %v2336, 4294901760
    %v2338 = vsub.f32 %v2336, %v2337
    %v2339 = vand.u32 %v2338, 4294901760
    %2340 = vmatpush.msra.mxu0 %v2339
    %v2341 = vand.u32 %v1260, 4294901760
    %v2342 = vsub.f32 %v1260, %v2341
    %v2343 = vand.u32 %v2342, 4294901760
    %v2344 = vsub.f32 %v2342, %v2343
    %v2345 = vand.u32 %v2344, 4294901760
    %2346 = vmatpush.msra.mxu0 %v2345
    %v2347 = vand.u32 %v1256, 4294901760
    %v2348 = vsub.f32 %v1256, %v2347
    %v2349 = vand.u32 %v2348, 4294901760
    %v2350 = vsub.f32 %v2348, %v2349
    %v2351 = vand.u32 %v2350, 4294901760
    %2352 = vmatpush.msra.mxu0 %v2351
    %v2353 = vand.u32 %v1252, 4294901760
    %v2354 = vsub.f32 %v1252, %v2353
    %v2355 = vand.u32 %v2354, 4294901760
    %v2356 = vsub.f32 %v2354, %v2355
    %v2357 = vand.u32 %v2356, 4294901760
    %2358 = vmatpush.msra.mxu0 %v2357
    %v2359 = vand.u32 %v2115, 4294901760
    %2360 = vmatmul.f32.gmra.mxu0 %v2359
    %v2361 = vpop.f32.mrf.mxu0
    %v2362 = vadd.f32 %v2191, %v2361
    %v2363 = vand.u32 %v2118, 4294901760
    %2364 = vmatmul.f32.gmra.mxu0 %v2363
    %v2365 = vpop.f32.mrf.mxu0
    %v2366 = vadd.f32 %v2199, %v2365
    %v2367 = vand.u32 %v2121, 4294901760
    %2368 = vmatmul.f32.gmra.mxu0 %v2367
    %v2369 = vpop.f32.mrf.mxu0
    %v2370 = vadd.f32 %v2207, %v2369
    %v2371 = vand.u32 %v2124, 4294901760
    %2372 = vmatmul.f32.gmra.mxu0 %v2371
    %v2373 = vpop.f32.mrf.mxu0
    %v2374 = vadd.f32 %v2215, %v2373
    %v2375 = vand.u32 %v2127, 4294901760
    %2376 = vmatmul.f32.gmra.mxu0 %v2375
    %v2377 = vpop.f32.mrf.mxu0
    %v2378 = vadd.f32 %v2223, %v2377
    %v2379 = vand.u32 %v2130, 4294901760
    %2380 = vmatmul.f32.gmra.mxu0 %v2379
    %v2381 = vpop.f32.mrf.mxu0
    %v2382 = vadd.f32 %v2231, %v2381
    %v2383 = vand.u32 %v2133, 4294901760
    %2384 = vmatmul.f32.gmra.mxu0 %v2383
    %v2385 = vpop.f32.mrf.mxu0
    %v2386 = vadd.f32 %v2239, %v2385
    %v2387 = vand.u32 %v2136, 4294901760
    %2388 = vmatmul.f32.gmra.mxu0 %v2387
    %v2389 = vpop.f32.mrf.mxu0
    %v2390 = vadd.f32 %v2247, %v2389
    %v2391 = vand.u32 %v2139, 4294901760
    %2392 = vmatmul.f32.gmra.mxu0 %v2391
    %v2393 = vpop.f32.mrf.mxu0
    %v2394 = vadd.f32 %v2255, %v2393
    %v2395 = vand.u32 %v2142, 4294901760
    %2396 = vmatmul.f32.gmra.mxu0 %v2395
    %v2397 = vpop.f32.mrf.mxu0
    %v2398 = vadd.f32 %v2263, %v2397
    %v2399 = vand.u32 %v2145, 4294901760
    %2400 = vmatmul.f32.gmra.mxu0 %v2399
    %v2401 = vpop.f32.mrf.mxu0
    %v2402 = vadd.f32 %v2271, %v2401
    %v2403 = vand.u32 %v2148, 4294901760
    %2404 = vmatmul.f32.gmra.mxu0 %v2403
    %v2405 = vpop.f32.mrf.mxu0
    %v2406 = vadd.f32 %v2279, %v2405
    %v2407 = vand.u32 %v2151, 4294901760
    %2408 = vmatmul.f32.gmra.mxu0 %v2407
    %v2409 = vpop.f32.mrf.mxu0
    %v2410 = vadd.f32 %v2287, %v2409
    %v2411 = vand.u32 %v2154, 4294901760
    %2412 = vmatmul.f32.gmra.mxu0 %v2411
    %v2413 = vpop.f32.mrf.mxu0
    %v2414 = vadd.f32 %v2295, %v2413
    %v2415 = vand.u32 %v2157, 4294901760
    %2416 = vmatmul.f32.gmra.mxu0 %v2415
    %v2417 = vpop.f32.mrf.mxu0
    %v2418 = vadd.f32 %v2303, %v2417
    %v2419 = vand.u32 %v2160, 4294901760
    %2420 = vmatmul.f32.gmra.mxu0 %v2419
    %v2421 = vpop.f32.mrf.mxu0
    %v2422 = vadd.f32 %v2311, %v2421
    %2423 = vdwg.mxu0
    %2424 = vmatpush.msra.mxu0 0.0
    %2425 = vmatpush.msra.mxu0 0.0
    %2426 = vmatpush.msra.mxu0 0.0
    %2427 = vmatpush.msra.mxu0 0.0
    %2428 = vmatpush.msra.mxu0 0.0
    %2429 = vmatpush.msra.mxu0 0.0
    %2430 = vmatpush.msra.mxu0 0.0
    %2431 = vmatpush.msra.mxu0 0.0
    %2432 = vmatpush.msra.mxu0 0.0
    %2433 = vmatpush.msra.mxu0 0.0
    %v2434 = vand.u32 %v1272, 4294901760
    %v2435 = vsub.f32 %v1272, %v2434
    %2436 = vmatpush.msra.mxu0 %v2435
    %v2437 = vand.u32 %v1268, 4294901760
    %v2438 = vsub.f32 %v1268, %v2437
    %2439 = vmatpush.msra.mxu0 %v2438
    %v2440 = vand.u32 %v1264, 4294901760
    %v2441 = vsub.f32 %v1264, %v2440
    %2442 = vmatpush.msra.mxu0 %v2441
    %v2443 = vand.u32 %v1260, 4294901760
    %v2444 = vsub.f32 %v1260, %v2443
    %2445 = vmatpush.msra.mxu0 %v2444
    %v2446 = vand.u32 %v1256, 4294901760
    %v2447 = vsub.f32 %v1256, %v2446
    %2448 = vmatpush.msra.mxu0 %v2447
    %v2449 = vand.u32 %v1252, 4294901760
    %v2450 = vsub.f32 %v1252, %v2449
    %2451 = vmatpush.msra.mxu0 %v2450
    %v2452 = vand.u32 %v2115, 4294901760
    %v2453 = vsub.f32 %v2115, %v2452
    %2454 = vmatmul.f32.gmra.mxu0 %v2453
    %v2455 = vpop.f32.mrf.mxu0
    %v2456 = vadd.f32 %v2362, %v2455
    %v2457 = vand.u32 %v2118, 4294901760
    %v2458 = vsub.f32 %v2118, %v2457
    %2459 = vmatmul.f32.gmra.mxu0 %v2458
    %v2460 = vpop.f32.mrf.mxu0
    %v2461 = vadd.f32 %v2366, %v2460
    %v2462 = vand.u32 %v2121, 4294901760
    %v2463 = vsub.f32 %v2121, %v2462
    %2464 = vmatmul.f32.gmra.mxu0 %v2463
    %v2465 = vpop.f32.mrf.mxu0
    %v2466 = vadd.f32 %v2370, %v2465
    %v2467 = vand.u32 %v2124, 4294901760
    %v2468 = vsub.f32 %v2124, %v2467
    %2469 = vmatmul.f32.gmra.mxu0 %v2468
    %v2470 = vpop.f32.mrf.mxu0
    %v2471 = vadd.f32 %v2374, %v2470
    %v2472 = vand.u32 %v2127, 4294901760
    %v2473 = vsub.f32 %v2127, %v2472
    %2474 = vmatmul.f32.gmra.mxu0 %v2473
    %v2475 = vpop.f32.mrf.mxu0
    %v2476 = vadd.f32 %v2378, %v2475
    %v2477 = vand.u32 %v2130, 4294901760
    %v2478 = vsub.f32 %v2130, %v2477
    %2479 = vmatmul.f32.gmra.mxu0 %v2478
    %v2480 = vpop.f32.mrf.mxu0
    %v2481 = vadd.f32 %v2382, %v2480
    %v2482 = vand.u32 %v2133, 4294901760
    %v2483 = vsub.f32 %v2133, %v2482
    %2484 = vmatmul.f32.gmra.mxu0 %v2483
    %v2485 = vpop.f32.mrf.mxu0
    %v2486 = vadd.f32 %v2386, %v2485
    %v2487 = vand.u32 %v2136, 4294901760
    %v2488 = vsub.f32 %v2136, %v2487
    %2489 = vmatmul.f32.gmra.mxu0 %v2488
    %v2490 = vpop.f32.mrf.mxu0
    %v2491 = vadd.f32 %v2390, %v2490
    %v2492 = vand.u32 %v2139, 4294901760
    %v2493 = vsub.f32 %v2139, %v2492
    %2494 = vmatmul.f32.gmra.mxu0 %v2493
    %v2495 = vpop.f32.mrf.mxu0
    %v2496 = vadd.f32 %v2394, %v2495
    %v2497 = vand.u32 %v2142, 4294901760
    %v2498 = vsub.f32 %v2142, %v2497
    %2499 = vmatmul.f32.gmra.mxu0 %v2498
    %v2500 = vpop.f32.mrf.mxu0
    %v2501 = vadd.f32 %v2398, %v2500
    %v2502 = vand.u32 %v2145, 4294901760
    %v2503 = vsub.f32 %v2145, %v2502
    %2504 = vmatmul.f32.gmra.mxu0 %v2503
    %v2505 = vpop.f32.mrf.mxu0
    %v2506 = vadd.f32 %v2402, %v2505
    %v2507 = vand.u32 %v2148, 4294901760
    %v2508 = vsub.f32 %v2148, %v2507
    %2509 = vmatmul.f32.gmra.mxu0 %v2508
    %v2510 = vpop.f32.mrf.mxu0
    %v2511 = vadd.f32 %v2406, %v2510
    %v2512 = vand.u32 %v2151, 4294901760
    %v2513 = vsub.f32 %v2151, %v2512
    %2514 = vmatmul.f32.gmra.mxu0 %v2513
    %v2515 = vpop.f32.mrf.mxu0
    %v2516 = vadd.f32 %v2410, %v2515
    %v2517 = vand.u32 %v2154, 4294901760
    %v2518 = vsub.f32 %v2154, %v2517
    %2519 = vmatmul.f32.gmra.mxu0 %v2518
    %v2520 = vpop.f32.mrf.mxu0
    %v2521 = vadd.f32 %v2414, %v2520
    %v2522 = vand.u32 %v2157, 4294901760
    %v2523 = vsub.f32 %v2157, %v2522
    %2524 = vmatmul.f32.gmra.mxu0 %v2523
    %v2525 = vpop.f32.mrf.mxu0
    %v2526 = vadd.f32 %v2418, %v2525
    %v2527 = vand.u32 %v2160, 4294901760
    %v2528 = vsub.f32 %v2160, %v2527
    %2529 = vmatmul.f32.gmra.mxu0 %v2528
    %v2530 = vpop.f32.mrf.mxu0
    %v2531 = vadd.f32 %v2422, %v2530
    %2532 = vdwg.mxu0
    %2533 = vmatpush.msra.mxu0 0.0
    %2534 = vmatpush.msra.mxu0 0.0
    %2535 = vmatpush.msra.mxu0 0.0
    %2536 = vmatpush.msra.mxu0 0.0
    %2537 = vmatpush.msra.mxu0 0.0
    %2538 = vmatpush.msra.mxu0 0.0
    %2539 = vmatpush.msra.mxu0 0.0
    %2540 = vmatpush.msra.mxu0 0.0
    %2541 = vmatpush.msra.mxu0 0.0
    %2542 = vmatpush.msra.mxu0 0.0
    %v2543 = vand.u32 %v1272, 4294901760
    %2544 = vmatpush.msra.mxu0 %v2543
    %v2545 = vand.u32 %v1268, 4294901760
    %2546 = vmatpush.msra.mxu0 %v2545
    %v2547 = vand.u32 %v1264, 4294901760
    %2548 = vmatpush.msra.mxu0 %v2547
    %v2549 = vand.u32 %v1260, 4294901760
    %2550 = vmatpush.msra.mxu0 %v2549
    %v2551 = vand.u32 %v1256, 4294901760
    %2552 = vmatpush.msra.mxu0 %v2551
    %v2553 = vand.u32 %v1252, 4294901760
    %2554 = vmatpush.msra.mxu0 %v2553
    %v2555 = vand.u32 %v2115, 4294901760
    %v2556 = vsub.f32 %v2115, %v2555
    %v2557 = vand.u32 %v2556, 4294901760
    %2558 = vmatmul.f32.gmra.mxu0 %v2557
    %v2559 = vpop.f32.mrf.mxu0
    %v2560 = vadd.f32 %v2456, %v2559
    %v2561 = vand.u32 %v2118, 4294901760
    %v2562 = vsub.f32 %v2118, %v2561
    %v2563 = vand.u32 %v2562, 4294901760
    %2564 = vmatmul.f32.gmra.mxu0 %v2563
    %v2565 = vpop.f32.mrf.mxu0
    %v2566 = vadd.f32 %v2461, %v2565
    %v2567 = vand.u32 %v2121, 4294901760
    %v2568 = vsub.f32 %v2121, %v2567
    %v2569 = vand.u32 %v2568, 4294901760
    %2570 = vmatmul.f32.gmra.mxu0 %v2569
    %v2571 = vpop.f32.mrf.mxu0
    %v2572 = vadd.f32 %v2466, %v2571
    %v2573 = vand.u32 %v2124, 4294901760
    %v2574 = vsub.f32 %v2124, %v2573
    %v2575 = vand.u32 %v2574, 4294901760
    %2576 = vmatmul.f32.gmra.mxu0 %v2575
    %v2577 = vpop.f32.mrf.mxu0
    %v2578 = vadd.f32 %v2471, %v2577
    %v2579 = vand.u32 %v2127, 4294901760
    %v2580 = vsub.f32 %v2127, %v2579
    %v2581 = vand.u32 %v2580, 4294901760
    %2582 = vmatmul.f32.gmra.mxu0 %v2581
    %v2583 = vpop.f32.mrf.mxu0
    %v2584 = vadd.f32 %v2476, %v2583
    %v2585 = vand.u32 %v2130, 4294901760
    %v2586 = vsub.f32 %v2130, %v2585
    %v2587 = vand.u32 %v2586, 4294901760
    %2588 = vmatmul.f32.gmra.mxu0 %v2587
    %v2589 = vpop.f32.mrf.mxu0
    %v2590 = vadd.f32 %v2481, %v2589
    %v2591 = vand.u32 %v2133, 4294901760
    %v2592 = vsub.f32 %v2133, %v2591
    %v2593 = vand.u32 %v2592, 4294901760
    %2594 = vmatmul.f32.gmra.mxu0 %v2593
    %v2595 = vpop.f32.mrf.mxu0
    %v2596 = vadd.f32 %v2486, %v2595
    %v2597 = vand.u32 %v2136, 4294901760
    %v2598 = vsub.f32 %v2136, %v2597
    %v2599 = vand.u32 %v2598, 4294901760
    %2600 = vmatmul.f32.gmra.mxu0 %v2599
    %v2601 = vpop.f32.mrf.mxu0
    %v2602 = vadd.f32 %v2491, %v2601
    %v2603 = vand.u32 %v2139, 4294901760
    %v2604 = vsub.f32 %v2139, %v2603
    %v2605 = vand.u32 %v2604, 4294901760
    %2606 = vmatmul.f32.gmra.mxu0 %v2605
    %v2607 = vpop.f32.mrf.mxu0
    %v2608 = vadd.f32 %v2496, %v2607
    %v2609 = vand.u32 %v2142, 4294901760
    %v2610 = vsub.f32 %v2142, %v2609
    %v2611 = vand.u32 %v2610, 4294901760
    %2612 = vmatmul.f32.gmra.mxu0 %v2611
    %v2613 = vpop.f32.mrf.mxu0
    %v2614 = vadd.f32 %v2501, %v2613
    %v2615 = vand.u32 %v2145, 4294901760
    %v2616 = vsub.f32 %v2145, %v2615
    %v2617 = vand.u32 %v2616, 4294901760
    %2618 = vmatmul.f32.gmra.mxu0 %v2617
    %v2619 = vpop.f32.mrf.mxu0
    %v2620 = vadd.f32 %v2506, %v2619
    %v2621 = vand.u32 %v2148, 4294901760
    %v2622 = vsub.f32 %v2148, %v2621
    %v2623 = vand.u32 %v2622, 4294901760
    %2624 = vmatmul.f32.gmra.mxu0 %v2623
    %v2625 = vpop.f32.mrf.mxu0
    %v2626 = vadd.f32 %v2511, %v2625
    %v2627 = vand.u32 %v2151, 4294901760
    %v2628 = vsub.f32 %v2151, %v2627
    %v2629 = vand.u32 %v2628, 4294901760
    %2630 = vmatmul.f32.gmra.mxu0 %v2629
    %v2631 = vpop.f32.mrf.mxu0
    %v2632 = vadd.f32 %v2516, %v2631
    %v2633 = vand.u32 %v2154, 4294901760
    %v2634 = vsub.f32 %v2154, %v2633
    %v2635 = vand.u32 %v2634, 4294901760
    %2636 = vmatmul.f32.gmra.mxu0 %v2635
    %v2637 = vpop.f32.mrf.mxu0
    %v2638 = vadd.f32 %v2521, %v2637
    %v2639 = vand.u32 %v2157, 4294901760
    %v2640 = vsub.f32 %v2157, %v2639
    %v2641 = vand.u32 %v2640, 4294901760
    %2642 = vmatmul.f32.gmra.mxu0 %v2641
    %v2643 = vpop.f32.mrf.mxu0
    %v2644 = vadd.f32 %v2526, %v2643
    %v2645 = vand.u32 %v2160, 4294901760
    %v2646 = vsub.f32 %v2160, %v2645
    %v2647 = vand.u32 %v2646, 4294901760
    %2648 = vmatmul.f32.gmra.mxu0 %v2647
    %v2649 = vpop.f32.mrf.mxu0
    %v2650 = vadd.f32 %v2531, %v2649
    %2651 = vdwg.mxu0
    %2652 = vmatpush.msra.mxu0 0.0
    %2653 = vmatpush.msra.mxu0 0.0
    %2654 = vmatpush.msra.mxu0 0.0
    %2655 = vmatpush.msra.mxu0 0.0
    %2656 = vmatpush.msra.mxu0 0.0
    %2657 = vmatpush.msra.mxu0 0.0
    %2658 = vmatpush.msra.mxu0 0.0
    %2659 = vmatpush.msra.mxu0 0.0
    %2660 = vmatpush.msra.mxu0 0.0
    %2661 = vmatpush.msra.mxu0 0.0
    %v2662 = vand.u32 %v1272, 4294901760
    %v2663 = vsub.f32 %v1272, %v2662
    %v2664 = vand.u32 %v2663, 4294901760
    %2665 = vmatpush.msra.mxu0 %v2664
    %v2666 = vand.u32 %v1268, 4294901760
    %v2667 = vsub.f32 %v1268, %v2666
    %v2668 = vand.u32 %v2667, 4294901760
    %2669 = vmatpush.msra.mxu0 %v2668
    %v2670 = vand.u32 %v1264, 4294901760
    %v2671 = vsub.f32 %v1264, %v2670
    %v2672 = vand.u32 %v2671, 4294901760
    %2673 = vmatpush.msra.mxu0 %v2672
    %v2674 = vand.u32 %v1260, 4294901760
    %v2675 = vsub.f32 %v1260, %v2674
    %v2676 = vand.u32 %v2675, 4294901760
    %2677 = vmatpush.msra.mxu0 %v2676
    %v2678 = vand.u32 %v1256, 4294901760
    %v2679 = vsub.f32 %v1256, %v2678
    %v2680 = vand.u32 %v2679, 4294901760
    %2681 = vmatpush.msra.mxu0 %v2680
    %v2682 = vand.u32 %v1252, 4294901760
    %v2683 = vsub.f32 %v1252, %v2682
    %v2684 = vand.u32 %v2683, 4294901760
    %2685 = vmatpush.msra.mxu0 %v2684
    %v2686 = vand.u32 %v2115, 4294901760
    %2687 = vmatmul.f32.gmra.mxu0 %v2686
    %v2688 = vpop.f32.mrf.mxu0
    %v2689 = vadd.f32 %v2560, %v2688
    %v2690 = vand.u32 %v2118, 4294901760
    %2691 = vmatmul.f32.gmra.mxu0 %v2690
    %v2692 = vpop.f32.mrf.mxu0
    %v2693 = vadd.f32 %v2566, %v2692
    %v2694 = vand.u32 %v2121, 4294901760
    %2695 = vmatmul.f32.gmra.mxu0 %v2694
    %v2696 = vpop.f32.mrf.mxu0
    %v2697 = vadd.f32 %v2572, %v2696
    %v2698 = vand.u32 %v2124, 4294901760
    %2699 = vmatmul.f32.gmra.mxu0 %v2698
    %v2700 = vpop.f32.mrf.mxu0
    %v2701 = vadd.f32 %v2578, %v2700
    %v2702 = vand.u32 %v2127, 4294901760
    %2703 = vmatmul.f32.gmra.mxu0 %v2702
    %v2704 = vpop.f32.mrf.mxu0
    %v2705 = vadd.f32 %v2584, %v2704
    %v2706 = vand.u32 %v2130, 4294901760
    %2707 = vmatmul.f32.gmra.mxu0 %v2706
    %v2708 = vpop.f32.mrf.mxu0
    %v2709 = vadd.f32 %v2590, %v2708
    %v2710 = vand.u32 %v2133, 4294901760
    %2711 = vmatmul.f32.gmra.mxu0 %v2710
    %v2712 = vpop.f32.mrf.mxu0
    %v2713 = vadd.f32 %v2596, %v2712
    %v2714 = vand.u32 %v2136, 4294901760
    %2715 = vmatmul.f32.gmra.mxu0 %v2714
    %v2716 = vpop.f32.mrf.mxu0
    %v2717 = vadd.f32 %v2602, %v2716
    %v2718 = vand.u32 %v2139, 4294901760
    %2719 = vmatmul.f32.gmra.mxu0 %v2718
    %v2720 = vpop.f32.mrf.mxu0
    %v2721 = vadd.f32 %v2608, %v2720
    %v2722 = vand.u32 %v2142, 4294901760
    %2723 = vmatmul.f32.gmra.mxu0 %v2722
    %v2724 = vpop.f32.mrf.mxu0
    %v2725 = vadd.f32 %v2614, %v2724
    %v2726 = vand.u32 %v2145, 4294901760
    %2727 = vmatmul.f32.gmra.mxu0 %v2726
    %v2728 = vpop.f32.mrf.mxu0
    %v2729 = vadd.f32 %v2620, %v2728
    %v2730 = vand.u32 %v2148, 4294901760
    %2731 = vmatmul.f32.gmra.mxu0 %v2730
    %v2732 = vpop.f32.mrf.mxu0
    %v2733 = vadd.f32 %v2626, %v2732
    %v2734 = vand.u32 %v2151, 4294901760
    %2735 = vmatmul.f32.gmra.mxu0 %v2734
    %v2736 = vpop.f32.mrf.mxu0
    %v2737 = vadd.f32 %v2632, %v2736
    %v2738 = vand.u32 %v2154, 4294901760
    %2739 = vmatmul.f32.gmra.mxu0 %v2738
    %v2740 = vpop.f32.mrf.mxu0
    %v2741 = vadd.f32 %v2638, %v2740
    %v2742 = vand.u32 %v2157, 4294901760
    %2743 = vmatmul.f32.gmra.mxu0 %v2742
    %v2744 = vpop.f32.mrf.mxu0
    %v2745 = vadd.f32 %v2644, %v2744
    %v2746 = vand.u32 %v2160, 4294901760
    %2747 = vmatmul.f32.gmra.mxu0 %v2746
    %v2748 = vpop.f32.mrf.mxu0
    %v2749 = vadd.f32 %v2650, %v2748
    %2750 = vdwg.mxu0
    %2751 = vmatpush.msra.mxu0 0.0
    %2752 = vmatpush.msra.mxu0 0.0
    %2753 = vmatpush.msra.mxu0 0.0
    %2754 = vmatpush.msra.mxu0 0.0
    %2755 = vmatpush.msra.mxu0 0.0
    %2756 = vmatpush.msra.mxu0 0.0
    %2757 = vmatpush.msra.mxu0 0.0
    %2758 = vmatpush.msra.mxu0 0.0
    %2759 = vmatpush.msra.mxu0 0.0
    %2760 = vmatpush.msra.mxu0 0.0
    %v2761 = vand.u32 %v1272, 4294901760
    %2762 = vmatpush.msra.mxu0 %v2761
    %v2763 = vand.u32 %v1268, 4294901760
    %2764 = vmatpush.msra.mxu0 %v2763
    %v2765 = vand.u32 %v1264, 4294901760
    %2766 = vmatpush.msra.mxu0 %v2765
    %v2767 = vand.u32 %v1260, 4294901760
    %2768 = vmatpush.msra.mxu0 %v2767
    %v2769 = vand.u32 %v1256, 4294901760
    %2770 = vmatpush.msra.mxu0 %v2769
    %v2771 = vand.u32 %v1252, 4294901760
    %2772 = vmatpush.msra.mxu0 %v2771
    %v2773 = vand.u32 %v2115, 4294901760
    %2774 = vmatmul.f32.gmra.mxu0 %v2773
    %v2775 = vpop.f32.mrf.mxu0
    %v2776 = vadd.f32 %v2689, %v2775
    %v2777 = vand.u32 %v2118, 4294901760
    %2778 = vmatmul.f32.gmra.mxu0 %v2777
    %v2779 = vpop.f32.mrf.mxu0
    %v2780 = vadd.f32 %v2693, %v2779
    %v2781 = vand.u32 %v2121, 4294901760
    %2782 = vmatmul.f32.gmra.mxu0 %v2781
    %v2783 = vpop.f32.mrf.mxu0
    %v2784 = vadd.f32 %v2697, %v2783
    %v2785 = vand.u32 %v2124, 4294901760
    %2786 = vmatmul.f32.gmra.mxu0 %v2785
    %v2787 = vpop.f32.mrf.mxu0
    %v2788 = vadd.f32 %v2701, %v2787
    %v2789 = vand.u32 %v2127, 4294901760
    %2790 = vmatmul.f32.gmra.mxu0 %v2789
    %v2791 = vpop.f32.mrf.mxu0
    %v2792 = vadd.f32 %v2705, %v2791
    %v2793 = vand.u32 %v2130, 4294901760
    %2794 = vmatmul.f32.gmra.mxu0 %v2793
    %v2795 = vpop.f32.mrf.mxu0
    %v2796 = vadd.f32 %v2709, %v2795
    %v2797 = vand.u32 %v2133, 4294901760
    %2798 = vmatmul.f32.gmra.mxu0 %v2797
    %v2799 = vpop.f32.mrf.mxu0
    %v2800 = vadd.f32 %v2713, %v2799
    %v2801 = vand.u32 %v2136, 4294901760
    %2802 = vmatmul.f32.gmra.mxu0 %v2801
    %v2803 = vpop.f32.mrf.mxu0
    %v2804 = vadd.f32 %v2717, %v2803
    %v2805 = vand.u32 %v2139, 4294901760
    %2806 = vmatmul.f32.gmra.mxu0 %v2805
    %v2807 = vpop.f32.mrf.mxu0
    %v2808 = vadd.f32 %v2721, %v2807
    %v2809 = vand.u32 %v2142, 4294901760
    %2810 = vmatmul.f32.gmra.mxu0 %v2809
    %v2811 = vpop.f32.mrf.mxu0
    %v2812 = vadd.f32 %v2725, %v2811
    %v2813 = vand.u32 %v2145, 4294901760
    %2814 = vmatmul.f32.gmra.mxu0 %v2813
    %v2815 = vpop.f32.mrf.mxu0
    %v2816 = vadd.f32 %v2729, %v2815
    %v2817 = vand.u32 %v2148, 4294901760
    %2818 = vmatmul.f32.gmra.mxu0 %v2817
    %v2819 = vpop.f32.mrf.mxu0
    %v2820 = vadd.f32 %v2733, %v2819
    %v2821 = vand.u32 %v2151, 4294901760
    %2822 = vmatmul.f32.gmra.mxu0 %v2821
    %v2823 = vpop.f32.mrf.mxu0
    %v2824 = vadd.f32 %v2737, %v2823
    %v2825 = vand.u32 %v2154, 4294901760
    %2826 = vmatmul.f32.gmra.mxu0 %v2825
    %v2827 = vpop.f32.mrf.mxu0
    %v2828 = vadd.f32 %v2741, %v2827
    %v2829 = vand.u32 %v2157, 4294901760
    %2830 = vmatmul.f32.gmra.mxu0 %v2829
    %v2831 = vpop.f32.mrf.mxu0
    %v2832 = vadd.f32 %v2745, %v2831
    %v2833 = vand.u32 %v2160, 4294901760
    %2834 = vmatmul.f32.gmra.mxu0 %v2833
    %v2835 = vpop.f32.mrf.mxu0
    %v2836 = vadd.f32 %v2749, %v2835
    %2837 = vdwg.mxu0
    %v2838 = vld [vmem:[%s8] sm:$0xff]
    %v2839 = vld [vmem:[%s8 + $0x8] sm:$0xff]
    %v2840 = vmul.f32 %v2035, %v2776
    %v2841 = vmul.f32 %v2039, %v2780
    %v2842 = vmul.f32 %v2043, %v2784
    %v2843 = vmul.f32 %v2047, %v2788
    %v2844 = vmul.f32 %v2051, %v2792
    %v2845 = vmul.f32 %v2055, %v2796
    %v2846 = vmul.f32 %v2059, %v2800
    %v2847 = vmul.f32 %v2063, %v2804
    %v2848 = vmul.f32 %v2067, %v2808
    %v2849 = vmul.f32 %v2071, %v2812
    %v2850 = vmul.f32 %v2075, %v2816
    %v2851 = vmul.f32 %v2079, %v2820
    %v2852 = vmul.f32 %v2083, %v2824
    %v2853 = vmul.f32 %v2087, %v2828
    %v2854 = vmul.f32 %v2091, %v2832
    %v2855 = vmul.f32 %v2095, %v2836
    %v2856 = vand.u32 %v2855, 4294901760
    %2857 = vmatpush.msra.mxu0 %v2856
    %v2858 = vand.u32 %v2854, 4294901760
    %2859 = vmatpush.msra.mxu0 %v2858
    %v2860 = vand.u32 %v2853, 4294901760
    %2861 = vmatpush.msra.mxu0 %v2860
    %v2862 = vand.u32 %v2852, 4294901760
    %2863 = vmatpush.msra.mxu0 %v2862
    %v2864 = vand.u32 %v2851, 4294901760
    %2865 = vmatpush.msra.mxu0 %v2864
    %v2866 = vand.u32 %v2850, 4294901760
    %2867 = vmatpush.msra.mxu0 %v2866
    %v2868 = vand.u32 %v2849, 4294901760
    %2869 = vmatpush.msra.mxu0 %v2868
    %v2870 = vand.u32 %v2848, 4294901760
    %2871 = vmatpush.msra.mxu0 %v2870
    %v2872 = vand.u32 %v2847, 4294901760
    %2873 = vmatpush.msra.mxu0 %v2872
    %v2874 = vand.u32 %v2846, 4294901760
    %2875 = vmatpush.msra.mxu0 %v2874
    %v2876 = vand.u32 %v2845, 4294901760
    %2877 = vmatpush.msra.mxu0 %v2876
    %v2878 = vand.u32 %v2844, 4294901760
    %2879 = vmatpush.msra.mxu0 %v2878
    %v2880 = vand.u32 %v2843, 4294901760
    %2881 = vmatpush.msra.mxu0 %v2880
    %v2882 = vand.u32 %v2842, 4294901760
    %2883 = vmatpush.msra.mxu0 %v2882
    %v2884 = vand.u32 %v2841, 4294901760
    %2885 = vmatpush.msra.mxu0 %v2884
    %v2886 = vand.u32 %v2840, 4294901760
    %2887 = vmatpush.msra.mxu0 %v2886
    %v2888 = vand.u32 %v2838, 4294901760
    %v2889 = vsub.f32 %v2838, %v2888
    %v2890 = vand.u32 %v2889, 4294901760
    %v2891 = vsub.f32 %v2889, %v2890
    %v2892 = vand.u32 %v2891, 4294901760
    %2893 = vmatmul.f32.gmra.mxu0 %v2892
    %v2894 = vpop.f32.mrf.mxu0
    %v2895 = vadd.f32 0.0, %v2894
    %v2896 = vand.u32 %v2839, 4294901760
    %v2897 = vsub.f32 %v2839, %v2896
    %v2898 = vand.u32 %v2897, 4294901760
    %v2899 = vsub.f32 %v2897, %v2898
    %v2900 = vand.u32 %v2899, 4294901760
    %2901 = vmatmul.f32.gmra.mxu0 %v2900
    %v2902 = vpop.f32.mrf.mxu0
    %v2903 = vadd.f32 0.0, %v2902
    %2904 = vdwg.mxu0
    %v2905 = vand.u32 %v2855, 4294901760
    %v2906 = vsub.f32 %v2855, %v2905
    %v2907 = vand.u32 %v2906, 4294901760
    %v2908 = vsub.f32 %v2906, %v2907
    %v2909 = vand.u32 %v2908, 4294901760
    %2910 = vmatpush.msra.mxu0 %v2909
    %v2911 = vand.u32 %v2854, 4294901760
    %v2912 = vsub.f32 %v2854, %v2911
    %v2913 = vand.u32 %v2912, 4294901760
    %v2914 = vsub.f32 %v2912, %v2913
    %v2915 = vand.u32 %v2914, 4294901760
    %2916 = vmatpush.msra.mxu0 %v2915
    %v2917 = vand.u32 %v2853, 4294901760
    %v2918 = vsub.f32 %v2853, %v2917
    %v2919 = vand.u32 %v2918, 4294901760
    %v2920 = vsub.f32 %v2918, %v2919
    %v2921 = vand.u32 %v2920, 4294901760
    %2922 = vmatpush.msra.mxu0 %v2921
    %v2923 = vand.u32 %v2852, 4294901760
    %v2924 = vsub.f32 %v2852, %v2923
    %v2925 = vand.u32 %v2924, 4294901760
    %v2926 = vsub.f32 %v2924, %v2925
    %v2927 = vand.u32 %v2926, 4294901760
    %2928 = vmatpush.msra.mxu0 %v2927
    %v2929 = vand.u32 %v2851, 4294901760
    %v2930 = vsub.f32 %v2851, %v2929
    %v2931 = vand.u32 %v2930, 4294901760
    %v2932 = vsub.f32 %v2930, %v2931
    %v2933 = vand.u32 %v2932, 4294901760
    %2934 = vmatpush.msra.mxu0 %v2933
    %v2935 = vand.u32 %v2850, 4294901760
    %v2936 = vsub.f32 %v2850, %v2935
    %v2937 = vand.u32 %v2936, 4294901760
    %v2938 = vsub.f32 %v2936, %v2937
    %v2939 = vand.u32 %v2938, 4294901760
    %2940 = vmatpush.msra.mxu0 %v2939
    %v2941 = vand.u32 %v2849, 4294901760
    %v2942 = vsub.f32 %v2849, %v2941
    %v2943 = vand.u32 %v2942, 4294901760
    %v2944 = vsub.f32 %v2942, %v2943
    %v2945 = vand.u32 %v2944, 4294901760
    %2946 = vmatpush.msra.mxu0 %v2945
    %v2947 = vand.u32 %v2848, 4294901760
    %v2948 = vsub.f32 %v2848, %v2947
    %v2949 = vand.u32 %v2948, 4294901760
    %v2950 = vsub.f32 %v2948, %v2949
    %v2951 = vand.u32 %v2950, 4294901760
    %2952 = vmatpush.msra.mxu0 %v2951
    %v2953 = vand.u32 %v2847, 4294901760
    %v2954 = vsub.f32 %v2847, %v2953
    %v2955 = vand.u32 %v2954, 4294901760
    %v2956 = vsub.f32 %v2954, %v2955
    %v2957 = vand.u32 %v2956, 4294901760
    %2958 = vmatpush.msra.mxu0 %v2957
    %v2959 = vand.u32 %v2846, 4294901760
    %v2960 = vsub.f32 %v2846, %v2959
    %v2961 = vand.u32 %v2960, 4294901760
    %v2962 = vsub.f32 %v2960, %v2961
    %v2963 = vand.u32 %v2962, 4294901760
    %2964 = vmatpush.msra.mxu0 %v2963
    %v2965 = vand.u32 %v2845, 4294901760
    %v2966 = vsub.f32 %v2845, %v2965
    %v2967 = vand.u32 %v2966, 4294901760
    %v2968 = vsub.f32 %v2966, %v2967
    %v2969 = vand.u32 %v2968, 4294901760
    %2970 = vmatpush.msra.mxu0 %v2969
    %v2971 = vand.u32 %v2844, 4294901760
    %v2972 = vsub.f32 %v2844, %v2971
    %v2973 = vand.u32 %v2972, 4294901760
    %v2974 = vsub.f32 %v2972, %v2973
    %v2975 = vand.u32 %v2974, 4294901760
    %2976 = vmatpush.msra.mxu0 %v2975
    %v2977 = vand.u32 %v2843, 4294901760
    %v2978 = vsub.f32 %v2843, %v2977
    %v2979 = vand.u32 %v2978, 4294901760
    %v2980 = vsub.f32 %v2978, %v2979
    %v2981 = vand.u32 %v2980, 4294901760
    %2982 = vmatpush.msra.mxu0 %v2981
    %v2983 = vand.u32 %v2842, 4294901760
    %v2984 = vsub.f32 %v2842, %v2983
    %v2985 = vand.u32 %v2984, 4294901760
    %v2986 = vsub.f32 %v2984, %v2985
    %v2987 = vand.u32 %v2986, 4294901760
    %2988 = vmatpush.msra.mxu0 %v2987
    %v2989 = vand.u32 %v2841, 4294901760
    %v2990 = vsub.f32 %v2841, %v2989
    %v2991 = vand.u32 %v2990, 4294901760
    %v2992 = vsub.f32 %v2990, %v2991
    %v2993 = vand.u32 %v2992, 4294901760
    %2994 = vmatpush.msra.mxu0 %v2993
    %v2995 = vand.u32 %v2840, 4294901760
    %v2996 = vsub.f32 %v2840, %v2995
    %v2997 = vand.u32 %v2996, 4294901760
    %v2998 = vsub.f32 %v2996, %v2997
    %v2999 = vand.u32 %v2998, 4294901760
    %3000 = vmatpush.msra.mxu0 %v2999
    %v3001 = vand.u32 %v2838, 4294901760
    %3002 = vmatmul.f32.gmra.mxu0 %v3001
    %v3003 = vpop.f32.mrf.mxu0
    %v3004 = vadd.f32 %v2895, %v3003
    %v3005 = vand.u32 %v2839, 4294901760
    %3006 = vmatmul.f32.gmra.mxu0 %v3005
    %v3007 = vpop.f32.mrf.mxu0
    %v3008 = vadd.f32 %v2903, %v3007
    %3009 = vdwg.mxu0
    %v3010 = vand.u32 %v2855, 4294901760
    %v3011 = vsub.f32 %v2855, %v3010
    %3012 = vmatpush.msra.mxu0 %v3011
    %v3013 = vand.u32 %v2854, 4294901760
    %v3014 = vsub.f32 %v2854, %v3013
    %3015 = vmatpush.msra.mxu0 %v3014
    %v3016 = vand.u32 %v2853, 4294901760
    %v3017 = vsub.f32 %v2853, %v3016
    %3018 = vmatpush.msra.mxu0 %v3017
    %v3019 = vand.u32 %v2852, 4294901760
    %v3020 = vsub.f32 %v2852, %v3019
    %3021 = vmatpush.msra.mxu0 %v3020
    %v3022 = vand.u32 %v2851, 4294901760
    %v3023 = vsub.f32 %v2851, %v3022
    %3024 = vmatpush.msra.mxu0 %v3023
    %v3025 = vand.u32 %v2850, 4294901760
    %v3026 = vsub.f32 %v2850, %v3025
    %3027 = vmatpush.msra.mxu0 %v3026
    %v3028 = vand.u32 %v2849, 4294901760
    %v3029 = vsub.f32 %v2849, %v3028
    %3030 = vmatpush.msra.mxu0 %v3029
    %v3031 = vand.u32 %v2848, 4294901760
    %v3032 = vsub.f32 %v2848, %v3031
    %3033 = vmatpush.msra.mxu0 %v3032
    %v3034 = vand.u32 %v2847, 4294901760
    %v3035 = vsub.f32 %v2847, %v3034
    %3036 = vmatpush.msra.mxu0 %v3035
    %v3037 = vand.u32 %v2846, 4294901760
    %v3038 = vsub.f32 %v2846, %v3037
    %3039 = vmatpush.msra.mxu0 %v3038
    %v3040 = vand.u32 %v2845, 4294901760
    %v3041 = vsub.f32 %v2845, %v3040
    %3042 = vmatpush.msra.mxu0 %v3041
    %v3043 = vand.u32 %v2844, 4294901760
    %v3044 = vsub.f32 %v2844, %v3043
    %3045 = vmatpush.msra.mxu0 %v3044
    %v3046 = vand.u32 %v2843, 4294901760
    %v3047 = vsub.f32 %v2843, %v3046
    %3048 = vmatpush.msra.mxu0 %v3047
    %v3049 = vand.u32 %v2842, 4294901760
    %v3050 = vsub.f32 %v2842, %v3049
    %3051 = vmatpush.msra.mxu0 %v3050
    %v3052 = vand.u32 %v2841, 4294901760
    %v3053 = vsub.f32 %v2841, %v3052
    %3054 = vmatpush.msra.mxu0 %v3053
    %v3055 = vand.u32 %v2840, 4294901760
    %v3056 = vsub.f32 %v2840, %v3055
    %3057 = vmatpush.msra.mxu0 %v3056
    %v3058 = vand.u32 %v2838, 4294901760
    %v3059 = vsub.f32 %v2838, %v3058
    %3060 = vmatmul.f32.gmra.mxu0 %v3059
    %v3061 = vpop.f32.mrf.mxu0
    %v3062 = vadd.f32 %v3004, %v3061
    %v3063 = vand.u32 %v2839, 4294901760
    %v3064 = vsub.f32 %v2839, %v3063
    %3065 = vmatmul.f32.gmra.mxu0 %v3064
    %v3066 = vpop.f32.mrf.mxu0
    %v3067 = vadd.f32 %v3008, %v3066
    %3068 = vdwg.mxu0
    %v3069 = vand.u32 %v2855, 4294901760
    %3070 = vmatpush.msra.mxu0 %v3069
    %v3071 = vand.u32 %v2854, 4294901760
    %3072 = vmatpush.msra.mxu0 %v3071
    %v3073 = vand.u32 %v2853, 4294901760
    %3074 = vmatpush.msra.mxu0 %v3073
    %v3075 = vand.u32 %v2852, 4294901760
    %3076 = vmatpush.msra.mxu0 %v3075
    %v3077 = vand.u32 %v2851, 4294901760
    %3078 = vmatpush.msra.mxu0 %v3077
    %v3079 = vand.u32 %v2850, 4294901760
    %3080 = vmatpush.msra.mxu0 %v3079
    %v3081 = vand.u32 %v2849, 4294901760
    %3082 = vmatpush.msra.mxu0 %v3081
    %v3083 = vand.u32 %v2848, 4294901760
    %3084 = vmatpush.msra.mxu0 %v3083
    %v3085 = vand.u32 %v2847, 4294901760
    %3086 = vmatpush.msra.mxu0 %v3085
    %v3087 = vand.u32 %v2846, 4294901760
    %3088 = vmatpush.msra.mxu0 %v3087
    %v3089 = vand.u32 %v2845, 4294901760
    %3090 = vmatpush.msra.mxu0 %v3089
    %v3091 = vand.u32 %v2844, 4294901760
    %3092 = vmatpush.msra.mxu0 %v3091
    %v3093 = vand.u32 %v2843, 4294901760
    %3094 = vmatpush.msra.mxu0 %v3093
    %v3095 = vand.u32 %v2842, 4294901760
    %3096 = vmatpush.msra.mxu0 %v3095
    %v3097 = vand.u32 %v2841, 4294901760
    %3098 = vmatpush.msra.mxu0 %v3097
    %v3099 = vand.u32 %v2840, 4294901760
    %3100 = vmatpush.msra.mxu0 %v3099
    %v3101 = vand.u32 %v2838, 4294901760
    %v3102 = vsub.f32 %v2838, %v3101
    %v3103 = vand.u32 %v3102, 4294901760
    %3104 = vmatmul.f32.gmra.mxu0 %v3103
    %v3105 = vpop.f32.mrf.mxu0
    %v3106 = vadd.f32 %v3062, %v3105
    %v3107 = vand.u32 %v2839, 4294901760
    %v3108 = vsub.f32 %v2839, %v3107
    %v3109 = vand.u32 %v3108, 4294901760
    %3110 = vmatmul.f32.gmra.mxu0 %v3109
    %v3111 = vpop.f32.mrf.mxu0
    %v3112 = vadd.f32 %v3067, %v3111
    %3113 = vdwg.mxu0
    %v3114 = vand.u32 %v2855, 4294901760
    %v3115 = vsub.f32 %v2855, %v3114
    %v3116 = vand.u32 %v3115, 4294901760
    %3117 = vmatpush.msra.mxu0 %v3116
    %v3118 = vand.u32 %v2854, 4294901760
    %v3119 = vsub.f32 %v2854, %v3118
    %v3120 = vand.u32 %v3119, 4294901760
    %3121 = vmatpush.msra.mxu0 %v3120
    %v3122 = vand.u32 %v2853, 4294901760
    %v3123 = vsub.f32 %v2853, %v3122
    %v3124 = vand.u32 %v3123, 4294901760
    %3125 = vmatpush.msra.mxu0 %v3124
    %v3126 = vand.u32 %v2852, 4294901760
    %v3127 = vsub.f32 %v2852, %v3126
    %v3128 = vand.u32 %v3127, 4294901760
    %3129 = vmatpush.msra.mxu0 %v3128
    %v3130 = vand.u32 %v2851, 4294901760
    %v3131 = vsub.f32 %v2851, %v3130
    %v3132 = vand.u32 %v3131, 4294901760
    %3133 = vmatpush.msra.mxu0 %v3132
    %v3134 = vand.u32 %v2850, 4294901760
    %v3135 = vsub.f32 %v2850, %v3134
    %v3136 = vand.u32 %v3135, 4294901760
    %3137 = vmatpush.msra.mxu0 %v3136
    %v3138 = vand.u32 %v2849, 4294901760
    %v3139 = vsub.f32 %v2849, %v3138
    %v3140 = vand.u32 %v3139, 4294901760
    %3141 = vmatpush.msra.mxu0 %v3140
    %v3142 = vand.u32 %v2848, 4294901760
    %v3143 = vsub.f32 %v2848, %v3142
    %v3144 = vand.u32 %v3143, 4294901760
    %3145 = vmatpush.msra.mxu0 %v3144
    %v3146 = vand.u32 %v2847, 4294901760
    %v3147 = vsub.f32 %v2847, %v3146
    %v3148 = vand.u32 %v3147, 4294901760
    %3149 = vmatpush.msra.mxu0 %v3148
    %v3150 = vand.u32 %v2846, 4294901760
    %v3151 = vsub.f32 %v2846, %v3150
    %v3152 = vand.u32 %v3151, 4294901760
    %3153 = vmatpush.msra.mxu0 %v3152
    %v3154 = vand.u32 %v2845, 4294901760
    %v3155 = vsub.f32 %v2845, %v3154
    %v3156 = vand.u32 %v3155, 4294901760
    %3157 = vmatpush.msra.mxu0 %v3156
    %v3158 = vand.u32 %v2844, 4294901760
    %v3159 = vsub.f32 %v2844, %v3158
    %v3160 = vand.u32 %v3159, 4294901760
    %3161 = vmatpush.msra.mxu0 %v3160
    %v3162 = vand.u32 %v2843, 4294901760
    %v3163 = vsub.f32 %v2843, %v3162
    %v3164 = vand.u32 %v3163, 4294901760
    %3165 = vmatpush.msra.mxu0 %v3164
    %v3166 = vand.u32 %v2842, 4294901760
    %v3167 = vsub.f32 %v2842, %v3166
    %v3168 = vand.u32 %v3167, 4294901760
    %3169 = vmatpush.msra.mxu0 %v3168
    %v3170 = vand.u32 %v2841, 4294901760
    %v3171 = vsub.f32 %v2841, %v3170
    %v3172 = vand.u32 %v3171, 4294901760
    %3173 = vmatpush.msra.mxu0 %v3172
    %v3174 = vand.u32 %v2840, 4294901760
    %v3175 = vsub.f32 %v2840, %v3174
    %v3176 = vand.u32 %v3175, 4294901760
    %3177 = vmatpush.msra.mxu0 %v3176
    %v3178 = vand.u32 %v2838, 4294901760
    %3179 = vmatmul.f32.gmra.mxu0 %v3178
    %v3180 = vpop.f32.mrf.mxu0
    %v3181 = vadd.f32 %v3106, %v3180
    %v3182 = vand.u32 %v2839, 4294901760
    %3183 = vmatmul.f32.gmra.mxu0 %v3182
    %v3184 = vpop.f32.mrf.mxu0
    %v3185 = vadd.f32 %v3112, %v3184
    %3186 = vdwg.mxu0
    %v3187 = vand.u32 %v2855, 4294901760
    %3188 = vmatpush.msra.mxu0 %v3187
    %v3189 = vand.u32 %v2854, 4294901760
    %3190 = vmatpush.msra.mxu0 %v3189
    %v3191 = vand.u32 %v2853, 4294901760
    %3192 = vmatpush.msra.mxu0 %v3191
    %v3193 = vand.u32 %v2852, 4294901760
    %3194 = vmatpush.msra.mxu0 %v3193
    %v3195 = vand.u32 %v2851, 4294901760
    %3196 = vmatpush.msra.mxu0 %v3195
    %v3197 = vand.u32 %v2850, 4294901760
    %3198 = vmatpush.msra.mxu0 %v3197
    %v3199 = vand.u32 %v2849, 4294901760
    %3200 = vmatpush.msra.mxu0 %v3199
    %v3201 = vand.u32 %v2848, 4294901760
    %3202 = vmatpush.msra.mxu0 %v3201
    %v3203 = vand.u32 %v2847, 4294901760
    %3204 = vmatpush.msra.mxu0 %v3203
    %v3205 = vand.u32 %v2846, 4294901760
    %3206 = vmatpush.msra.mxu0 %v3205
    %v3207 = vand.u32 %v2845, 4294901760
    %3208 = vmatpush.msra.mxu0 %v3207
    %v3209 = vand.u32 %v2844, 4294901760
    %3210 = vmatpush.msra.mxu0 %v3209
    %v3211 = vand.u32 %v2843, 4294901760
    %3212 = vmatpush.msra.mxu0 %v3211
    %v3213 = vand.u32 %v2842, 4294901760
    %3214 = vmatpush.msra.mxu0 %v3213
    %v3215 = vand.u32 %v2841, 4294901760
    %3216 = vmatpush.msra.mxu0 %v3215
    %v3217 = vand.u32 %v2840, 4294901760
    %3218 = vmatpush.msra.mxu0 %v3217
    %v3219 = vand.u32 %v2838, 4294901760
    %3220 = vmatmul.f32.gmra.mxu0 %v3219
    %v3221 = vpop.f32.mrf.mxu0
    %v3222 = vadd.f32 %v3181, %v3221
    %v3223 = vand.u32 %v2839, 4294901760
    %3224 = vmatmul.f32.gmra.mxu0 %v3223
    %v3225 = vpop.f32.mrf.mxu0
    %v3226 = vadd.f32 %v3185, %v3225
    %3227 = vdwg.mxu0
    %v3228 = vsel %vm169, %v3222, -inf
    %v3229 = vrot.slane %v3228, 4
    %v3230 = vmax.f32 %v3228, %v3229
    %v3231 = vrot.slane %v3230, 2
    %v3232 = vmax.f32 %v3230, %v3231
    %v3233 = vrot.slane %v3232, 1
    %v3234 = vmax.f32 %v3232, %v3233
    %v3235 = vsub.f32 %v3222, %v3234
    %v3236 = vmul.f32 %v3235, 1.442695
    %v3237 = vpow.pop %v3236
    %v3238 = vsel %vm169, %v3237, 0.0
    %v3239 = vrot.slane %v3238, 4
    %v3240 = vadd.f32 %v3238, %v3239
    %v3241 = vrot.slane %v3240, 2
    %v3242 = vadd.f32 %v3240, %v3241
    %v3243 = vrot.slane %v3242, 1
    %v3244 = vadd.f32 %v3242, %v3243
    %v3245 = vrcp.pop %v3244
    %v3246 = vmul.f32 %v3237, %v3245
    %v3247 = vadd.f32 %v3246, 0.0
    %v3248 = vsel %vm169, %v3226, -inf
    %v3249 = vrot.slane %v3248, 4
    %v3250 = vmax.f32 %v3248, %v3249
    %v3251 = vrot.slane %v3250, 2
    %v3252 = vmax.f32 %v3250, %v3251
    %v3253 = vrot.slane %v3252, 1
    %v3254 = vmax.f32 %v3252, %v3253
    %v3255 = vsub.f32 %v3226, %v3254
    %v3256 = vmul.f32 %v3255, 1.442695
    %v3257 = vpow.pop %v3256
    %v3258 = vsel %vm169, %v3257, 0.0
    %v3259 = vrot.slane %v3258, 4
    %v3260 = vadd.f32 %v3258, %v3259
    %v3261 = vrot.slane %v3260, 2
    %v3262 = vadd.f32 %v3260, %v3261
    %v3263 = vrot.slane %v3262, 1
    %v3264 = vadd.f32 %v3262, %v3263
    %v3265 = vrcp.pop %v3264
    %v3266 = vmul.f32 %v3257, %v3265
    %v3267 = vadd.f32 %v3247, %v3266
    %v3268 = vand.u32 2147483647, %v1268
    %v3269 = vsel %vm169, %v3268, -inf
    %v3270 = vrot.slane %v3269, 4
    %v3271 = vmax.f32 %v3269, %v3270
    %v3272 = vrot.slane %v3271, 2
    %v3273 = vmax.f32 %v3271, %v3272
    %v3274 = vrot.slane %v3273, 1
    %v3275 = vmax.f32 %v3273, %v3274
    %v3276 = vsub.f32 %v3268, %v3275
    %v3277 = vmul.f32 %v3276, 1.442695
    %v3278 = vpow.pop %v3277
    %v3279 = vsel %vm169, %v3278, 0.0
    %v3280 = vrot.slane %v3279, 4
    %v3281 = vadd.f32 %v3279, %v3280
    %v3282 = vrot.slane %v3281, 2
    %v3283 = vadd.f32 %v3281, %v3282
    %v3284 = vrot.slane %v3283, 1
    %v3285 = vadd.f32 %v3283, %v3284
    %v3286 = vrcp.pop %v3285
    %v3287 = vmul.f32 %v3278, %v3286
    %v3288 = vmul.f32 %v3267, 0.25
    %v3289 = vmul.f32 %v3287, 0.5
    %v3290 = vadd.f32 %v3288, %v3289
    %v3291 = vmul.f32 %v33, %v3290
    %v3292 = vsel %vm169, %v3291, 0.0
    %v3293 = vrot.slane %v3292, 4
    %v3294 = vadd.f32 %v3292, %v3293
    %v3295 = vrot.slane %v3294, 2
    %v3296 = vadd.f32 %v3294, %v3295
    %v3297 = vrot.slane %v3296, 1
    %v3298 = vadd.f32 %v3296, %v3297
    %v3299 = vadd.f32 %v3298, %v1272
    %3300 = vst [vmem:[#allocation2] sm:$0x1] %v3299
    // Predicated region
    $region38: #{tpu_custom_call.1} parent=1 // pred_check
      _
    $region39: #{tpu_custom_call.1} parent=1 // pred_check_branch
      %3302 = sbr.rel (0) target = $region41
    $region40: #{tpu_custom_call.1} parent=1 // pred_region
      %3304 = vsyncadd [#allocation3], 0
      %s3306 = sshll.u32 [#allocation2], 4
      %s3307 = int_to_ptr.vmem [resolvable:$true] %s3306
      %s3308 = sshll.u32 %s9, 4
      %s3309 = int_to_ptr.hbm [resolvable:$true] %s3308
      %3311 = dma.vmem_to_hbm [thread:$0]  %s3307, 16, %s3309, [#allocation3]
    $region41: #{tpu_custom_call.1} parent=1 // pred_fallthru
      _
    // Predicated region
    $region42: #{tpu_custom_call.1} parent=1 // pred_check
      _
    $region43: #{tpu_custom_call.1} parent=1 // pred_check_branch
      %3313 = sbr.rel (0) target = $region45
    $region44: #{tpu_custom_call.1} parent=1 // pred_region
      %3315 = dma.done [#allocation3], 16
    $region45: #{tpu_custom_call.1} parent=1 // pred_fallthru
      _
    %3316 = vsyncpa [#allocation3], 1

</llo_original>
